<compile_context>
chip_gen: v6e
topology: v6e:2x2x1
jax: 0.10.0
libtpu: 0.0.40
codegen_flags: <defaults>
</compile_context>

<pallas_src>
import functools

import jax
import jax.numpy as jnp
import numpy as np
from jax import lax
from jax.experimental import pallas as pl
from jax.experimental.pallas import tpu as pltpu


def _round_up(a, b):
    return ((a + b - 1) // b) * b


def _sh_basis_cols(x, y, z, num_bases_to_use):
    """Real SH basis terms (identical math to gsplat._eval_sh_bases_fast).

    x, y, z are broadcast-compatible unit-direction components.  Returns a
    list of `num_bases_to_use` arrays (only the bases actually used)."""
    cols = [jnp.full_like(x, 0.2820947917738781)]
    if num_bases_to_use > 1:
        fTmpA = -0.48860251190292
        cols += [fTmpA * y, -fTmpA * z, fTmpA * x]
    if num_bases_to_use > 4:
        z2 = z * z
        fTmpB = -1.092548430592079 * z
        fTmpA2 = 0.5462742152960395
        fC1 = x * x - y * y
        fS1 = 2.0 * x * y
        cols += [
            fTmpA2 * fS1,
            fTmpB * y,
            0.9461746957575601 * z2 - 0.3153915652525201,
            fTmpB * x,
            fTmpA2 * fC1,
        ]
    if num_bases_to_use > 9:
        fTmpC = -2.285228997322329 * z2 + 0.4570457994644658
        fTmpB3 = 1.445305721320277 * z
        fTmpA3 = -0.5900435899266435
        fC2 = x * fC1 - y * fS1
        fS2 = x * fS1 + y * fC1
        cols += [
            fTmpA3 * fS2,
            fTmpB3 * fS1,
            fTmpC * y,
            z * (1.865881662950577 * z2 - 1.119528997770346),
            fTmpC * x,
            fTmpB3 * fC1,
            fTmpA3 * fC2,
        ]
    # TODO(synk): degree-4 SH terms (num_bases_to_use > 16) not implemented.
    return cols


def _appearance_kernel(bias_ref, feat_ref, dirs_ref,
                       w1f_ref, w1s_ref, w2_ref, b2_ref, w3_ref, b3_ref,
                       out_ref, *, num_cameras, num_bases_to_use):
    """One gaussian tile; loops over all cameras in-kernel (lane-dense)."""
    ft = feat_ref[...]                                       # (tile_n, F)

    # Layer-1 feature term, computed ONCE per tile and reused for every
    # camera.  dot_general with (((1,),(1,)),((),())) is A @ B^T, so the
    # un-transposed feature tile feeds the MXU directly (no wrapper or
    # in-kernel transpose).
    h_feat = lax.dot_general(
        w1f_ref[...], ft, (((1,), (1,)), ((), ())),
        preferred_element_type=jnp.float32)                  # (W, tile_n)

    w1s = w1s_ref[...]
    w2 = w2_ref[...]
    b2 = b2_ref[...]
    w3 = w3_ref[...]
    b3 = b3_ref[...]

    # TODO(synk): vectorize normalize/SH across cameras onto sublanes
    # ((C, tile_n) shapes) to lift VPU occupancy above 1/8 once DMA-bound.
    for c in range(num_cameras):                             # small static unroll
        # --- normalize directions (F.normalize eps=1e-12 semantics) ---
        d = dirs_ref[c]                                      # (3, tile_n)
        x = d[0:1, :]
        y = d[1:2, :]
        z = d[2:3, :]
        nsq = x * x + y * y + z * z
        inv = lax.rsqrt(jnp.maximum(nsq, 1e-24))             # == 1/max(||d||,1e-12)
        x = x * inv
        y = y * inv
        z = z * inv

        # --- spherical harmonics, stacked on the sublane axis ---
        sh = jnp.concatenate(
            _sh_basis_cols(x, y, z, num_bases_to_use), axis=0)  # (nb_use, tile_n)

        # --- MLP: Linear -> ReLU -> Linear -> ReLU -> Linear ---
        # embedding contribution is already folded into bias_ref[c].
        h = h_feat + jnp.dot(w1s, sh, preferred_element_type=jnp.float32)
        h = jnp.maximum(h + bias_ref[c], 0.0)                # (W, tile_n)
        h = jnp.maximum(
            jnp.dot(w2, h, preferred_element_type=jnp.float32) + b2, 0.0)
        out = jnp.dot(w3, h, preferred_element_type=jnp.float32) + b3

        out_ref[c] = out.astype(out_ref.dtype)               # (3, tile_n) lane-dense


def appearance_forward(params, features, embed_ids, dirs, sh_degree,
                       *, sh_degree_full=3, tile_n=4096):
    emb_table, w1, b1, w2, b2, w3, b3 = params
    C, N, _ = dirs.shape
    embed_dim = emb_table.shape[1]
    feature_dim = features.shape[1]
    mlp_width = w1.shape[1]
    num_bases_to_use = (sh_degree + 1) ** 2
    if sh_degree_full > 3 or sh_degree > sh_degree_full:
        # TODO(synk): degree-4 SH bases (25 terms) not implemented.
        raise NotImplementedError("sh_degree(_full) > 3 is not supported")

    features = features.astype(jnp.float32)                      # (N, F) — no transpose
    dirs_t = jnp.transpose(dirs, (0, 2, 1)).astype(jnp.float32)  # (C, 3, N) lane-dense

    # Tile size: clamp to a 128-aligned cover of N.  For N >= tile_n nothing
    # is padded (the ragged last block is handled by Pallas edge masking);
    # only tiny inputs (N < tile_n) get a cheap pad to one tile.
    tile_n = max(128, _round_up(min(tile_n, _round_up(N, 128)), 128))
    n_kernel = N
    if tile_n > N:
        n_kernel = tile_n
        features = jnp.pad(features, ((0, n_kernel - N), (0, 0)))
        dirs_t = jnp.pad(dirs_t, ((0, 0), (0, 0), (0, n_kernel - N)))
    num_tiles = pl.cdiv(n_kernel, tile_n)

    # Per-camera embedding folded into a layer-1 bias (wrapper glue).
    if embed_ids is None:
        embeds = jnp.zeros((C, embed_dim), jnp.float32)
    else:
        embeds = jnp.take(emb_table, embed_ids, axis=0)           # (C, E)
    cam_bias = (embeds @ w1[:embed_dim] + b1).reshape(C, mlp_width, 1)
    cam_bias = cam_bias.astype(jnp.float32)

    # Weights transposed for the lane-dense (N-on-lanes) pipeline; the SH
    # weight is trimmed to the bases actually used (zero bases contribute 0).
    w1f_t = jnp.transpose(w1[embed_dim:embed_dim + feature_dim])  # (W, F)
    w1s_t = jnp.transpose(
        w1[embed_dim + feature_dim:embed_dim + feature_dim + num_bases_to_use]
    )                                                             # (W, nb_use)
    w2_t = jnp.transpose(w2)                                      # (W, W)
    b2_t = jnp.reshape(b2, (mlp_width, 1))                        # (W, 1)
    w3_t = jnp.transpose(w3)                                      # (3, W)
    b3_t = jnp.reshape(b3, (3, 1))                                # (3, 1)

    kernel = functools.partial(_appearance_kernel, num_cameras=C,
                               num_bases_to_use=num_bases_to_use)

    out_t = pl.pallas_call(
        kernel,
        out_shape=jax.ShapeDtypeStruct((C, 3, n_kernel), jnp.float32),
        grid_spec=pl.GridSpec(
            grid=(num_tiles,),
            in_specs=[
                pl.BlockSpec((C, mlp_width, 1), lambda i: (0, 0, 0)),
                pl.BlockSpec((tile_n, feature_dim), lambda i: (i, 0)),
                pl.BlockSpec((C, 3, tile_n), lambda i: (0, 0, i)),
                pl.BlockSpec(w1f_t.shape, lambda i: (0, 0)),
                pl.BlockSpec(w1s_t.shape, lambda i: (0, 0)),
                pl.BlockSpec(w2_t.shape, lambda i: (0, 0)),
                pl.BlockSpec(b2_t.shape, lambda i: (0, 0)),
                pl.BlockSpec(w3_t.shape, lambda i: (0, 0)),
                pl.BlockSpec(b3_t.shape, lambda i: (0, 0)),
            ],
            out_specs=pl.BlockSpec((C, 3, tile_n), lambda i: (0, 0, i)),
        ),
        compiler_params=pltpu.CompilerParams(
            # Tile axis is parallel -> grid shards across v7x's 2 TensorCores.
            dimension_semantics=("parallel",),
            # Headroom above v5e's 16 MiB scoped default for large tiles while
            # staying under v7x's 64 MiB physical VMEM.
            vmem_limit_bytes=48 * 1024 * 1024,
        ),
    )(cam_bias, features, dirs_t, w1f_t, w1s_t, w2_t, b2_t, w3_t, b3_t)

    if n_kernel != N:
        out_t = out_t[:, :, :N]
    # Back to the module's (C, N, 3) layout.  Consumers that can accept the
    # lane-dense (C, 3, N) layout should skip this transpose.
    return jnp.transpose(out_t, (0, 2, 1))


def appearance_forward_ref(params, features, embed_ids, dirs, sh_degree,
                           *, sh_degree_full=3):
    """Pure-JAX reference mirroring the PyTorch forward."""
    emb_table, w1, b1, w2, b2, w3, b3 = params
    C, N, _ = dirs.shape
    num_bases = (sh_degree_full + 1) ** 2
    num_bases_to_use = (sh_degree + 1) ** 2
    if embed_ids is None:
        embeds = jnp.zeros((C, emb_table.shape[1]), jnp.float32)
    else:
        embeds = jnp.take(emb_table, embed_ids, axis=0)           # (C, E)
    embeds = jnp.broadcast_to(embeds[:, None, :], (C, N, embeds.shape[-1]))
    feats = jnp.broadcast_to(features[None], (C, N, features.shape[-1]))
    norm = jnp.linalg.norm(dirs, axis=-1, keepdims=True)
    d = dirs / jnp.maximum(norm, 1e-12)
    x, y, z = d[..., 0:1], d[..., 1:2], d[..., 2:3]
    cols = _sh_basis_cols(x, y, z, num_bases_to_use)
    cols = cols + [jnp.zeros_like(x)] * (num_bases - num_bases_to_use)
    sh = jnp.concatenate(cols, axis=-1)
    h = jnp.concatenate([embeds, feats, sh], axis=-1)
    h = jnp.maximum(h @ w1 + b1, 0.0)
    h = jnp.maximum(h @ w2 + b2, 0.0)
    return h @ w3 + b3


if __name__ == "__main__":
    # Module hyperparameters (AppearanceOptModule defaults, small n).
    n_embeds = 8
    feature_dim = 32
    embed_dim = 16
    sh_degree_full = 3
    mlp_width = 64
    in_dim = embed_dim + feature_dim + (sh_degree_full + 1) ** 2  # 64

    key = jax.random.PRNGKey(0)
    ks = jax.random.split(key, 12)

    # Deterministic synthetic parameters.
    emb_table = jax.random.normal(ks[0], (n_embeds, embed_dim), jnp.float32)
    w1 = jax.random.normal(ks[1], (in_dim, mlp_width), jnp.float32) / np.sqrt(in_dim)
    b1 = 0.01 * jax.random.normal(ks[2], (1, mlp_width), jnp.float32)
    w2 = jax.random.normal(ks[3], (mlp_width, mlp_width), jnp.float32) / np.sqrt(mlp_width)
    b2 = 0.01 * jax.random.normal(ks[4], (1, mlp_width), jnp.float32)
    w3 = jax.random.normal(ks[5], (mlp_width, 3), jnp.float32) / np.sqrt(mlp_width)
    b3 = 0.01 * jax.random.normal(ks[6], (1, 3), jnp.float32)
    params = (emb_table, w1, b1, w2, b2, w3, b3)

    # Case 1: multi-tile path with a ragged (masked) edge block, full SH degree.
    C, N = 2, 1000
    features = jax.random.normal(ks[7], (N, feature_dim), jnp.float32)
    dirs = jax.random.normal(ks[8], (C, N, 3), jnp.float32)
    embed_ids = jnp.array([1, 5], dtype=jnp.int32)
    colors = appearance_forward(params, features, embed_ids, dirs, sh_degree=3,
                                sh_degree_full=sh_degree_full, tile_n=512)
    colors = jax.block_until_ready(colors)
    ref = appearance_forward_ref(params, features, embed_ids, dirs, 3,
                                 sh_degree_full=sh_degree_full)
    np.testing.assert_allclose(np.asarray(colors), np.asarray(ref),
                               rtol=1e-4, atol=1e-4)

    # Case 2: tiny-N fallback (single padded tile), reduced SH degree, 3 cameras.
    C2, N2 = 3, 64
    features2 = jax.random.normal(ks[9], (N2, feature_dim), jnp.float32)
    dirs2 = jax.random.normal(ks[10], (C2, N2, 3), jnp.float32)
    embed_ids2 = jnp.array([0, 3, 7], dtype=jnp.int32)
    colors2 = appearance_forward(params, features2, embed_ids2, dirs2, sh_degree=2,
                                 sh_degree_full=sh_degree_full)
    colors2 = jax.block_until_ready(colors2)
    ref2 = appearance_forward_ref(params, features2, embed_ids2, dirs2, 2,
                                  sh_degree_full=sh_degree_full)
    np.testing.assert_allclose(np.asarray(colors2), np.asarray(ref2),
                               rtol=1e-4, atol=1e-4)

    print("KERNEL_OK")
</pallas_src>

<mosaic_0001>
module attributes {stable_mosaic.version = 11 : i64} {
  func.func @_appearance_kernel(%arg0: i32, %arg1: memref<2x64x1xf32, #tpu.memory_space<vmem>>, %arg2: memref<512x32xf32, #tpu.memory_space<vmem>>, %arg3: memref<2x3x512xf32, #tpu.memory_space<vmem>>, %arg4: memref<64x32xf32, #tpu.memory_space<vmem>>, %arg5: memref<64x16xf32, #tpu.memory_space<vmem>>, %arg6: memref<64x64xf32, #tpu.memory_space<vmem>>, %arg7: memref<64x1xf32, #tpu.memory_space<vmem>>, %arg8: memref<3x64xf32, #tpu.memory_space<vmem>>, %arg9: memref<3x1xf32, #tpu.memory_space<vmem>>, %arg10: memref<2x3x512xf32, #tpu.memory_space<vmem>>) attributes {dimension_semantics = [#tpu.dimension_semantics<parallel>], iteration_bounds = array<i64: 2>, scalar_prefetch = 0 : i64, scratch_operands = 0 : i64, tpu.core_type = #tpu.core_type<tc>, window_params = [{pipeline_mode = #tpu.pipeline_mode<synchronous>, transform_indices = @transform_0, window_bounds = array<i64: 2, 64, 1>}, {transform_indices = @transform_1, window_bounds = array<i64: 512, 32>}, {transform_indices = @transform_2, window_bounds = array<i64: 2, 3, 512>}, {pipeline_mode = #tpu.pipeline_mode<synchronous>, transform_indices = @transform_3, window_bounds = array<i64: 64, 32>}, {pipeline_mode = #tpu.pipeline_mode<synchronous>, transform_indices = @transform_4, window_bounds = array<i64: 64, 16>}, {pipeline_mode = #tpu.pipeline_mode<synchronous>, transform_indices = @transform_5, window_bounds = array<i64: 64, 64>}, {pipeline_mode = #tpu.pipeline_mode<synchronous>, transform_indices = @transform_6, window_bounds = array<i64: 64, 1>}, {pipeline_mode = #tpu.pipeline_mode<synchronous>, transform_indices = @transform_7, window_bounds = array<i64: 3, 64>}, {pipeline_mode = #tpu.pipeline_mode<synchronous>, transform_indices = @transform_8, window_bounds = array<i64: 3, 1>}, {transform_indices = @transform_9, window_bounds = array<i64: 2, 3, 512>}]} {
    %c0 = arith.constant 0 : index
    %c0_0 = arith.constant 0 : index
    %0 = vector.load %arg2[%c0, %c0_0] : memref<512x32xf32, #tpu.memory_space<vmem>>, vector<512x32xf32>
    %c0_1 = arith.constant 0 : index
    %c0_2 = arith.constant 0 : index
    %1 = vector.load %arg4[%c0_1, %c0_2] : memref<64x32xf32, #tpu.memory_space<vmem>>, vector<64x32xf32>
    %cst = arith.constant dense<0.000000e+00> : vector<64x512xf32>
    %2 = tpu.matmul %1, %0, %cst {dimension_numbers = #tpu.dot_dimension_numbers<[1], [1], [0], [0], [0, 0, 1, 0], [], []>} : vector<64x32xf32>, vector<512x32xf32>, vector<64x512xf32> -> vector<64x512xf32>
    %c0_3 = arith.constant 0 : index
    %c0_4 = arith.constant 0 : index
    %3 = vector.load %arg5[%c0_3, %c0_4] : memref<64x16xf32, #tpu.memory_space<vmem>>, vector<64x16xf32>
    %c0_5 = arith.constant 0 : index
    %c0_6 = arith.constant 0 : index
    %4 = vector.load %arg6[%c0_5, %c0_6] : memref<64x64xf32, #tpu.memory_space<vmem>>, vector<64x64xf32>
    %c0_7 = arith.constant 0 : index
    %c0_8 = arith.constant 0 : index
    %5 = vector.load %arg7[%c0_7, %c0_8] : memref<64x1xf32, #tpu.memory_space<vmem>>, vector<64x1xf32>
    %c0_9 = arith.constant 0 : index
    %c0_10 = arith.constant 0 : index
    %6 = vector.load %arg8[%c0_9, %c0_10] : memref<3x64xf32, #tpu.memory_space<vmem>>, vector<3x64xf32>
    %c0_11 = arith.constant 0 : index
    %c0_12 = arith.constant 0 : index
    %7 = vector.load %arg9[%c0_11, %c0_12] : memref<3x1xf32, #tpu.memory_space<vmem>>, vector<3x1xf32>
    %c0_13 = arith.constant 0 : index
    %c0_14 = arith.constant 0 : index
    %c0_15 = arith.constant 0 : index
    %8 = vector.load %arg3[%c0_13, %c0_14, %c0_15] : memref<2x3x512xf32, #tpu.memory_space<vmem>>, vector<1x3x512xf32>
    %9 = vector.shape_cast %8 : vector<1x3x512xf32> to vector<3x512xf32>
    %10 = vector.extract_strided_slice %9 {offsets = [0, 0], sizes = [1, 512], strides = [1, 1]} : vector<3x512xf32> to vector<1x512xf32>
    %11 = vector.extract_strided_slice %9 {offsets = [1, 0], sizes = [1, 512], strides = [1, 1]} : vector<3x512xf32> to vector<1x512xf32>
    %12 = vector.extract_strided_slice %9 {offsets = [2, 0], sizes = [1, 512], strides = [1, 1]} : vector<3x512xf32> to vector<1x512xf32>
    %13 = arith.mulf %10, %10 : vector<1x512xf32>
    %14 = arith.mulf %11, %11 : vector<1x512xf32>
    %15 = arith.addf %13, %14 : vector<1x512xf32>
    %16 = arith.mulf %12, %12 : vector<1x512xf32>
    %17 = arith.addf %15, %16 : vector<1x512xf32>
    %cst_16 = arith.constant 1.000000e-24 : f32
    %18 = vector.broadcast %cst_16 : f32 to vector<1x512xf32>
    %19 = arith.maximumf %17, %18 : vector<1x512xf32>
    %20 = math.rsqrt %19 : vector<1x512xf32>
    %21 = arith.mulf %10, %20 : vector<1x512xf32>
    %22 = arith.mulf %11, %20 : vector<1x512xf32>
    %23 = arith.mulf %12, %20 : vector<1x512xf32>
    %cst_17 = arith.constant 0.282094806 : f32
    %24 = vector.broadcast %cst_17 : f32 to vector<1x512xf32>
    %cst_18 = arith.constant -0.488602519 : f32
    %25 = vector.broadcast %cst_18 : f32 to vector<1x512xf32>
    %26 = arith.mulf %25, %22 : vector<1x512xf32>
    %cst_19 = arith.constant 0.488602519 : f32
    %27 = vector.broadcast %cst_19 : f32 to vector<1x512xf32>
    %28 = arith.mulf %27, %23 : vector<1x512xf32>
    %cst_20 = arith.constant -0.488602519 : f32
    %29 = vector.broadcast %cst_20 : f32 to vector<1x512xf32>
    %30 = arith.mulf %29, %21 : vector<1x512xf32>
    %31 = arith.mulf %23, %23 : vector<1x512xf32>
    %cst_21 = arith.constant -1.09254849 : f32
    %32 = vector.broadcast %cst_21 : f32 to vector<1x512xf32>
    %33 = arith.mulf %32, %23 : vector<1x512xf32>
    %34 = arith.mulf %21, %21 : vector<1x512xf32>
    %35 = arith.mulf %22, %22 : vector<1x512xf32>
    %36 = arith.subf %34, %35 : vector<1x512xf32>
    %cst_22 = arith.constant 2.000000e+00 : f32
    %37 = vector.broadcast %cst_22 : f32 to vector<1x512xf32>
    %38 = arith.mulf %37, %21 : vector<1x512xf32>
    %39 = arith.mulf %38, %22 : vector<1x512xf32>
    %cst_23 = arith.constant 0.546274245 : f32
    %40 = vector.broadcast %cst_23 : f32 to vector<1x512xf32>
    %41 = arith.mulf %40, %39 : vector<1x512xf32>
    %42 = arith.mulf %33, %22 : vector<1x512xf32>
    %cst_24 = arith.constant 0.946174681 : f32
    %43 = vector.broadcast %cst_24 : f32 to vector<1x512xf32>
    %44 = arith.mulf %43, %31 : vector<1x512xf32>
    %cst_25 = arith.constant 0.31539157 : f32
    %45 = vector.broadcast %cst_25 : f32 to vector<1x512xf32>
    %46 = arith.subf %44, %45 : vector<1x512xf32>
    %47 = arith.mulf %33, %21 : vector<1x512xf32>
    %cst_26 = arith.constant 0.546274245 : f32
    %48 = vector.broadcast %cst_26 : f32 to vector<1x512xf32>
    %49 = arith.mulf %48, %36 : vector<1x512xf32>
    %cst_27 = arith.constant -2.28522897 : f32
    %50 = vector.broadcast %cst_27 : f32 to vector<1x512xf32>
    %51 = arith.mulf %50, %31 : vector<1x512xf32>
    %cst_28 = arith.constant 0.457045794 : f32
    %52 = vector.broadcast %cst_28 : f32 to vector<1x512xf32>
    %53 = arith.addf %51, %52 : vector<1x512xf32>
    %cst_29 = arith.constant 1.44530571 : f32
    %54 = vector.broadcast %cst_29 : f32 to vector<1x512xf32>
    %55 = arith.mulf %54, %23 : vector<1x512xf32>
    %56 = arith.mulf %21, %36 : vector<1x512xf32>
    %57 = arith.mulf %22, %39 : vector<1x512xf32>
    %58 = arith.subf %56, %57 : vector<1x512xf32>
    %59 = arith.mulf %21, %39 : vector<1x512xf32>
    %60 = arith.mulf %22, %36 : vector<1x512xf32>
    %61 = arith.addf %59, %60 : vector<1x512xf32>
    %cst_30 = arith.constant -0.590043604 : f32
    %62 = vector.broadcast %cst_30 : f32 to vector<1x512xf32>
    %63 = arith.mulf %62, %61 : vector<1x512xf32>
    %64 = arith.mulf %55, %39 : vector<1x512xf32>
    %65 = arith.mulf %53, %22 : vector<1x512xf32>
    %cst_31 = arith.constant 1.86588168 : f32
    %66 = vector.broadcast %cst_31 : f32 to vector<1x512xf32>
    %67 = arith.mulf %66, %31 : vector<1x512xf32>
    %cst_32 = arith.constant 1.11952901 : f32
    %68 = vector.broadcast %cst_32 : f32 to vector<1x512xf32>
    %69 = arith.subf %67, %68 : vector<1x512xf32>
    %70 = arith.mulf %23, %69 : vector<1x512xf32>
    %71 = arith.mulf %53, %21 : vector<1x512xf32>
    %72 = arith.mulf %55, %36 : vector<1x512xf32>
    %cst_33 = arith.constant -0.590043604 : f32
    %73 = vector.broadcast %cst_33 : f32 to vector<1x512xf32>
    %74 = arith.mulf %73, %58 : vector<1x512xf32>
    %75 = tpu.concatenate %24, %26, %28, %30, %41, %42, %46, %47, %49, %63, %64, %65, %70, %71, %72, %74 in 0 : vector<1x512xf32>, vector<1x512xf32>, vector<1x512xf32>, vector<1x512xf32>, vector<1x512xf32>, vector<1x512xf32>, vector<1x512xf32>, vector<1x512xf32>, vector<1x512xf32>, vector<1x512xf32>, vector<1x512xf32>, vector<1x512xf32>, vector<1x512xf32>, vector<1x512xf32>, vector<1x512xf32>, vector<1x512xf32> -> vector<16x512xf32>
    %cst_34 = arith.constant dense<0.000000e+00> : vector<64x512xf32>
    %76 = tpu.matmul %3, %75, %cst_34 {dimension_numbers = #tpu.dot_dimension_numbers<[1], [0], [0], [1], [0, 0, 1, 1], [], []>} : vector<64x16xf32>, vector<16x512xf32>, vector<64x512xf32> -> vector<64x512xf32>
    %77 = arith.addf %2, %76 : vector<64x512xf32>
    %c0_35 = arith.constant 0 : index
    %c0_36 = arith.constant 0 : index
    %c0_37 = arith.constant 0 : index
    %78 = vector.load %arg1[%c0_35, %c0_36, %c0_37] : memref<2x64x1xf32, #tpu.memory_space<vmem>>, vector<1x64x1xf32>
    %79 = vector.shape_cast %78 : vector<1x64x1xf32> to vector<64x1xf32>
    %80 = vector.broadcast %79 : vector<64x1xf32> to vector<64x512xf32>
    %81 = arith.addf %77, %80 : vector<64x512xf32>
    %cst_38 = arith.constant 0.000000e+00 : f32
    %82 = vector.broadcast %cst_38 : f32 to vector<64x512xf32>
    %83 = arith.maximumf %81, %82 : vector<64x512xf32>
    %cst_39 = arith.constant dense<0.000000e+00> : vector<64x512xf32>
    %84 = tpu.matmul %4, %83, %cst_39 {dimension_numbers = #tpu.dot_dimension_numbers<[1], [0], [0], [1], [0, 0, 1, 1], [], []>} : vector<64x64xf32>, vector<64x512xf32>, vector<64x512xf32> -> vector<64x512xf32>
    %85 = vector.broadcast %5 : vector<64x1xf32> to vector<64x512xf32>
    %86 = arith.addf %84, %85 : vector<64x512xf32>
    %cst_40 = arith.constant 0.000000e+00 : f32
    %87 = vector.broadcast %cst_40 : f32 to vector<64x512xf32>
    %88 = arith.maximumf %86, %87 : vector<64x512xf32>
    %cst_41 = arith.constant dense<0.000000e+00> : vector<3x512xf32>
    %89 = tpu.matmul %6, %88, %cst_41 {dimension_numbers = #tpu.dot_dimension_numbers<[1], [0], [0], [1], [0, 0, 1, 1], [], []>} : vector<3x64xf32>, vector<64x512xf32>, vector<3x512xf32> -> vector<3x512xf32>
    %90 = vector.broadcast %7 : vector<3x1xf32> to vector<3x512xf32>
    %91 = arith.addf %89, %90 : vector<3x512xf32>
    %c0_42 = arith.constant 0 : index
    %c0_43 = arith.constant 0 : index
    %c0_44 = arith.constant 0 : index
    %92 = vector.load %arg10[%c0_42, %c0_43, %c0_44] : memref<2x3x512xf32, #tpu.memory_space<vmem>>, vector<1x3x512xf32>
    %93 = vector.shape_cast %92 : vector<1x3x512xf32> to vector<3x512xf32>
    %94 = vector.shape_cast %91 : vector<3x512xf32> to vector<1x3x512xf32>
    tpu.vector_store %arg10[%c0_42, %c0_43, %c0_44], %94 {strides = array<i32>} : memref<2x3x512xf32, #tpu.memory_space<vmem>>, vector<1x3x512xf32>,
    %c1 = arith.constant 1 : index
    %c0_45 = arith.constant 0 : index
    %c0_46 = arith.constant 0 : index
    %95 = vector.load %arg3[%c1, %c0_45, %c0_46] : memref<2x3x512xf32, #tpu.memory_space<vmem>>, vector<1x3x512xf32>
    %96 = vector.shape_cast %95 : vector<1x3x512xf32> to vector<3x512xf32>
    %97 = vector.extract_strided_slice %96 {offsets = [0, 0], sizes = [1, 512], strides = [1, 1]} : vector<3x512xf32> to vector<1x512xf32>
    %98 = vector.extract_strided_slice %96 {offsets = [1, 0], sizes = [1, 512], strides = [1, 1]} : vector<3x512xf32> to vector<1x512xf32>
    %99 = vector.extract_strided_slice %96 {offsets = [2, 0], sizes = [1, 512], strides = [1, 1]} : vector<3x512xf32> to vector<1x512xf32>
    %100 = arith.mulf %97, %97 : vector<1x512xf32>
    %101 = arith.mulf %98, %98 : vector<1x512xf32>
    %102 = arith.addf %100, %101 : vector<1x512xf32>
    %103 = arith.mulf %99, %99 : vector<1x512xf32>
    %104 = arith.addf %102, %103 : vector<1x512xf32>
    %cst_47 = arith.constant 1.000000e-24 : f32
    %105 = vector.broadcast %cst_47 : f32 to vector<1x512xf32>
    %106 = arith.maximumf %104, %105 : vector<1x512xf32>
    %107 = math.rsqrt %106 : vector<1x512xf32>
    %108 = arith.mulf %97, %107 : vector<1x512xf32>
    %109 = arith.mulf %98, %107 : vector<1x512xf32>
    %110 = arith.mulf %99, %107 : vector<1x512xf32>
    %cst_48 = arith.constant 0.282094806 : f32
    %111 = vector.broadcast %cst_48 : f32 to vector<1x512xf32>
    %cst_49 = arith.constant -0.488602519 : f32
    %112 = vector.broadcast %cst_49 : f32 to vector<1x512xf32>
    %113 = arith.mulf %112, %109 : vector<1x512xf32>
    %cst_50 = arith.constant 0.488602519 : f32
    %114 = vector.broadcast %cst_50 : f32 to vector<1x512xf32>
    %115 = arith.mulf %114, %110 : vector<1x512xf32>
    %cst_51 = arith.constant -0.488602519 : f32
    %116 = vector.broadcast %cst_51 : f32 to vector<1x512xf32>
    %117 = arith.mulf %116, %108 : vector<1x512xf32>
    %118 = arith.mulf %110, %110 : vector<1x512xf32>
    %cst_52 = arith.constant -1.09254849 : f32
    %119 = vector.broadcast %cst_52 : f32 to vector<1x512xf32>
    %120 = arith.mulf %119, %110 : vector<1x512xf32>
    %121 = arith.mulf %108, %108 : vector<1x512xf32>
    %122 = arith.mulf %109, %109 : vector<1x512xf32>
    %123 = arith.subf %121, %122 : vector<1x512xf32>
    %cst_53 = arith.constant 2.000000e+00 : f32
    %124 = vector.broadcast %cst_53 : f32 to vector<1x512xf32>
    %125 = arith.mulf %124, %108 : vector<1x512xf32>
    %126 = arith.mulf %125, %109 : vector<1x512xf32>
    %cst_54 = arith.constant 0.546274245 : f32
    %127 = vector.broadcast %cst_54 : f32 to vector<1x512xf32>
    %128 = arith.mulf %127, %126 : vector<1x512xf32>
    %129 = arith.mulf %120, %109 : vector<1x512xf32>
    %cst_55 = arith.constant 0.946174681 : f32
    %130 = vector.broadcast %cst_55 : f32 to vector<1x512xf32>
    %131 = arith.mulf %130, %118 : vector<1x512xf32>
    %cst_56 = arith.constant 0.31539157 : f32
    %132 = vector.broadcast %cst_56 : f32 to vector<1x512xf32>
    %133 = arith.subf %131, %132 : vector<1x512xf32>
    %134 = arith.mulf %120, %108 : vector<1x512xf32>
    %cst_57 = arith.constant 0.546274245 : f32
    %135 = vector.broadcast %cst_57 : f32 to vector<1x512xf32>
    %136 = arith.mulf %135, %123 : vector<1x512xf32>
    %cst_58 = arith.constant -2.28522897 : f32
    %137 = vector.broadcast %cst_58 : f32 to vector<1x512xf32>
    %138 = arith.mulf %137, %118 : vector<1x512xf32>
    %cst_59 = arith.constant 0.457045794 : f32
    %139 = vector.broadcast %cst_59 : f32 to vector<1x512xf32>
    %140 = arith.addf %138, %139 : vector<1x512xf32>
    %cst_60 = arith.constant 1.44530571 : f32
    %141 = vector.broadcast %cst_60 : f32 to vector<1x512xf32>
    %142 = arith.mulf %141, %110 : vector<1x512xf32>
    %143 = arith.mulf %108, %123 : vector<1x512xf32>
    %144 = arith.mulf %109, %126 : vector<1x512xf32>
    %145 = arith.subf %143, %144 : vector<1x512xf32>
    %146 = arith.mulf %108, %126 : vector<1x512xf32>
    %147 = arith.mulf %109, %123 : vector<1x512xf32>
    %148 = arith.addf %146, %147 : vector<1x512xf32>
    %cst_61 = arith.constant -0.590043604 : f32
    %149 = vector.broadcast %cst_61 : f32 to vector<1x512xf32>
    %150 = arith.mulf %149, %148 : vector<1x512xf32>
    %151 = arith.mulf %142, %126 : vector<1x512xf32>
    %152 = arith.mulf %140, %109 : vector<1x512xf32>
    %cst_62 = arith.constant 1.86588168 : f32
    %153 = vector.broadcast %cst_62 : f32 to vector<1x512xf32>
    %154 = arith.mulf %153, %118 : vector<1x512xf32>
    %cst_63 = arith.constant 1.11952901 : f32
    %155 = vector.broadcast %cst_63 : f32 to vector<1x512xf32>
    %156 = arith.subf %154, %155 : vector<1x512xf32>
    %157 = arith.mulf %110, %156 : vector<1x512xf32>
    %158 = arith.mulf %140, %108 : vector<1x512xf32>
    %159 = arith.mulf %142, %123 : vector<1x512xf32>
    %cst_64 = arith.constant -0.590043604 : f32
    %160 = vector.broadcast %cst_64 : f32 to vector<1x512xf32>
    %161 = arith.mulf %160, %145 : vector<1x512xf32>
    %162 = tpu.concatenate %111, %113, %115, %117, %128, %129, %133, %134, %136, %150, %151, %152, %157, %158, %159, %161 in 0 : vector<1x512xf32>, vector<1x512xf32>, vector<1x512xf32>, vector<1x512xf32>, vector<1x512xf32>, vector<1x512xf32>, vector<1x512xf32>, vector<1x512xf32>, vector<1x512xf32>, vector<1x512xf32>, vector<1x512xf32>, vector<1x512xf32>, vector<1x512xf32>, vector<1x512xf32>, vector<1x512xf32>, vector<1x512xf32> -> vector<16x512xf32>
    %cst_65 = arith.constant dense<0.000000e+00> : vector<64x512xf32>
    %163 = tpu.matmul %3, %162, %cst_65 {dimension_numbers = #tpu.dot_dimension_numbers<[1], [0], [0], [1], [0, 0, 1, 1], [], []>} : vector<64x16xf32>, vector<16x512xf32>, vector<64x512xf32> -> vector<64x512xf32>
    %164 = arith.addf %2, %163 : vector<64x512xf32>
    %c1_66 = arith.constant 1 : index
    %c0_67 = arith.constant 0 : index
    %c0_68 = arith.constant 0 : index
    %165 = vector.load %arg1[%c1_66, %c0_67, %c0_68] : memref<2x64x1xf32, #tpu.memory_space<vmem>>, vector<1x64x1xf32>
    %166 = vector.shape_cast %165 : vector<1x64x1xf32> to vector<64x1xf32>
    %167 = vector.broadcast %166 : vector<64x1xf32> to vector<64x512xf32>
    %168 = arith.addf %164, %167 : vector<64x512xf32>
    %cst_69 = arith.constant 0.000000e+00 : f32
    %169 = vector.broadcast %cst_69 : f32 to vector<64x512xf32>
    %170 = arith.maximumf %168, %169 : vector<64x512xf32>
    %cst_70 = arith.constant dense<0.000000e+00> : vector<64x512xf32>
    %171 = tpu.matmul %4, %170, %cst_70 {dimension_numbers = #tpu.dot_dimension_numbers<[1], [0], [0], [1], [0, 0, 1, 1], [], []>} : vector<64x64xf32>, vector<64x512xf32>, vector<64x512xf32> -> vector<64x512xf32>
    %172 = vector.broadcast %5 : vector<64x1xf32> to vector<64x512xf32>
    %173 = arith.addf %171, %172 : vector<64x512xf32>
    %cst_71 = arith.constant 0.000000e+00 : f32
    %174 = vector.broadcast %cst_71 : f32 to vector<64x512xf32>
    %175 = arith.maximumf %173, %174 : vector<64x512xf32>
    %cst_72 = arith.constant dense<0.000000e+00> : vector<3x512xf32>
    %176 = tpu.matmul %6, %175, %cst_72 {dimension_numbers = #tpu.dot_dimension_numbers<[1], [0], [0], [1], [0, 0, 1, 1], [], []>} : vector<3x64xf32>, vector<64x512xf32>, vector<3x512xf32> -> vector<3x512xf32>
    %177 = vector.broadcast %7 : vector<3x1xf32> to vector<3x512xf32>
    %178 = arith.addf %176, %177 : vector<3x512xf32>
    %c1_73 = arith.constant 1 : index
    %c0_74 = arith.constant 0 : index
    %c0_75 = arith.constant 0 : index
    %179 = vector.load %arg10[%c1_73, %c0_74, %c0_75] : memref<2x3x512xf32, #tpu.memory_space<vmem>>, vector<1x3x512xf32>
    %180 = vector.shape_cast %179 : vector<1x3x512xf32> to vector<3x512xf32>
    %181 = vector.shape_cast %178 : vector<3x512xf32> to vector<1x3x512xf32>
    tpu.vector_store %arg10[%c1_73, %c0_74, %c0_75], %181 {strides = array<i32>} : memref<2x3x512xf32, #tpu.memory_space<vmem>>, vector<1x3x512xf32>,
    return
  }
  func.func @transform_0(%arg0: i32) -> (i32, i32, i32) {
    %c0_i32 = arith.constant 0 : i32
    %c0_i32_0 = arith.constant 0 : i32
    %c0_i32_1 = arith.constant 0 : i32
    %c0_i32_2 = arith.constant 0 : i32
    return %c0_i32, %c0_i32_0, %c0_i32_1 : i32, i32, i32
  }
  func.func @transform_1(%arg0: i32) -> (i32, i32) {
    %c0_i32 = arith.constant 0 : i32
    %c0_i32_0 = arith.constant 0 : i32
    return %arg0, %c0_i32 : i32, i32
  }
  func.func @transform_2(%arg0: i32) -> (i32, i32, i32) {
    %c0_i32 = arith.constant 0 : i32
    %c0_i32_0 = arith.constant 0 : i32
    %c0_i32_1 = arith.constant 0 : i32
    return %c0_i32, %c0_i32_0, %arg0 : i32, i32, i32
  }
  func.func @transform_3(%arg0: i32) -> (i32, i32) {
    %c0_i32 = arith.constant 0 : i32
    %c0_i32_0 = arith.constant 0 : i32
    %c0_i32_1 = arith.constant 0 : i32
    return %c0_i32, %c0_i32_0 : i32, i32
  }
  func.func @transform_4(%arg0: i32) -> (i32, i32) {
    %c0_i32 = arith.constant 0 : i32
    %c0_i32_0 = arith.constant 0 : i32
    %c0_i32_1 = arith.constant 0 : i32
    return %c0_i32, %c0_i32_0 : i32, i32
  }
  func.func @transform_5(%arg0: i32) -> (i32, i32) {
    %c0_i32 = arith.constant 0 : i32
    %c0_i32_0 = arith.constant 0 : i32
    %c0_i32_1 = arith.constant 0 : i32
    return %c0_i32, %c0_i32_0 : i32, i32
  }
  func.func @transform_6(%arg0: i32) -> (i32, i32) {
    %c0_i32 = arith.constant 0 : i32
    %c0_i32_0 = arith.constant 0 : i32
    %c0_i32_1 = arith.constant 0 : i32
    return %c0_i32, %c0_i32_0 : i32, i32
  }
  func.func @transform_7(%arg0: i32) -> (i32, i32) {
    %c0_i32 = arith.constant 0 : i32
    %c0_i32_0 = arith.constant 0 : i32
    %c0_i32_1 = arith.constant 0 : i32
    return %c0_i32, %c0_i32_0 : i32, i32
  }
  func.func @transform_8(%arg0: i32) -> (i32, i32) {
    %c0_i32 = arith.constant 0 : i32
    %c0_i32_0 = arith.constant 0 : i32
    %c0_i32_1 = arith.constant 0 : i32
    return %c0_i32, %c0_i32_0 : i32, i32
  }
  func.func @transform_9(%arg0: i32) -> (i32, i32, i32) {
    %c0_i32 = arith.constant 0 : i32
    %c0_i32_0 = arith.constant 0 : i32
    %c0_i32_1 = arith.constant 0 : i32
    return %c0_i32, %c0_i32_0, %arg0 : i32, i32, i32
  }
}

</mosaic_0001>

<llo_original>
// kernel: tpu_custom_call.1
$region0: #{tpu_custom_call.1}
  #allocation0 [shape = 'u32[]', space=smem, size = 0x4, offset = 0x4, fixed_abs, tag = 'smem constant byte address 0x4 - core index']
  #allocation1 [shape = 'u32[144,128]{1,0:T(1,128)}', space=vmem, size = 0x12000, scoped, tag = 'internal scratch']
  %s0 = inlined_call_operand.vmem [shape: f32[2,64,1], index: 0, kind: input, shape index: {}]
  %s1 = inlined_call_operand.vmem [shape: f32[1000,32], index: 1, kind: input, shape index: {}]
  %s2 = inlined_call_operand.vmem [shape: f32[2,3,1000], index: 2, kind: input, shape index: {}]
  %s3 = inlined_call_operand.vmem [shape: f32[64,32], index: 3, kind: input, shape index: {}]
  %s4 = inlined_call_operand.vmem [shape: f32[64,16], index: 4, kind: input, shape index: {}]
  %s5 = inlined_call_operand.vmem [shape: f32[64,64], index: 5, kind: input, shape index: {}]
  %s6 = inlined_call_operand.vmem [shape: f32[64,1], index: 6, kind: input, shape index: {}]
  %s7 = inlined_call_operand.vmem [shape: f32[3,64], index: 7, kind: input, shape index: {}]
  %s8 = inlined_call_operand.vmem [shape: f32[3,1], index: 8, kind: input, shape index: {}]
  %s9 = inlined_call_operand.vmem [shape: f32[2,3,1000], index: 9, kind: output, shape index: {}]
  %s10 = sld [smem:[#allocation0]]
  $region111: #{tpu_custom_call.1} parent=0
    _
  %s12 = ssub.s32 1, %s10
  %s13 = scalar_select 0, %s12, %s10
  $region1: #{tpu_custom_call.1} parent=0
    #allocation2 [shape = 'u8[32768]{0}', space=vmem, size = 0x8000, scoped, tag = 'input window, operand 2']
    #allocation3 [shape = 'u8[32768]{0}', space=vmem, size = 0x8000, scoped, tag = 'output window, operand 0']
    loop: start=0, step=1, limit=4
    $region2: #{tpu_custom_call.1} parent=1 // loop_pre_header
      _
    $region3: #{tpu_custom_call.1} parent=1 // loop_header
      %s15 = sphi 0, %s19
      %p16 = scmp.ge.s32.totalorder %s15, 4
      %s23 = sphi 0, %s23
      %s25 = sphi 0, %s23
      %s26 = sphi 0, %s25
      %s40 = sphi 0, %s26
      %s46 = sphi 0, %s48
      %s49 = sphi 0, %s46
      %s50 = sphi 0, %s49
      %s66 = sphi 0, %s50
      %s72 = sphi 0, %s74
      %s75 = sphi 0, %s72
      %s76 = sphi 0, %s75
      %s92 = sphi 0, %s76
      %s96 = sphi 0, %s96
      %s98 = sphi 0, %s96
      %s99 = sphi 0, %s98
      %s113 = sphi 0, %s99
      %s117 = sphi 0, %s117
      %s119 = sphi 0, %s117
      %s120 = sphi 0, %s119
      %s134 = sphi 0, %s120
      %s138 = sphi 0, %s138
      %s140 = sphi 0, %s138
      %s141 = sphi 0, %s140
      %s155 = sphi 0, %s141
      %s159 = sphi 0, %s159
      %s161 = sphi 0, %s159
      %s162 = sphi 0, %s161
      %s176 = sphi 0, %s162
      %s180 = sphi 0, %s180
      %s182 = sphi 0, %s180
      %s183 = sphi 0, %s182
      %s197 = sphi 0, %s183
      %s201 = sphi 0, %s201
      %s203 = sphi 0, %s201
      %s204 = sphi 0, %s203
      %s218 = sphi 0, %s204
      %s224 = sphi 0, %s226
      %s227 = sphi 0, %s224
      %s228 = sphi 0, %s227
      %s244 = sphi 0, %s228
    $region4: #{tpu_custom_call.1} parent=1 // loop_header_branch
      %18 = sbr.rel (%p16) target = $region8
    $region5: #{tpu_custom_call.1} parent=1 // loop_body
      %s20 = ssub.s32 %s15, 1
      %s21 = ssub.s32 %s15, 2
      %s22 = sadd.s32 %s15, 1
      %s24 = sadd.s32 %s23, 1
      %p27 = scmp.eq.s32.totalorder %s15, 1
      %p28 = scmp.ne.s32.totalorder %s23, %s25
      %p29 = scmp.eq.s32.totalorder %s15, 0
      %p30 = por %p28, %p29
      %p31 = scmp.ne.s32.totalorder %s23, %s25
      %p32 = scmp.eq.s32.totalorder %s20, 1
      %p33 = por %p31, %p32
      %p34 = scmp.ne.s32.totalorder %s25, %s26
      %p35 = scmp.eq.s32.totalorder %s20, 0
      %p36 = por %p34, %p35
      %p37 = scmp.ne.s32.totalorder %s25, %s26
      %p38 = scmp.eq.s32.totalorder %s21, 1
      %p39 = por %p37, %p38
      %p41 = scmp.ne.s32.totalorder %s26, %s40
      %p42 = scmp.eq.s32.totalorder %s21, 0
      %p43 = por %p41, %p42
      %s44 = ssub.s32 %s15, %s22
      %p45 = scmp.eq.s32.totalorder %s44, 0
      %s47 = sadd.s32 %s46, 1
      %s48 = scalar_select %p45, %s46, %s47
      %p51 = pneg %p45
      %p52 = scmp.eq.s32.totalorder %s15, 1
      %p53 = por %p51, %p52
      %p54 = scmp.ne.s32.totalorder %s46, %s49
      %p55 = scmp.eq.s32.totalorder %s15, 0
      %p56 = por %p54, %p55
      %p57 = scmp.ne.s32.totalorder %s46, %s49
      %p58 = scmp.eq.s32.totalorder %s20, 1
      %p59 = por %p57, %p58
      %p60 = scmp.ne.s32.totalorder %s49, %s50
      %p61 = scmp.eq.s32.totalorder %s20, 0
      %p62 = por %p60, %p61
      %p63 = scmp.ne.s32.totalorder %s49, %s50
      %p64 = scmp.eq.s32.totalorder %s21, 1
      %p65 = por %p63, %p64
      %p67 = scmp.ne.s32.totalorder %s50, %s66
      %p68 = scmp.eq.s32.totalorder %s21, 0
      %p69 = por %p67, %p68
      %s70 = ssub.s32 %s15, %s22
      %p71 = scmp.eq.s32.totalorder %s70, 0
      %s73 = sadd.s32 %s72, 1
      %s74 = scalar_select %p71, %s72, %s73
      %p77 = pneg %p71
      %p78 = scmp.eq.s32.totalorder %s15, 1
      %p79 = por %p77, %p78
      %p80 = scmp.ne.s32.totalorder %s72, %s75
      %p81 = scmp.eq.s32.totalorder %s15, 0
      %p82 = por %p80, %p81
      %p83 = scmp.ne.s32.totalorder %s72, %s75
      %p84 = scmp.eq.s32.totalorder %s20, 1
      %p85 = por %p83, %p84
      %p86 = scmp.ne.s32.totalorder %s75, %s76
      %p87 = scmp.eq.s32.totalorder %s20, 0
      %p88 = por %p86, %p87
      %p89 = scmp.ne.s32.totalorder %s75, %s76
      %p90 = scmp.eq.s32.totalorder %s21, 1
      %p91 = por %p89, %p90
      %p93 = scmp.ne.s32.totalorder %s76, %s92
      %p94 = scmp.eq.s32.totalorder %s21, 0
      %p95 = por %p93, %p94
      %s97 = sadd.s32 %s96, 1
      %p100 = scmp.eq.s32.totalorder %s15, 1
      %p101 = scmp.ne.s32.totalorder %s96, %s98
      %p102 = scmp.eq.s32.totalorder %s15, 0
      %p103 = por %p101, %p102
      %p104 = scmp.ne.s32.totalorder %s96, %s98
      %p105 = scmp.eq.s32.totalorder %s20, 1
      %p106 = por %p104, %p105
      %p107 = scmp.ne.s32.totalorder %s98, %s99
      %p108 = scmp.eq.s32.totalorder %s20, 0
      %p109 = por %p107, %p108
      %p110 = scmp.ne.s32.totalorder %s98, %s99
      %p111 = scmp.eq.s32.totalorder %s21, 1
      %p112 = por %p110, %p111
      %p114 = scmp.ne.s32.totalorder %s99, %s113
      %p115 = scmp.eq.s32.totalorder %s21, 0
      %p116 = por %p114, %p115
      %s118 = sadd.s32 %s117, 1
      %p121 = scmp.eq.s32.totalorder %s15, 1
      %p122 = scmp.ne.s32.totalorder %s117, %s119
      %p123 = scmp.eq.s32.totalorder %s15, 0
      %p124 = por %p122, %p123
      %p125 = scmp.ne.s32.totalorder %s117, %s119
      %p126 = scmp.eq.s32.totalorder %s20, 1
      %p127 = por %p125, %p126
      %p128 = scmp.ne.s32.totalorder %s119, %s120
      %p129 = scmp.eq.s32.totalorder %s20, 0
      %p130 = por %p128, %p129
      %p131 = scmp.ne.s32.totalorder %s119, %s120
      %p132 = scmp.eq.s32.totalorder %s21, 1
      %p133 = por %p131, %p132
      %p135 = scmp.ne.s32.totalorder %s120, %s134
      %p136 = scmp.eq.s32.totalorder %s21, 0
      %p137 = por %p135, %p136
      %s139 = sadd.s32 %s138, 1
      %p142 = scmp.eq.s32.totalorder %s15, 1
      %p143 = scmp.ne.s32.totalorder %s138, %s140
      %p144 = scmp.eq.s32.totalorder %s15, 0
      %p145 = por %p143, %p144
      %p146 = scmp.ne.s32.totalorder %s138, %s140
      %p147 = scmp.eq.s32.totalorder %s20, 1
      %p148 = por %p146, %p147
      %p149 = scmp.ne.s32.totalorder %s140, %s141
      %p150 = scmp.eq.s32.totalorder %s20, 0
      %p151 = por %p149, %p150
      %p152 = scmp.ne.s32.totalorder %s140, %s141
      %p153 = scmp.eq.s32.totalorder %s21, 1
      %p154 = por %p152, %p153
      %p156 = scmp.ne.s32.totalorder %s141, %s155
      %p157 = scmp.eq.s32.totalorder %s21, 0
      %p158 = por %p156, %p157
      %s160 = sadd.s32 %s159, 1
      %p163 = scmp.eq.s32.totalorder %s15, 1
      %p164 = scmp.ne.s32.totalorder %s159, %s161
      %p165 = scmp.eq.s32.totalorder %s15, 0
      %p166 = por %p164, %p165
      %p167 = scmp.ne.s32.totalorder %s159, %s161
      %p168 = scmp.eq.s32.totalorder %s20, 1
      %p169 = por %p167, %p168
      %p170 = scmp.ne.s32.totalorder %s161, %s162
      %p171 = scmp.eq.s32.totalorder %s20, 0
      %p172 = por %p170, %p171
      %p173 = scmp.ne.s32.totalorder %s161, %s162
      %p174 = scmp.eq.s32.totalorder %s21, 1
      %p175 = por %p173, %p174
      %p177 = scmp.ne.s32.totalorder %s162, %s176
      %p178 = scmp.eq.s32.totalorder %s21, 0
      %p179 = por %p177, %p178
      %s181 = sadd.s32 %s180, 1
      %p184 = scmp.eq.s32.totalorder %s15, 1
      %p185 = scmp.ne.s32.totalorder %s180, %s182
      %p186 = scmp.eq.s32.totalorder %s15, 0
      %p187 = por %p185, %p186
      %p188 = scmp.ne.s32.totalorder %s180, %s182
      %p189 = scmp.eq.s32.totalorder %s20, 1
      %p190 = por %p188, %p189
      %p191 = scmp.ne.s32.totalorder %s182, %s183
      %p192 = scmp.eq.s32.totalorder %s20, 0
      %p193 = por %p191, %p192
      %p194 = scmp.ne.s32.totalorder %s182, %s183
      %p195 = scmp.eq.s32.totalorder %s21, 1
      %p196 = por %p194, %p195
      %p198 = scmp.ne.s32.totalorder %s183, %s197
      %p199 = scmp.eq.s32.totalorder %s21, 0
      %p200 = por %p198, %p199
      %s202 = sadd.s32 %s201, 1
      %p205 = scmp.eq.s32.totalorder %s15, 1
      %p206 = scmp.ne.s32.totalorder %s201, %s203
      %p207 = scmp.eq.s32.totalorder %s15, 0
      %p208 = por %p206, %p207
      %p209 = scmp.ne.s32.totalorder %s201, %s203
      %p210 = scmp.eq.s32.totalorder %s20, 1
      %p211 = por %p209, %p210
      %p212 = scmp.ne.s32.totalorder %s203, %s204
      %p213 = scmp.eq.s32.totalorder %s20, 0
      %p214 = por %p212, %p213
      %p215 = scmp.ne.s32.totalorder %s203, %s204
      %p216 = scmp.eq.s32.totalorder %s21, 1
      %p217 = por %p215, %p216
      %p219 = scmp.ne.s32.totalorder %s204, %s218
      %p220 = scmp.eq.s32.totalorder %s21, 0
      %p221 = por %p219, %p220
      %s222 = ssub.s32 %s15, %s22
      %p223 = scmp.eq.s32.totalorder %s222, 0
      %s225 = sadd.s32 %s224, 1
      %s226 = scalar_select %p223, %s224, %s225
      %p229 = pneg %p223
      %p230 = scmp.eq.s32.totalorder %s15, 1
      %p231 = por %p229, %p230
      %p232 = scmp.ne.s32.totalorder %s224, %s227
      %p233 = scmp.eq.s32.totalorder %s15, 0
      %p234 = por %p232, %p233
      %p235 = scmp.ne.s32.totalorder %s224, %s227
      %p236 = scmp.eq.s32.totalorder %s20, 1
      %p237 = por %p235, %p236
      %p238 = scmp.ne.s32.totalorder %s227, %s228
      %p239 = scmp.eq.s32.totalorder %s20, 0
      %p240 = por %p238, %p239
      %p241 = scmp.ne.s32.totalorder %s227, %s228
      %p242 = scmp.eq.s32.totalorder %s21, 1
      %p243 = por %p241, %p242
      %p245 = scmp.ne.s32.totalorder %s228, %s244
      %p246 = scmp.eq.s32.totalorder %s21, 0
      %p247 = por %p245, %p246
      %p248 = scmp.le.s32.totalorder 1, %s15
      %p249 = scmp.lt.s32.totalorder %s15, 3
      %p250 = pnand %p248, %p249
      %p251 = pneg %p250
      // Predicated region
      $region9: #{tpu_custom_call.1} parent=5 // pred_check
        _
      $region10: #{tpu_custom_call.1} parent=5 // pred_check_branch
        %253 = sbr.rel (%p250) target = $region12
      $region11: #{tpu_custom_call.1} parent=5 // pred_region
        %s254 = ssub.s32 %s15, 1
        // Predicated region
        $region13: #{tpu_custom_call.1} parent=11 // pred_check
          %p255 = pneg %p36
        $region14: #{tpu_custom_call.1} parent=11 // pred_check_branch
          %257 = sbr.rel (%p255) target = $region16
        $region15: #{tpu_custom_call.1} parent=11 // pred_region
          _
        $region16: #{tpu_custom_call.1} parent=11 // pred_fallthru
          _
        // Predicated region
        $region17: #{tpu_custom_call.1} parent=11 // pred_check
          %p258 = pneg %p109
        $region18: #{tpu_custom_call.1} parent=11 // pred_check_branch
          %260 = sbr.rel (%p258) target = $region20
        $region19: #{tpu_custom_call.1} parent=11 // pred_region
          _
        $region20: #{tpu_custom_call.1} parent=11 // pred_fallthru
          _
        // Predicated region
        $region21: #{tpu_custom_call.1} parent=11 // pred_check
          %p261 = pneg %p130
        $region22: #{tpu_custom_call.1} parent=11 // pred_check_branch
          %263 = sbr.rel (%p261) target = $region24
        $region23: #{tpu_custom_call.1} parent=11 // pred_region
          _
        $region24: #{tpu_custom_call.1} parent=11 // pred_fallthru
          _
        // Predicated region
        $region25: #{tpu_custom_call.1} parent=11 // pred_check
          %p264 = pneg %p151
        $region26: #{tpu_custom_call.1} parent=11 // pred_check_branch
          %266 = sbr.rel (%p264) target = $region28
        $region27: #{tpu_custom_call.1} parent=11 // pred_region
          _
        $region28: #{tpu_custom_call.1} parent=11 // pred_fallthru
          _
        // Predicated region
        $region29: #{tpu_custom_call.1} parent=11 // pred_check
          %p267 = pneg %p172
        $region30: #{tpu_custom_call.1} parent=11 // pred_check_branch
          %269 = sbr.rel (%p267) target = $region32
        $region31: #{tpu_custom_call.1} parent=11 // pred_region
          _
        $region32: #{tpu_custom_call.1} parent=11 // pred_fallthru
          _
        // Predicated region
        $region33: #{tpu_custom_call.1} parent=11 // pred_check
          %p270 = pneg %p193
        $region34: #{tpu_custom_call.1} parent=11 // pred_check_branch
          %272 = sbr.rel (%p270) target = $region36
        $region35: #{tpu_custom_call.1} parent=11 // pred_region
          _
        $region36: #{tpu_custom_call.1} parent=11 // pred_fallthru
          _
        // Predicated region
        $region37: #{tpu_custom_call.1} parent=11 // pred_check
          %p273 = pneg %p214
        $region38: #{tpu_custom_call.1} parent=11 // pred_check_branch
          %275 = sbr.rel (%p273) target = $region40
        $region39: #{tpu_custom_call.1} parent=11 // pred_region
          _
        $region40: #{tpu_custom_call.1} parent=11 // pred_fallthru
          _
      $region12: #{tpu_custom_call.1} parent=5 // pred_fallthru
        _
      %p276 = scmp.lt.s32.totalorder %s15, 2
      // Predicated region
      $region41: #{tpu_custom_call.1} parent=5 // pred_check
        %p277 = pneg %p276
      $region42: #{tpu_custom_call.1} parent=5 // pred_check_branch
        %279 = sbr.rel (%p277) target = $region44
      $region43: #{tpu_custom_call.1} parent=5 // pred_region
        // Predicated region
        $region45: #{tpu_custom_call.1} parent=43 // pred_check
          %p280 = pneg %p56
        $region46: #{tpu_custom_call.1} parent=43 // pred_check_branch
          %282 = sbr.rel (%p280) target = $region48
        $region47: #{tpu_custom_call.1} parent=43 // pred_region
          %s283 = smul.u32 64, %s15
          %s284 = ssub.s32 125, %s283
          %p285 = scmp.lt.s32.totalorder %s284, 64
          %s286 = scalar_select %p285, %s284, 64
          %s287 = smul.u32 128, %s286
          %p288 = scmp.lt.s32.totalorder %s283, 124
          %s289 = scalar_select %p288, %s283, 124
          %s290 = smul.addr %s289, 8
          %s291 = scalar_lea.vmem %s1, %s290
          %s292 = smul.u32 64, %s15
          %s293 = ssub.s32 125, %s292
          %p294 = scmp.lt.s32.totalorder %s293, 64
          %s295 = scalar_select %p294, %s293, 64
          %s296 = smul.u32 128, %s295
        $region48: #{tpu_custom_call.1} parent=43 // pred_fallthru
          _
        // Predicated region
        $region49: #{tpu_custom_call.1} parent=43 // pred_check
          %p297 = pneg %p82
        $region50: #{tpu_custom_call.1} parent=43 // pred_check_branch
          %299 = sbr.rel (%p297) target = $region52
        $region51: #{tpu_custom_call.1} parent=43 // pred_region
          %s300 = sand.u32 %s72, 1
          %s301 = sand.u32 %s72, 1
          %s302 = smul.addr %s301, 32
          %s303 = scalar_lea.vmem [#allocation2], %s302
          %s304 = smul.u32 4, %s15
          %s305 = smul.addr %s304, 4
          %s306 = scalar_lea.vmem %s2, %s305
          // Predicated region
          $region53: #{tpu_custom_call.1} parent=51 // pred_check
            _
          $region54: #{tpu_custom_call.1} parent=51 // pred_check_branch
            %308 = sbr.rel (0) target = $region56
          $region55: #{tpu_custom_call.1} parent=51 // pred_region
            // Predicated region
            $region57: #{tpu_custom_call.1} parent=55 // pred_check
              _
            $region58: #{tpu_custom_call.1} parent=55 // pred_check_branch
              %310 = sbr.rel (0) target = $region60
            $region59: #{tpu_custom_call.1} parent=55 // pred_region
              loop: start=0, step=1, limit=1
              $region61: #{tpu_custom_call.1} parent=59 // loop_pre_header
                _
              $region62: #{tpu_custom_call.1} parent=59 // loop_header
                %s312 = sphi 0, %s316
                %p313 = scmp.ge.s32.totalorder %s312, 1
                %s317 = sphi %s306, %s306
                %s318 = sphi %s303, %s303
              $region63: #{tpu_custom_call.1} parent=59 // loop_header_branch
                %315 = sbr.rel (%p313) target = $region67
              $region64: #{tpu_custom_call.1} parent=59 // loop_body
                %v319 = vld [vmem:[%s317] sm:$0xff]
                %320 = vst [vmem:[%s318] sm:$0xff] %v319
                %v321 = vld [vmem:[%s317 + $0x8] sm:$0xff]
                %322 = vst [vmem:[%s318 + $0x8] sm:$0xff] %v321
                %v323 = vld [vmem:[%s317 + $0x20] sm:$0xff]
                %324 = vst [vmem:[%s318 + $0x10] sm:$0xff] %v323
                %v325 = vld [vmem:[%s317 + $0x28] sm:$0xff]
                %326 = vst [vmem:[%s318 + $0x18] sm:$0xff] %v325
              $region65: #{tpu_custom_call.1} parent=59 // loop_footer
                %s316 = sadd.s32 1, %s312
              $region66: #{tpu_custom_call.1} parent=59 // loop_footer_branch
                %311 = sbr.rel target = $region62
              $region67: #{tpu_custom_call.1} parent=59 // loop_exit
                _
            $region60: #{tpu_custom_call.1} parent=55 // pred_fallthru
              _
            // Predicated region
            $region68: #{tpu_custom_call.1} parent=55 // pred_check
              _
            $region69: #{tpu_custom_call.1} parent=55 // pred_check_branch
              %328 = sbr.rel target = $region71
            $region70: #{tpu_custom_call.1} parent=55 // pred_region
              _
            $region71: #{tpu_custom_call.1} parent=55 // pred_fallthru
              _
          $region56: #{tpu_custom_call.1} parent=51 // pred_fallthru
            _
          %329 = vnop
        $region52: #{tpu_custom_call.1} parent=43 // pred_fallthru
          _
      $region44: #{tpu_custom_call.1} parent=5 // pred_fallthru
        _
      %p330 = scmp.le.s32.totalorder 1, %s15
      %p331 = scmp.lt.s32.totalorder %s15, 3
      %p332 = pnand %p330, %p331
      %p333 = pneg %p332
      // Predicated region
      $region72: #{tpu_custom_call.1} parent=5 // pred_check
        _
      $region73: #{tpu_custom_call.1} parent=5 // pred_check_branch
        %335 = sbr.rel (%p332) target = $region75
      $region74: #{tpu_custom_call.1} parent=5 // pred_region
        %s336 = ssub.s32 %s15, 1
        %s337 = sand.u32 %s75, 1
        %s338 = sand.u32 %s75, 1
        %s339 = smul.addr %s338, 32
        %s340 = scalar_lea.vmem [#allocation2], %s339
        // Predicated region
        $region76: #{tpu_custom_call.1} parent=74 // pred_check
          %p341 = pneg %p88
        $region77: #{tpu_custom_call.1} parent=74 // pred_check_branch
          %343 = sbr.rel (%p341) target = $region79
        $region78: #{tpu_custom_call.1} parent=74 // pred_region
          _
        $region79: #{tpu_custom_call.1} parent=74 // pred_fallthru
          _
        %p344 = pneg %p36
        %p345 = pneg %p33
        %s346 = smul.u32 64, %s20
        %s347 = ssub.s32 125, %s346
        %p348 = scmp.lt.s32.totalorder %s347, 64
        %s349 = scalar_select %p348, %s347, 64
        %s350 = smul.u32 128, %s349
        %p351 = scmp.lt.s32.totalorder %s346, 124
        %s352 = scalar_select %p351, %s346, 124
        %s353 = smul.addr %s352, 8
        %s354 = scalar_lea.vmem %s1, %s353
        %p355 = pneg %p62
        %p356 = pneg %p59
        %s357 = sand.u32 %s75, 1
        %s358 = sand.u32 %s75, 1
        %s359 = smul.addr %s358, 32
        %s360 = scalar_lea.vmem [#allocation2], %s359
        %p361 = pneg %p88
        %p362 = pneg %p85
        %p363 = pneg %p109
        %p364 = pneg %p106
        %p365 = pneg %p130
        %p366 = pneg %p127
        %p367 = pneg %p151
        %p368 = pneg %p148
        %p369 = pneg %p172
        %p370 = pneg %p169
        %p371 = pneg %p193
        %p372 = pneg %p190
        %p373 = pneg %p214
        %p374 = pneg %p211
        %p375 = pneg %p240
        %p376 = pneg %p237
        %s377 = sand.u32 %s227, 1
        %s378 = sand.u32 %s227, 1
        %s379 = smul.addr %s378, 32
        %s380 = scalar_lea.vmem [#allocation3], %s379
        %s381 = smul.u32 64, %s20
        %s382 = ssub.s32 125, %s381
        %p383 = scmp.lt.s32.totalorder %s382, 64
        %s384 = scalar_select %p383, %s382, 64
        %s385 = smul.u32 128, %s384
        %p386 = scmp.lt.s32.totalorder %s381, 124
        %s387 = scalar_select %p386, %s381, 124
        %s388 = smul.addr %s387, 8
        %s389 = scalar_lea.vmem %s1, %s388
        %s390 = smul.u32 64, %s20
        %s391 = ssub.s32 125, %s390
        %p392 = scmp.lt.s32.totalorder %s391, 64
        %s393 = scalar_select %p392, %s391, 64
        %s394 = smul.u32 128, %s393
        %s395 = smul.u32 4, %s20
        %s396 = smul.u32 4, %s20
        %v397 = vld [vmem:[%s389] sm:$0xff]
        %v398 = vld [vmem:[%s389 + $0x8] sm:$0xff]
        %v399 = vld [vmem:[%s389 + $0x10] sm:$0xff]
        %v400 = vld [vmem:[%s389 + $0x18] sm:$0xff]
        %v401 = vld [vmem:[%s389 + $0x20] sm:$0xff]
        %v402 = vld [vmem:[%s389 + $0x28] sm:$0xff]
        %v403 = vld [vmem:[%s389 + $0x30] sm:$0xff]
        %v404 = vld [vmem:[%s389 + $0x38] sm:$0xff]
        %v405 = vld [vmem:[%s389 + $0x40] sm:$0xff]
        %v406 = vld [vmem:[%s389 + $0x48] sm:$0xff]
        %v407 = vld [vmem:[%s389 + $0x50] sm:$0xff]
        %v408 = vld [vmem:[%s389 + $0x58] sm:$0xff]
        %v409 = vld [vmem:[%s389 + $0x60] sm:$0xff]
        %v410 = vld [vmem:[%s389 + $0x68] sm:$0xff]
        %v411 = vld [vmem:[%s389 + $0x70] sm:$0xff]
        %v412 = vld [vmem:[%s389 + $0x78] sm:$0xff]
        %v413 = vld [vmem:[%s389 + $0x80] sm:$0xff]
        %v414 = vld [vmem:[%s389 + $0x88] sm:$0xff]
        %v415 = vld [vmem:[%s389 + $0x90] sm:$0xff]
        %v416 = vld [vmem:[%s389 + $0x98] sm:$0xff]
        %v417 = vld [vmem:[%s389 + $0xa0] sm:$0xff]
        %v418 = vld [vmem:[%s389 + $0xa8] sm:$0xff]
        %v419 = vld [vmem:[%s389 + $0xb0] sm:$0xff]
        %v420 = vld [vmem:[%s389 + $0xb8] sm:$0xff]
        %v421 = vld [vmem:[%s389 + $0xc0] sm:$0xff]
        %v422 = vld [vmem:[%s389 + $0xc8] sm:$0xff]
        %v423 = vld [vmem:[%s389 + $0xd0] sm:$0xff]
        %v424 = vld [vmem:[%s389 + $0xd8] sm:$0xff]
        %v425 = vld [vmem:[%s389 + $0xe0] sm:$0xff]
        %v426 = vld [vmem:[%s389 + $0xe8] sm:$0xff]
        %v427 = vld [vmem:[%s389 + $0xf0] sm:$0xff]
        %v428 = vld [vmem:[%s389 + $0xf8] sm:$0xff]
        %v429 = vld [vmem:[%s389 + $0x100] sm:$0xff]
        %v430 = vld [vmem:[%s389 + $0x108] sm:$0xff]
        %v431 = vld [vmem:[%s389 + $0x110] sm:$0xff]
        %v432 = vld [vmem:[%s389 + $0x118] sm:$0xff]
        %v433 = vld [vmem:[%s389 + $0x120] sm:$0xff]
        %v434 = vld [vmem:[%s389 + $0x128] sm:$0xff]
        %v435 = vld [vmem:[%s389 + $0x130] sm:$0xff]
        %v436 = vld [vmem:[%s389 + $0x138] sm:$0xff]
        %v437 = vld [vmem:[%s389 + $0x140] sm:$0xff]
        %v438 = vld [vmem:[%s389 + $0x148] sm:$0xff]
        %v439 = vld [vmem:[%s389 + $0x150] sm:$0xff]
        %v440 = vld [vmem:[%s389 + $0x158] sm:$0xff]
        %v441 = vld [vmem:[%s389 + $0x160] sm:$0xff]
        %v442 = vld [vmem:[%s389 + $0x168] sm:$0xff]
        %v443 = vld [vmem:[%s389 + $0x170] sm:$0xff]
        %v444 = vld [vmem:[%s389 + $0x178] sm:$0xff]
        %v445 = vld [vmem:[%s389 + $0x180] sm:$0xff]
        %v446 = vld [vmem:[%s389 + $0x188] sm:$0xff]
        %v447 = vld [vmem:[%s389 + $0x190] sm:$0xff]
        %v448 = vld [vmem:[%s389 + $0x198] sm:$0xff]
        %v449 = vld [vmem:[%s389 + $0x1a0] sm:$0xff]
        %v450 = vld [vmem:[%s389 + $0x1a8] sm:$0xff]
        %v451 = vld [vmem:[%s389 + $0x1b0] sm:$0xff]
        %v452 = vld [vmem:[%s389 + $0x1b8] sm:$0xff]
        %v453 = vld [vmem:[%s389 + $0x1c0] sm:$0xff]
        %v454 = vld [vmem:[%s389 + $0x1c8] sm:$0xff]
        %v455 = vld [vmem:[%s389 + $0x1d0] sm:$0xff]
        %v456 = vld [vmem:[%s389 + $0x1d8] sm:$0xff]
        %v457 = vld [vmem:[%s389 + $0x1e0] sm:$0xff]
        %v458 = vld [vmem:[%s389 + $0x1e8] sm:$0xff]
        %v459 = vld [vmem:[%s389 + $0x1f0] sm:$0xff]
        %v460 = vld [vmem:[%s389 + $0x1f8] sm:$0xff]
        %v461 = vld [vmem:[%s3] sm:$0xff]
        %v462 = vld [vmem:[%s3 + $0x8] sm:$0xff]
        %v463 = vld [vmem:[%s3 + $0x10] sm:$0xff]
        %v464 = vld [vmem:[%s3 + $0x18] sm:$0xff]
        %v465 = vld [vmem:[%s3 + $0x20] sm:$0xff]
        %v466 = vld [vmem:[%s3 + $0x28] sm:$0xff]
        %v467 = vld [vmem:[%s3 + $0x30] sm:$0xff]
        %v468 = vld [vmem:[%s3 + $0x38] sm:$0xff]
        %vm469 = vcmask 261120
        %v471 = vsel %vm469, %v461, 0
        %v474 = vsel %vm469, %v462, 0
        %v477 = vsel %vm469, %v463, 0
        %v480 = vsel %vm469, %v464, 0
        %v483 = vsel %vm469, %v465, 0
        %v486 = vsel %vm469, %v466, 0
        %v489 = vsel %vm469, %v467, 0
        %v492 = vsel %vm469, %v468, 0
        %v495 = vsel %vm469, %v397, 0
        %v498 = vsel %vm469, %v398, 0
        %v501 = vsel %vm469, %v399, 0
        %v504 = vsel %vm469, %v400, 0
        %v507 = vsel %vm469, %v401, 0
        %v510 = vsel %vm469, %v402, 0
        %v513 = vsel %vm469, %v403, 0
        %v516 = vsel %vm469, %v404, 0
        %v519 = vsel %vm469, %v405, 0
        %v522 = vsel %vm469, %v406, 0
        %v525 = vsel %vm469, %v407, 0
        %v528 = vsel %vm469, %v408, 0
        %v531 = vsel %vm469, %v409, 0
        %v534 = vsel %vm469, %v410, 0
        %v537 = vsel %vm469, %v411, 0
        %v540 = vsel %vm469, %v412, 0
        %v543 = vsel %vm469, %v413, 0
        %v546 = vsel %vm469, %v414, 0
        %v549 = vsel %vm469, %v415, 0
        %v552 = vsel %vm469, %v416, 0
        %v555 = vsel %vm469, %v417, 0
        %v558 = vsel %vm469, %v418, 0
        %v561 = vsel %vm469, %v419, 0
        %v564 = vsel %vm469, %v420, 0
        %v567 = vsel %vm469, %v421, 0
        %v570 = vsel %vm469, %v422, 0
        %v573 = vsel %vm469, %v423, 0
        %v576 = vsel %vm469, %v424, 0
        %v579 = vsel %vm469, %v425, 0
        %v582 = vsel %vm469, %v426, 0
        %v585 = vsel %vm469, %v427, 0
        %v588 = vsel %vm469, %v428, 0
        %v591 = vsel %vm469, %v429, 0
        %v594 = vsel %vm469, %v430, 0
        %v597 = vsel %vm469, %v431, 0
        %v600 = vsel %vm469, %v432, 0
        %v603 = vsel %vm469, %v433, 0
        %v606 = vsel %vm469, %v434, 0
        %v609 = vsel %vm469, %v435, 0
        %v612 = vsel %vm469, %v436, 0
        %v615 = vsel %vm469, %v437, 0
        %v618 = vsel %vm469, %v438, 0
        %v621 = vsel %vm469, %v439, 0
        %v624 = vsel %vm469, %v440, 0
        %v627 = vsel %vm469, %v441, 0
        %v630 = vsel %vm469, %v442, 0
        %v633 = vsel %vm469, %v443, 0
        %v636 = vsel %vm469, %v444, 0
        %v639 = vsel %vm469, %v445, 0
        %v642 = vsel %vm469, %v446, 0
        %v645 = vsel %vm469, %v447, 0
        %v648 = vsel %vm469, %v448, 0
        %v651 = vsel %vm469, %v449, 0
        %v654 = vsel %vm469, %v450, 0
        %v657 = vsel %vm469, %v451, 0
        %v660 = vsel %vm469, %v452, 0
        %v663 = vsel %vm469, %v453, 0
        %v666 = vsel %vm469, %v454, 0
        %v669 = vsel %vm469, %v455, 0
        %v672 = vsel %vm469, %v456, 0
        %v675 = vsel %vm469, %v457, 0
        %v678 = vsel %vm469, %v458, 0
        %v681 = vsel %vm469, %v459, 0
        %v684 = vsel %vm469, %v460, 0
        %686 = vmatprep.subr.mxu0 0.0
        %687 = vmatpush1.xpose.msra.mxu0 %v540
        %688 = vmatprep.subr.mxu0 0.0
        %689 = vmatpush1.xpose.msra.mxu0 %v537
        %690 = vmatprep.subr.mxu0 0.0
        %691 = vmatpush1.xpose.msra.mxu0 %v534
        %692 = vmatprep.subr.mxu0 0.0
        %693 = vmatpush1.xpose.msra.mxu0 %v531
        %694 = vmatprep.subr.mxu0 0.0
        %695 = vmatpush1.xpose.msra.mxu0 %v528
        %696 = vmatprep.subr.mxu0 0.0
        %697 = vmatpush1.xpose.msra.mxu0 %v525
        %698 = vmatprep.subr.mxu0 0.0
        %699 = vmatpush1.xpose.msra.mxu0 %v522
        %700 = vmatprep.subr.mxu0 0.0
        %701 = vmatpush1.xpose.msra.mxu0 %v519
        %702 = vmatprep.subr.mxu0 0.0
        %703 = vmatpush1.xpose.msra.mxu0 %v516
        %704 = vmatprep.subr.mxu0 0.0
        %705 = vmatpush1.xpose.msra.mxu0 %v513
        %706 = vmatprep.subr.mxu0 0.0
        %707 = vmatpush1.xpose.msra.mxu0 %v510
        %708 = vmatprep.subr.mxu0 0.0
        %709 = vmatpush1.xpose.msra.mxu0 %v507
        %710 = vmatprep.subr.mxu0 0.0
        %711 = vmatpush1.xpose.msra.mxu0 %v504
        %712 = vmatprep.subr.mxu0 0.0
        %713 = vmatpush1.xpose.msra.mxu0 %v501
        %714 = vmatprep.subr.mxu0 0.0
        %715 = vmatpush1.xpose.msra.mxu0 %v498
        %716 = vmatprep.subr.mxu0 0.0
        %717 = vmatpush1.xpose.msra.mxu0 %v495
        %718 = vmatprep.subr.mxu0 0.0
        %719 = vmatpush2.xpose.msra.mxu0 %v588
        %720 = vmatprep.subr.mxu0 0.0
        %721 = vmatpush2.xpose.msra.mxu0 %v585
        %722 = vmatprep.subr.mxu0 0.0
        %723 = vmatpush2.xpose.msra.mxu0 %v582
        %724 = vmatprep.subr.mxu0 0.0
        %725 = vmatpush2.xpose.msra.mxu0 %v579
        %726 = vmatprep.subr.mxu0 0.0
        %727 = vmatpush2.xpose.msra.mxu0 %v576
        %728 = vmatprep.subr.mxu0 0.0
        %729 = vmatpush2.xpose.msra.mxu0 %v573
        %730 = vmatprep.subr.mxu0 0.0
        %731 = vmatpush2.xpose.msra.mxu0 %v570
        %732 = vmatprep.subr.mxu0 0.0
        %733 = vmatpush2.xpose.msra.mxu0 %v567
        %734 = vmatprep.subr.mxu0 0.0
        %735 = vmatpush2.xpose.msra.mxu0 %v564
        %736 = vmatprep.subr.mxu0 0.0
        %737 = vmatpush2.xpose.msra.mxu0 %v561
        %738 = vmatprep.subr.mxu0 0.0
        %739 = vmatpush2.xpose.msra.mxu0 %v558
        %740 = vmatprep.subr.mxu0 0.0
        %741 = vmatpush2.xpose.msra.mxu0 %v555
        %742 = vmatprep.subr.mxu0 0.0
        %743 = vmatpush2.xpose.msra.mxu0 %v552
        %744 = vmatprep.subr.mxu0 0.0
        %745 = vmatpush2.xpose.msra.mxu0 %v549
        %746 = vmatprep.subr.mxu0 0.0
        %747 = vmatpush2.xpose.msra.mxu0 %v546
        %748 = vmatprep.subr.mxu0 0.0
        %749 = vmatpush2.xpose.msra.mxu0 %v543
        %750 = vmatprep.mubr.f32.mxu0 0.0
        %751 = vmatmul.mubr.f32.gmra.mxu0 %v471
        %v752 = vpop.f32.mrf.mxu0
        %v753 = vadd.f32 0.0, %v752
        %v754 = vpop.f32.mrf.mxu0
        %v755 = vadd.f32 0.0, %v754
        %756 = vmatprep.mubr.f32.mxu0 0.0
        %757 = vmatmul.mubr.f32.gmra.mxu0 %v474
        %v758 = vpop.f32.mrf.mxu0
        %v759 = vadd.f32 0.0, %v758
        %v760 = vpop.f32.mrf.mxu0
        %v761 = vadd.f32 0.0, %v760
        %762 = vmatprep.mubr.f32.mxu0 0.0
        %763 = vmatmul.mubr.f32.gmra.mxu0 %v477
        %v764 = vpop.f32.mrf.mxu0
        %v765 = vadd.f32 0.0, %v764
        %v766 = vpop.f32.mrf.mxu0
        %v767 = vadd.f32 0.0, %v766
        %768 = vmatprep.mubr.f32.mxu0 0.0
        %769 = vmatmul.mubr.f32.gmra.mxu0 %v480
        %v770 = vpop.f32.mrf.mxu0
        %v771 = vadd.f32 0.0, %v770
        %v772 = vpop.f32.mrf.mxu0
        %v773 = vadd.f32 0.0, %v772
        %774 = vmatprep.mubr.f32.mxu0 0.0
        %775 = vmatmul.mubr.f32.gmra.mxu0 %v483
        %v776 = vpop.f32.mrf.mxu0
        %v777 = vadd.f32 0.0, %v776
        %v778 = vpop.f32.mrf.mxu0
        %v779 = vadd.f32 0.0, %v778
        %780 = vmatprep.mubr.f32.mxu0 0.0
        %781 = vmatmul.mubr.f32.gmra.mxu0 %v486
        %v782 = vpop.f32.mrf.mxu0
        %v783 = vadd.f32 0.0, %v782
        %v784 = vpop.f32.mrf.mxu0
        %v785 = vadd.f32 0.0, %v784
        %786 = vmatprep.mubr.f32.mxu0 0.0
        %787 = vmatmul.mubr.f32.gmra.mxu0 %v489
        %v788 = vpop.f32.mrf.mxu0
        %v789 = vadd.f32 0.0, %v788
        %v790 = vpop.f32.mrf.mxu0
        %v791 = vadd.f32 0.0, %v790
        %792 = vmatprep.mubr.f32.mxu0 0.0
        %793 = vmatmul.mubr.f32.gmra.mxu0 %v492
        %v794 = vpop.f32.mrf.mxu0
        %v795 = vadd.f32 0.0, %v794
        %v796 = vpop.f32.mrf.mxu0
        %v797 = vadd.f32 0.0, %v796
        %798 = vdwg.mxu0
        %799 = vmatprep.subr.mxu0 0.0
        %800 = vmatpush1.xpose.msra.mxu0 %v636
        %801 = vmatprep.subr.mxu0 0.0
        %802 = vmatpush1.xpose.msra.mxu0 %v633
        %803 = vmatprep.subr.mxu0 0.0
        %804 = vmatpush1.xpose.msra.mxu0 %v630
        %805 = vmatprep.subr.mxu0 0.0
        %806 = vmatpush1.xpose.msra.mxu0 %v627
        %807 = vmatprep.subr.mxu0 0.0
        %808 = vmatpush1.xpose.msra.mxu0 %v624
        %809 = vmatprep.subr.mxu0 0.0
        %810 = vmatpush1.xpose.msra.mxu0 %v621
        %811 = vmatprep.subr.mxu0 0.0
        %812 = vmatpush1.xpose.msra.mxu0 %v618
        %813 = vmatprep.subr.mxu0 0.0
        %814 = vmatpush1.xpose.msra.mxu0 %v615
        %815 = vmatprep.subr.mxu0 0.0
        %816 = vmatpush1.xpose.msra.mxu0 %v612
        %817 = vmatprep.subr.mxu0 0.0
        %818 = vmatpush1.xpose.msra.mxu0 %v609
        %819 = vmatprep.subr.mxu0 0.0
        %820 = vmatpush1.xpose.msra.mxu0 %v606
        %821 = vmatprep.subr.mxu0 0.0
        %822 = vmatpush1.xpose.msra.mxu0 %v603
        %823 = vmatprep.subr.mxu0 0.0
        %824 = vmatpush1.xpose.msra.mxu0 %v600
        %825 = vmatprep.subr.mxu0 0.0
        %826 = vmatpush1.xpose.msra.mxu0 %v597
        %827 = vmatprep.subr.mxu0 0.0
        %828 = vmatpush1.xpose.msra.mxu0 %v594
        %829 = vmatprep.subr.mxu0 0.0
        %830 = vmatpush1.xpose.msra.mxu0 %v591
        %831 = vmatprep.subr.mxu0 0.0
        %832 = vmatpush2.xpose.msra.mxu0 %v684
        %833 = vmatprep.subr.mxu0 0.0
        %834 = vmatpush2.xpose.msra.mxu0 %v681
        %835 = vmatprep.subr.mxu0 0.0
        %836 = vmatpush2.xpose.msra.mxu0 %v678
        %837 = vmatprep.subr.mxu0 0.0
        %838 = vmatpush2.xpose.msra.mxu0 %v675
        %839 = vmatprep.subr.mxu0 0.0
        %840 = vmatpush2.xpose.msra.mxu0 %v672
        %841 = vmatprep.subr.mxu0 0.0
        %842 = vmatpush2.xpose.msra.mxu0 %v669
        %843 = vmatprep.subr.mxu0 0.0
        %844 = vmatpush2.xpose.msra.mxu0 %v666
        %845 = vmatprep.subr.mxu0 0.0
        %846 = vmatpush2.xpose.msra.mxu0 %v663
        %847 = vmatprep.subr.mxu0 0.0
        %848 = vmatpush2.xpose.msra.mxu0 %v660
        %849 = vmatprep.subr.mxu0 0.0
        %850 = vmatpush2.xpose.msra.mxu0 %v657
        %851 = vmatprep.subr.mxu0 0.0
        %852 = vmatpush2.xpose.msra.mxu0 %v654
        %853 = vmatprep.subr.mxu0 0.0
        %854 = vmatpush2.xpose.msra.mxu0 %v651
        %855 = vmatprep.subr.mxu0 0.0
        %856 = vmatpush2.xpose.msra.mxu0 %v648
        %857 = vmatprep.subr.mxu0 0.0
        %858 = vmatpush2.xpose.msra.mxu0 %v645
        %859 = vmatprep.subr.mxu0 0.0
        %860 = vmatpush2.xpose.msra.mxu0 %v642
        %861 = vmatprep.subr.mxu0 0.0
        %862 = vmatpush2.xpose.msra.mxu0 %v639
        %863 = vmatprep.mubr.f32.mxu0 0.0
        %864 = vmatmul.mubr.f32.gmra.mxu0 %v471
        %v865 = vpop.f32.mrf.mxu0
        %v866 = vadd.f32 0.0, %v865
        %v867 = vpop.f32.mrf.mxu0
        %v868 = vadd.f32 0.0, %v867
        %869 = vmatprep.mubr.f32.mxu0 0.0
        %870 = vmatmul.mubr.f32.gmra.mxu0 %v474
        %v871 = vpop.f32.mrf.mxu0
        %v872 = vadd.f32 0.0, %v871
        %v873 = vpop.f32.mrf.mxu0
        %v874 = vadd.f32 0.0, %v873
        %875 = vmatprep.mubr.f32.mxu0 0.0
        %876 = vmatmul.mubr.f32.gmra.mxu0 %v477
        %v877 = vpop.f32.mrf.mxu0
        %v878 = vadd.f32 0.0, %v877
        %v879 = vpop.f32.mrf.mxu0
        %v880 = vadd.f32 0.0, %v879
        %881 = vmatprep.mubr.f32.mxu0 0.0
        %882 = vmatmul.mubr.f32.gmra.mxu0 %v480
        %v883 = vpop.f32.mrf.mxu0
        %v884 = vadd.f32 0.0, %v883
        %v885 = vpop.f32.mrf.mxu0
        %v886 = vadd.f32 0.0, %v885
        %887 = vmatprep.mubr.f32.mxu0 0.0
        %888 = vmatmul.mubr.f32.gmra.mxu0 %v483
        %v889 = vpop.f32.mrf.mxu0
        %v890 = vadd.f32 0.0, %v889
        %v891 = vpop.f32.mrf.mxu0
        %v892 = vadd.f32 0.0, %v891
        %893 = vmatprep.mubr.f32.mxu0 0.0
        %894 = vmatmul.mubr.f32.gmra.mxu0 %v486
        %v895 = vpop.f32.mrf.mxu0
        %v896 = vadd.f32 0.0, %v895
        %v897 = vpop.f32.mrf.mxu0
        %v898 = vadd.f32 0.0, %v897
        %899 = vmatprep.mubr.f32.mxu0 0.0
        %900 = vmatmul.mubr.f32.gmra.mxu0 %v489
        %v901 = vpop.f32.mrf.mxu0
        %v902 = vadd.f32 0.0, %v901
        %v903 = vpop.f32.mrf.mxu0
        %v904 = vadd.f32 0.0, %v903
        %905 = vmatprep.mubr.f32.mxu0 0.0
        %906 = vmatmul.mubr.f32.gmra.mxu0 %v492
        %v907 = vpop.f32.mrf.mxu0
        %v908 = vadd.f32 0.0, %v907
        %v909 = vpop.f32.mrf.mxu0
        %v910 = vadd.f32 0.0, %v909
        %911 = vdwg.mxu0
        %v912 = vld [vmem:[%s4] sm:$0xff]
        %v913 = vld [vmem:[%s4 + $0x8] sm:$0xff]
        %v914 = vld [vmem:[%s4 + $0x10] sm:$0xff]
        %v915 = vld [vmem:[%s4 + $0x18] sm:$0xff]
        %v916 = vld [vmem:[%s4 + $0x20] sm:$0xff]
        %v917 = vld [vmem:[%s4 + $0x28] sm:$0xff]
        %v918 = vld [vmem:[%s4 + $0x30] sm:$0xff]
        %v919 = vld [vmem:[%s4 + $0x38] sm:$0xff]
        %v920 = vld [vmem:[%s5] sm:$0xff]
        %v921 = vld [vmem:[%s5 + $0x8] sm:$0xff]
        %v922 = vld [vmem:[%s5 + $0x10] sm:$0xff]
        %v923 = vld [vmem:[%s5 + $0x18] sm:$0xff]
        %v924 = vld [vmem:[%s5 + $0x20] sm:$0xff]
        %v925 = vld [vmem:[%s5 + $0x28] sm:$0xff]
        %v926 = vld [vmem:[%s5 + $0x30] sm:$0xff]
        %v927 = vld [vmem:[%s5 + $0x38] sm:$0xff]
        %v928 = vld [vmem:[%s6] sm:$0xff]
        %v929 = vld [vmem:[%s6 + $0x8] sm:$0xff]
        %v930 = vld [vmem:[%s6 + $0x10] sm:$0xff]
        %v931 = vld [vmem:[%s6 + $0x18] sm:$0xff]
        %v932 = vld [vmem:[%s6 + $0x20] sm:$0xff]
        %v933 = vld [vmem:[%s6 + $0x28] sm:$0xff]
        %v934 = vld [vmem:[%s6 + $0x30] sm:$0xff]
        %v935 = vld [vmem:[%s6 + $0x38] sm:$0xff]
        %v936 = vld [vmem:[%s7] sm:$0x7]
        %v937 = vld [vmem:[%s8] sm:$0x7]
        %v938 = vld [vmem:[%s340] sm:$0x77]
        %v939 = vld [vmem:[%s340 + $0x8] sm:$0x77]
        %v940 = vmul.f32 %v938, %v938
        %v941 = vmul.f32 %v939, %v939
        %v944 = vrot.slane %v940, 5
        %v945 = vrot.slane %v944, 4
        %v946 = vrot.slane %v941, 5
        %v947 = vrot.slane %v946, 4
        %v950 = vadd.f32 %v940, %v945
        %v951 = vadd.f32 %v941, %v947
        %v952 = vrot.slane %v940, 6
        %v953 = vrot.slane %v952, 4
        %v954 = vrot.slane %v941, 6
        %v955 = vrot.slane %v954, 4
        %v958 = vadd.f32 %v950, %v953
        %v959 = vadd.f32 %v951, %v955
        %v960 = vmax.f32 %v958, 1e-24
        %v961 = vmax.f32 %v959, 1e-24
        %v962 = vrsqrt.pop %v960
        %v963 = vrsqrt.pop %v961
        %v964 = vmul.f32 %v938, %v962
        %v965 = vmul.f32 %v939, %v963
        %v968 = vrot.slane %v962, 7
        %v969 = vrot.slane %v963, 7
        %v972 = vmul.f32 %v938, %v968
        %v973 = vmul.f32 %v939, %v969
        %v974 = vrot.slane %v962, 6
        %v975 = vrot.slane %v963, 6
        %v978 = vmul.f32 %v938, %v974
        %v979 = vmul.f32 %v939, %v975
        %v980 = vmul.f32 %v972, -0.48860252
        %v981 = vmul.f32 %v973, -0.48860252
        %v982 = vmul.f32 %v978, 0.48860252
        %v983 = vmul.f32 %v979, 0.48860252
        %v984 = vmul.f32 %v964, -0.48860252
        %v985 = vmul.f32 %v965, -0.48860252
        %v986 = vmul.f32 %v978, %v978
        %v987 = vmul.f32 %v979, %v979
        %v988 = vmul.f32 %v978, -1.0925485
        %v989 = vmul.f32 %v979, -1.0925485
        %v990 = vmul.f32 %v964, %v964
        %v991 = vmul.f32 %v965, %v965
        %v992 = vmul.f32 %v972, %v972
        %v993 = vmul.f32 %v973, %v973
        %v996 = vrot.slane %v992, 5
        %v997 = vrot.slane %v996, 4
        %v998 = vrot.slane %v993, 5
        %v999 = vrot.slane %v998, 4
        %v1002 = vsub.f32 %v990, %v997
        %v1003 = vsub.f32 %v991, %v999
        %v1004 = vmul.f32 %v964, 2.0
        %v1005 = vmul.f32 %v965, 2.0
        %v1008 = vrot.slane %v972, 5
        %v1009 = vrot.slane %v1008, 4
        %v1010 = vrot.slane %v973, 5
        %v1011 = vrot.slane %v1010, 4
        %v1014 = vmul.f32 %v1004, %v1009
        %v1015 = vmul.f32 %v1005, %v1011
        %v1016 = vmul.f32 %v1014, 0.54627424
        %v1017 = vmul.f32 %v1015, 0.54627424
        %v1018 = vrot.slane %v972, 7
        %v1019 = vrot.slane %v973, 7
        %v1022 = vmul.f32 %v988, %v1018
        %v1023 = vmul.f32 %v989, %v1019
        %v1024 = vmul.f32 %v986, 0.9461747
        %v1025 = vmul.f32 %v987, 0.9461747
        %v1026 = vsub.f32 %v1024, 0.31539157
        %v1027 = vsub.f32 %v1025, 0.31539157
        %v1030 = vrot.slane %v964, 6
        %v1031 = vrot.slane %v965, 6
        %v1034 = vmul.f32 %v988, %v1030
        %v1035 = vmul.f32 %v989, %v1031
        %v1036 = vmul.f32 %v1002, 0.54627424
        %v1037 = vmul.f32 %v1003, 0.54627424
        %v1038 = vmul.f32 %v986, -2.285229
        %v1039 = vmul.f32 %v987, -2.285229
        %v1040 = vadd.f32 %v1038, 0.4570458
        %v1041 = vadd.f32 %v1039, 0.4570458
        %v1042 = vmul.f32 %v978, 1.4453057
        %v1043 = vmul.f32 %v979, 1.4453057
        %v1044 = vmul.f32 %v964, %v1002
        %v1045 = vmul.f32 %v965, %v1003
        %v1048 = vrot.slane %v1014, 7
        %v1049 = vrot.slane %v1015, 7
        %v1052 = vmul.f32 %v972, %v1048
        %v1053 = vmul.f32 %v973, %v1049
        %v1056 = vrot.slane %v1052, 5
        %v1057 = vrot.slane %v1056, 4
        %v1058 = vrot.slane %v1053, 5
        %v1059 = vrot.slane %v1058, 4
        %v1062 = vsub.f32 %v1044, %v1057
        %v1063 = vsub.f32 %v1045, %v1059
        %v1064 = vmul.f32 %v964, %v1014
        %v1065 = vmul.f32 %v965, %v1015
        %v1068 = vrot.slane %v1002, 7
        %v1069 = vrot.slane %v1003, 7
        %v1072 = vmul.f32 %v972, %v1068
        %v1073 = vmul.f32 %v973, %v1069
        %v1076 = vrot.slane %v1072, 5
        %v1077 = vrot.slane %v1076, 4
        %v1078 = vrot.slane %v1073, 5
        %v1079 = vrot.slane %v1078, 4
        %v1082 = vadd.f32 %v1064, %v1077
        %v1083 = vadd.f32 %v1065, %v1079
        %v1084 = vmul.f32 %v1082, -0.5900436
        %v1085 = vmul.f32 %v1083, -0.5900436
        %v1086 = vrot.slane %v1014, 6
        %v1087 = vrot.slane %v1015, 6
        %v1090 = vmul.f32 %v1042, %v1086
        %v1091 = vmul.f32 %v1043, %v1087
        %v1092 = vmul.f32 %v1040, %v1018
        %v1093 = vmul.f32 %v1041, %v1019
        %v1094 = vmul.f32 %v986, 1.8658817
        %v1095 = vmul.f32 %v987, 1.8658817
        %v1096 = vsub.f32 %v1094, 1.119529
        %v1097 = vsub.f32 %v1095, 1.119529
        %v1098 = vmul.f32 %v978, %v1096
        %v1099 = vmul.f32 %v979, %v1097
        %v1100 = vmul.f32 %v1040, %v1030
        %v1101 = vmul.f32 %v1041, %v1031
        %v1102 = vrot.slane %v1002, 6
        %v1103 = vrot.slane %v1003, 6
        %v1106 = vmul.f32 %v1042, %v1102
        %v1107 = vmul.f32 %v1043, %v1103
        %v1108 = vmul.f32 %v1062, -0.5900436
        %v1109 = vmul.f32 %v1063, -0.5900436
        %v1112 = vlaneseq
        %v1113 = vshrl.u32 %v1112, 7
        %v1114 = vsub.s32 1, %v1113
        %v1115 = vrot.slane %v980, %v1114
        %v1116 = vlaneseq
        %v1117 = vshrl.u32 %v1116, 7
        %v1118 = vsub.s32 5, %v1117
        %v1119 = vrot.slane %v980, %v1118
        %v1120 = vlaneseq
        %v1121 = vshrl.u32 %v1120, 7
        %v1122 = vsub.s32 1, %v1121
        %v1123 = vrot.slane %v981, %v1122
        %v1124 = vlaneseq
        %v1125 = vshrl.u32 %v1124, 7
        %v1126 = vsub.s32 5, %v1125
        %v1127 = vrot.slane %v981, %v1126
        %v1134 = vlaneseq
        %v1135 = vshrl.u32 %v1134, 7
        %v1136 = vsub.s32 2, %v1135
        %v1137 = vrot.slane %v982, %v1136
        %v1138 = vlaneseq
        %v1139 = vshrl.u32 %v1138, 7
        %v1140 = vsub.s32 6, %v1139
        %v1141 = vrot.slane %v982, %v1140
        %v1142 = vlaneseq
        %v1143 = vshrl.u32 %v1142, 7
        %v1144 = vsub.s32 2, %v1143
        %v1145 = vrot.slane %v983, %v1144
        %v1146 = vlaneseq
        %v1147 = vshrl.u32 %v1146, 7
        %v1148 = vsub.s32 6, %v1147
        %v1149 = vrot.slane %v983, %v1148
        %v1156 = vlaneseq
        %v1157 = vshrl.u32 %v1156, 7
        %v1158 = vsub.s32 0, %v1157
        %v1159 = vrot.slane %v984, %v1158
        %v1160 = vlaneseq
        %v1161 = vshrl.u32 %v1160, 7
        %v1162 = vsub.s32 4, %v1161
        %v1163 = vrot.slane %v984, %v1162
        %v1164 = vlaneseq
        %v1165 = vshrl.u32 %v1164, 7
        %v1166 = vsub.s32 0, %v1165
        %v1167 = vrot.slane %v985, %v1166
        %v1168 = vlaneseq
        %v1169 = vshrl.u32 %v1168, 7
        %v1170 = vsub.s32 4, %v1169
        %v1171 = vrot.slane %v985, %v1170
        %v1178 = vlaneseq
        %v1179 = vshrl.u32 %v1178, 7
        %v1180 = vsub.s32 0, %v1179
        %v1181 = vrot.slane %v1016, %v1180
        %v1182 = vlaneseq
        %v1183 = vshrl.u32 %v1182, 7
        %v1184 = vsub.s32 4, %v1183
        %v1185 = vrot.slane %v1016, %v1184
        %v1186 = vlaneseq
        %v1187 = vshrl.u32 %v1186, 7
        %v1188 = vsub.s32 0, %v1187
        %v1189 = vrot.slane %v1017, %v1188
        %v1190 = vlaneseq
        %v1191 = vshrl.u32 %v1190, 7
        %v1192 = vsub.s32 4, %v1191
        %v1193 = vrot.slane %v1017, %v1192
        %v1200 = vlaneseq
        %v1201 = vshrl.u32 %v1200, 7
        %v1202 = vsub.s32 2, %v1201
        %v1203 = vrot.slane %v1022, %v1202
        %v1204 = vlaneseq
        %v1205 = vshrl.u32 %v1204, 7
        %v1206 = vsub.s32 6, %v1205
        %v1207 = vrot.slane %v1022, %v1206
        %v1208 = vlaneseq
        %v1209 = vshrl.u32 %v1208, 7
        %v1210 = vsub.s32 2, %v1209
        %v1211 = vrot.slane %v1023, %v1210
        %v1212 = vlaneseq
        %v1213 = vshrl.u32 %v1212, 7
        %v1214 = vsub.s32 6, %v1213
        %v1215 = vrot.slane %v1023, %v1214
        %v1222 = vlaneseq
        %v1223 = vshrl.u32 %v1222, 7
        %v1224 = vsub.s32 2, %v1223
        %v1225 = vrot.slane %v1026, %v1224
        %v1226 = vlaneseq
        %v1227 = vshrl.u32 %v1226, 7
        %v1228 = vsub.s32 6, %v1227
        %v1229 = vrot.slane %v1026, %v1228
        %v1230 = vlaneseq
        %v1231 = vshrl.u32 %v1230, 7
        %v1232 = vsub.s32 2, %v1231
        %v1233 = vrot.slane %v1027, %v1232
        %v1234 = vlaneseq
        %v1235 = vshrl.u32 %v1234, 7
        %v1236 = vsub.s32 6, %v1235
        %v1237 = vrot.slane %v1027, %v1236
        %v1244 = vlaneseq
        %v1245 = vshrl.u32 %v1244, 7
        %v1246 = vsub.s32 2, %v1245
        %v1247 = vrot.slane %v1034, %v1246
        %v1248 = vlaneseq
        %v1249 = vshrl.u32 %v1248, 7
        %v1250 = vsub.s32 6, %v1249
        %v1251 = vrot.slane %v1034, %v1250
        %v1252 = vlaneseq
        %v1253 = vshrl.u32 %v1252, 7
        %v1254 = vsub.s32 2, %v1253
        %v1255 = vrot.slane %v1035, %v1254
        %v1256 = vlaneseq
        %v1257 = vshrl.u32 %v1256, 7
        %v1258 = vsub.s32 6, %v1257
        %v1259 = vrot.slane %v1035, %v1258
        %v1266 = vlaneseq
        %v1267 = vshrl.u32 %v1266, 7
        %v1268 = vsub.s32 0, %v1267
        %v1269 = vrot.slane %v1036, %v1268
        %v1270 = vlaneseq
        %v1271 = vshrl.u32 %v1270, 7
        %v1272 = vsub.s32 4, %v1271
        %v1273 = vrot.slane %v1036, %v1272
        %v1274 = vlaneseq
        %v1275 = vshrl.u32 %v1274, 7
        %v1276 = vsub.s32 0, %v1275
        %v1277 = vrot.slane %v1037, %v1276
        %v1278 = vlaneseq
        %v1279 = vshrl.u32 %v1278, 7
        %v1280 = vsub.s32 4, %v1279
        %v1281 = vrot.slane %v1037, %v1280
        %v1288 = vlaneseq
        %v1289 = vshrl.u32 %v1288, 7
        %v1290 = vsub.s32 0, %v1289
        %v1291 = vrot.slane %v1084, %v1290
        %v1292 = vlaneseq
        %v1293 = vshrl.u32 %v1292, 7
        %v1294 = vsub.s32 4, %v1293
        %v1295 = vrot.slane %v1084, %v1294
        %v1296 = vlaneseq
        %v1297 = vshrl.u32 %v1296, 7
        %v1298 = vsub.s32 0, %v1297
        %v1299 = vrot.slane %v1085, %v1298
        %v1300 = vlaneseq
        %v1301 = vshrl.u32 %v1300, 7
        %v1302 = vsub.s32 4, %v1301
        %v1303 = vrot.slane %v1085, %v1302
        %v1310 = vlaneseq
        %v1311 = vshrl.u32 %v1310, 7
        %v1312 = vsub.s32 2, %v1311
        %v1313 = vrot.slane %v1090, %v1312
        %v1314 = vlaneseq
        %v1315 = vshrl.u32 %v1314, 7
        %v1316 = vsub.s32 6, %v1315
        %v1317 = vrot.slane %v1090, %v1316
        %v1318 = vlaneseq
        %v1319 = vshrl.u32 %v1318, 7
        %v1320 = vsub.s32 2, %v1319
        %v1321 = vrot.slane %v1091, %v1320
        %v1322 = vlaneseq
        %v1323 = vshrl.u32 %v1322, 7
        %v1324 = vsub.s32 6, %v1323
        %v1325 = vrot.slane %v1091, %v1324
        %v1332 = vlaneseq
        %v1333 = vshrl.u32 %v1332, 7
        %v1334 = vsub.s32 2, %v1333
        %v1335 = vrot.slane %v1092, %v1334
        %v1336 = vlaneseq
        %v1337 = vshrl.u32 %v1336, 7
        %v1338 = vsub.s32 6, %v1337
        %v1339 = vrot.slane %v1092, %v1338
        %v1340 = vlaneseq
        %v1341 = vshrl.u32 %v1340, 7
        %v1342 = vsub.s32 2, %v1341
        %v1343 = vrot.slane %v1093, %v1342
        %v1344 = vlaneseq
        %v1345 = vshrl.u32 %v1344, 7
        %v1346 = vsub.s32 6, %v1345
        %v1347 = vrot.slane %v1093, %v1346
        %v1354 = vlaneseq
        %v1355 = vshrl.u32 %v1354, 7
        %v1356 = vsub.s32 2, %v1355
        %v1357 = vrot.slane %v1098, %v1356
        %v1358 = vlaneseq
        %v1359 = vshrl.u32 %v1358, 7
        %v1360 = vsub.s32 6, %v1359
        %v1361 = vrot.slane %v1098, %v1360
        %v1362 = vlaneseq
        %v1363 = vshrl.u32 %v1362, 7
        %v1364 = vsub.s32 2, %v1363
        %v1365 = vrot.slane %v1099, %v1364
        %v1366 = vlaneseq
        %v1367 = vshrl.u32 %v1366, 7
        %v1368 = vsub.s32 6, %v1367
        %v1369 = vrot.slane %v1099, %v1368
        %v1376 = vlaneseq
        %v1377 = vshrl.u32 %v1376, 7
        %v1378 = vsub.s32 2, %v1377
        %v1379 = vrot.slane %v1100, %v1378
        %v1380 = vlaneseq
        %v1381 = vshrl.u32 %v1380, 7
        %v1382 = vsub.s32 6, %v1381
        %v1383 = vrot.slane %v1100, %v1382
        %v1384 = vlaneseq
        %v1385 = vshrl.u32 %v1384, 7
        %v1386 = vsub.s32 2, %v1385
        %v1387 = vrot.slane %v1101, %v1386
        %v1388 = vlaneseq
        %v1389 = vshrl.u32 %v1388, 7
        %v1390 = vsub.s32 6, %v1389
        %v1391 = vrot.slane %v1101, %v1390
        %v1398 = vlaneseq
        %v1399 = vshrl.u32 %v1398, 7
        %v1400 = vsub.s32 2, %v1399
        %v1401 = vrot.slane %v1106, %v1400
        %v1402 = vlaneseq
        %v1403 = vshrl.u32 %v1402, 7
        %v1404 = vsub.s32 6, %v1403
        %v1405 = vrot.slane %v1106, %v1404
        %v1406 = vlaneseq
        %v1407 = vshrl.u32 %v1406, 7
        %v1408 = vsub.s32 2, %v1407
        %v1409 = vrot.slane %v1107, %v1408
        %v1410 = vlaneseq
        %v1411 = vshrl.u32 %v1410, 7
        %v1412 = vsub.s32 6, %v1411
        %v1413 = vrot.slane %v1107, %v1412
        %v1420 = vlaneseq
        %v1421 = vshrl.u32 %v1420, 7
        %v1422 = vsub.s32 0, %v1421
        %v1423 = vrot.slane %v1108, %v1422
        %v1424 = vlaneseq
        %v1425 = vshrl.u32 %v1424, 7
        %v1426 = vsub.s32 4, %v1425
        %v1427 = vrot.slane %v1108, %v1426
        %v1428 = vlaneseq
        %v1429 = vshrl.u32 %v1428, 7
        %v1430 = vsub.s32 0, %v1429
        %v1431 = vrot.slane %v1109, %v1430
        %v1432 = vlaneseq
        %v1433 = vshrl.u32 %v1432, 7
        %v1434 = vsub.s32 4, %v1433
        %v1435 = vrot.slane %v1109, %v1434
        %vm1440 = vcmask 1040384
        %v1441 = vsel %vm1440, 0.2820948, %v1115
        %v1442 = vsel %vm1440, 0.2820948, %v1119
        %v1443 = vsel %vm1440, 0.2820948, %v1123
        %v1444 = vsel %vm1440, 0.2820948, %v1127
        %vm1445 = vcmask 1041408
        %v1446 = vsel %vm1445, %v1441, %v1137
        %v1447 = vsel %vm1445, %v1442, %v1141
        %v1448 = vsel %vm1445, %v1443, %v1145
        %v1449 = vsel %vm1445, %v1444, %v1149
        %vm1450 = vcmask 1042432
        %v1451 = vsel %vm1450, %v1446, %v1159
        %v1452 = vsel %vm1450, %v1447, %v1163
        %v1453 = vsel %vm1450, %v1448, %v1167
        %v1454 = vsel %vm1450, %v1449, %v1171
        %vm1455 = vcmask 1043456
        %v1456 = vsel %vm1455, %v1451, %v1181
        %v1457 = vsel %vm1455, %v1452, %v1185
        %v1458 = vsel %vm1455, %v1453, %v1189
        %v1459 = vsel %vm1455, %v1454, %v1193
        %vm1460 = vcmask 1044480
        %v1461 = vsel %vm1460, %v1456, %v1203
        %v1462 = vsel %vm1460, %v1457, %v1207
        %v1463 = vsel %vm1460, %v1458, %v1211
        %v1464 = vsel %vm1460, %v1459, %v1215
        %vm1465 = vcmask 1045504
        %v1466 = vsel %vm1465, %v1461, %v1225
        %v1467 = vsel %vm1465, %v1462, %v1229
        %v1468 = vsel %vm1465, %v1463, %v1233
        %v1469 = vsel %vm1465, %v1464, %v1237
        %vm1470 = vcmask 1046528
        %v1471 = vsel %vm1470, %v1466, %v1247
        %v1472 = vsel %vm1470, %v1467, %v1251
        %v1473 = vsel %vm1470, %v1468, %v1255
        %v1474 = vsel %vm1470, %v1469, %v1259
        %v1475 = vsel %vm1440, %v1269, %v1291
        %v1476 = vsel %vm1440, %v1273, %v1295
        %v1477 = vsel %vm1440, %v1277, %v1299
        %v1478 = vsel %vm1440, %v1281, %v1303
        %v1479 = vsel %vm1445, %v1475, %v1313
        %v1480 = vsel %vm1445, %v1476, %v1317
        %v1481 = vsel %vm1445, %v1477, %v1321
        %v1482 = vsel %vm1445, %v1478, %v1325
        %v1483 = vsel %vm1450, %v1479, %v1335
        %v1484 = vsel %vm1450, %v1480, %v1339
        %v1485 = vsel %vm1450, %v1481, %v1343
        %v1486 = vsel %vm1450, %v1482, %v1347
        %v1487 = vsel %vm1455, %v1483, %v1357
        %v1488 = vsel %vm1455, %v1484, %v1361
        %v1489 = vsel %vm1455, %v1485, %v1365
        %v1490 = vsel %vm1455, %v1486, %v1369
        %v1491 = vsel %vm1460, %v1487, %v1379
        %v1492 = vsel %vm1460, %v1488, %v1383
        %v1493 = vsel %vm1460, %v1489, %v1387
        %v1494 = vsel %vm1460, %v1490, %v1391
        %v1495 = vsel %vm1465, %v1491, %v1401
        %v1496 = vsel %vm1465, %v1492, %v1405
        %v1497 = vsel %vm1465, %v1493, %v1409
        %v1498 = vsel %vm1465, %v1494, %v1413
        %v1499 = vsel %vm1470, %v1495, %v1423
        %v1500 = vsel %vm1470, %v1496, %v1427
        %v1501 = vsel %vm1470, %v1497, %v1431
        %v1502 = vsel %vm1470, %v1498, %v1435
        %vm1503 = vcmask 130048
        %v1505 = vsel %vm1503, %v912, 0
        %v1508 = vsel %vm1503, %v913, 0
        %v1511 = vsel %vm1503, %v914, 0
        %v1514 = vsel %vm1503, %v915, 0
        %v1517 = vsel %vm1503, %v916, 0
        %v1520 = vsel %vm1503, %v917, 0
        %v1523 = vsel %vm1503, %v918, 0
        %v1526 = vsel %vm1503, %v919, 0
        %1528 = vmatprep.subr.mxu0 0.0
        %1529 = vmatpush1.msra.mxu0 0.0
        %1530 = vmatprep.subr.mxu0 0.0
        %1531 = vmatpush1.msra.mxu0 0.0
        %1532 = vmatprep.subr.mxu0 0.0
        %1533 = vmatpush1.msra.mxu0 0.0
        %1534 = vmatprep.subr.mxu0 0.0
        %1535 = vmatpush1.msra.mxu0 0.0
        %1536 = vmatprep.subr.mxu0 0.0
        %1537 = vmatpush1.msra.mxu0 0.0
        %1538 = vmatprep.subr.mxu0 0.0
        %1539 = vmatpush1.msra.mxu0 0.0
        %1540 = vmatprep.subr.mxu0 0.0
        %1541 = vmatpush1.msra.mxu0 0.0
        %1542 = vmatprep.subr.mxu0 0.0
        %1543 = vmatpush1.msra.mxu0 0.0
        %1544 = vmatprep.subr.mxu0 0.0
        %1545 = vmatpush1.msra.mxu0 0.0
        %1546 = vmatprep.subr.mxu0 0.0
        %1547 = vmatpush1.msra.mxu0 0.0
        %1548 = vmatprep.subr.mxu0 0.0
        %1549 = vmatpush1.msra.mxu0 0.0
        %1550 = vmatprep.subr.mxu0 0.0
        %1551 = vmatpush1.msra.mxu0 0.0
        %1552 = vmatprep.subr.mxu0 0.0
        %1553 = vmatpush1.msra.mxu0 0.0
        %1554 = vmatprep.subr.mxu0 0.0
        %1555 = vmatpush1.msra.mxu0 0.0
        %1556 = vmatprep.subr.mxu0 %v1500
        %1557 = vmatpush1.msra.mxu0 %v1499
        %1558 = vmatprep.subr.mxu0 %v1472
        %1559 = vmatpush1.msra.mxu0 %v1471
        %1560 = vmatprep.subr.mxu0 0.0
        %1561 = vmatpush2.msra.mxu0 0.0
        %1562 = vmatprep.subr.mxu0 0.0
        %1563 = vmatpush2.msra.mxu0 0.0
        %1564 = vmatprep.subr.mxu0 0.0
        %1565 = vmatpush2.msra.mxu0 0.0
        %1566 = vmatprep.subr.mxu0 0.0
        %1567 = vmatpush2.msra.mxu0 0.0
        %1568 = vmatprep.subr.mxu0 0.0
        %1569 = vmatpush2.msra.mxu0 0.0
        %1570 = vmatprep.subr.mxu0 0.0
        %1571 = vmatpush2.msra.mxu0 0.0
        %1572 = vmatprep.subr.mxu0 0.0
        %1573 = vmatpush2.msra.mxu0 0.0
        %1574 = vmatprep.subr.mxu0 0.0
        %1575 = vmatpush2.msra.mxu0 0.0
        %1576 = vmatprep.subr.mxu0 0.0
        %1577 = vmatpush2.msra.mxu0 0.0
        %1578 = vmatprep.subr.mxu0 0.0
        %1579 = vmatpush2.msra.mxu0 0.0
        %1580 = vmatprep.subr.mxu0 0.0
        %1581 = vmatpush2.msra.mxu0 0.0
        %1582 = vmatprep.subr.mxu0 0.0
        %1583 = vmatpush2.msra.mxu0 0.0
        %1584 = vmatprep.subr.mxu0 0.0
        %1585 = vmatpush2.msra.mxu0 0.0
        %1586 = vmatprep.subr.mxu0 0.0
        %1587 = vmatpush2.msra.mxu0 0.0
        %1588 = vmatprep.subr.mxu0 0.0
        %1589 = vmatpush2.msra.mxu0 0.0
        %1590 = vmatprep.subr.mxu0 0.0
        %1591 = vmatpush2.msra.mxu0 0.0
        %1592 = vmatprep.mubr.f32.mxu0 0.0
        %1593 = vmatmul.mubr.f32.gmra.mxu0 %v1505
        %v1594 = vpop.f32.mrf.mxu0
        %v1595 = vadd.f32 0.0, %v1594
        %v1596 = vpop.f32.mrf.mxu0
        %v1597 = vadd.f32 0.0, %v1596
        %1598 = vmatprep.mubr.f32.mxu0 0.0
        %1599 = vmatmul.mubr.f32.gmra.mxu0 %v1508
        %v1600 = vpop.f32.mrf.mxu0
        %v1601 = vadd.f32 0.0, %v1600
        %v1602 = vpop.f32.mrf.mxu0
        %v1603 = vadd.f32 0.0, %v1602
        %1604 = vmatprep.mubr.f32.mxu0 0.0
        %1605 = vmatmul.mubr.f32.gmra.mxu0 %v1511
        %v1606 = vpop.f32.mrf.mxu0
        %v1607 = vadd.f32 0.0, %v1606
        %v1608 = vpop.f32.mrf.mxu0
        %v1609 = vadd.f32 0.0, %v1608
        %1610 = vmatprep.mubr.f32.mxu0 0.0
        %1611 = vmatmul.mubr.f32.gmra.mxu0 %v1514
        %v1612 = vpop.f32.mrf.mxu0
        %v1613 = vadd.f32 0.0, %v1612
        %v1614 = vpop.f32.mrf.mxu0
        %v1615 = vadd.f32 0.0, %v1614
        %1616 = vmatprep.mubr.f32.mxu0 0.0
        %1617 = vmatmul.mubr.f32.gmra.mxu0 %v1517
        %v1618 = vpop.f32.mrf.mxu0
        %v1619 = vadd.f32 0.0, %v1618
        %v1620 = vpop.f32.mrf.mxu0
        %v1621 = vadd.f32 0.0, %v1620
        %1622 = vmatprep.mubr.f32.mxu0 0.0
        %1623 = vmatmul.mubr.f32.gmra.mxu0 %v1520
        %v1624 = vpop.f32.mrf.mxu0
        %v1625 = vadd.f32 0.0, %v1624
        %v1626 = vpop.f32.mrf.mxu0
        %v1627 = vadd.f32 0.0, %v1626
        %1628 = vmatprep.mubr.f32.mxu0 0.0
        %1629 = vmatmul.mubr.f32.gmra.mxu0 %v1523
        %v1630 = vpop.f32.mrf.mxu0
        %v1631 = vadd.f32 0.0, %v1630
        %v1632 = vpop.f32.mrf.mxu0
        %v1633 = vadd.f32 0.0, %v1632
        %1634 = vmatprep.mubr.f32.mxu0 0.0
        %1635 = vmatmul.mubr.f32.gmra.mxu0 %v1526
        %v1636 = vpop.f32.mrf.mxu0
        %v1637 = vadd.f32 0.0, %v1636
        %v1638 = vpop.f32.mrf.mxu0
        %v1639 = vadd.f32 0.0, %v1638
        %1640 = vdwg.mxu0
        %1641 = vmatprep.subr.mxu0 0.0
        %1642 = vmatpush1.msra.mxu0 0.0
        %1643 = vmatprep.subr.mxu0 0.0
        %1644 = vmatpush1.msra.mxu0 0.0
        %1645 = vmatprep.subr.mxu0 0.0
        %1646 = vmatpush1.msra.mxu0 0.0
        %1647 = vmatprep.subr.mxu0 0.0
        %1648 = vmatpush1.msra.mxu0 0.0
        %1649 = vmatprep.subr.mxu0 0.0
        %1650 = vmatpush1.msra.mxu0 0.0
        %1651 = vmatprep.subr.mxu0 0.0
        %1652 = vmatpush1.msra.mxu0 0.0
        %1653 = vmatprep.subr.mxu0 0.0
        %1654 = vmatpush1.msra.mxu0 0.0
        %1655 = vmatprep.subr.mxu0 0.0
        %1656 = vmatpush1.msra.mxu0 0.0
        %1657 = vmatprep.subr.mxu0 0.0
        %1658 = vmatpush1.msra.mxu0 0.0
        %1659 = vmatprep.subr.mxu0 0.0
        %1660 = vmatpush1.msra.mxu0 0.0
        %1661 = vmatprep.subr.mxu0 0.0
        %1662 = vmatpush1.msra.mxu0 0.0
        %1663 = vmatprep.subr.mxu0 0.0
        %1664 = vmatpush1.msra.mxu0 0.0
        %1665 = vmatprep.subr.mxu0 0.0
        %1666 = vmatpush1.msra.mxu0 0.0
        %1667 = vmatprep.subr.mxu0 0.0
        %1668 = vmatpush1.msra.mxu0 0.0
        %1669 = vmatprep.subr.mxu0 %v1502
        %1670 = vmatpush1.msra.mxu0 %v1501
        %1671 = vmatprep.subr.mxu0 %v1474
        %1672 = vmatpush1.msra.mxu0 %v1473
        %1673 = vmatprep.subr.mxu0 0.0
        %1674 = vmatpush2.msra.mxu0 0.0
        %1675 = vmatprep.subr.mxu0 0.0
        %1676 = vmatpush2.msra.mxu0 0.0
        %1677 = vmatprep.subr.mxu0 0.0
        %1678 = vmatpush2.msra.mxu0 0.0
        %1679 = vmatprep.subr.mxu0 0.0
        %1680 = vmatpush2.msra.mxu0 0.0
        %1681 = vmatprep.subr.mxu0 0.0
        %1682 = vmatpush2.msra.mxu0 0.0
        %1683 = vmatprep.subr.mxu0 0.0
        %1684 = vmatpush2.msra.mxu0 0.0
        %1685 = vmatprep.subr.mxu0 0.0
        %1686 = vmatpush2.msra.mxu0 0.0
        %1687 = vmatprep.subr.mxu0 0.0
        %1688 = vmatpush2.msra.mxu0 0.0
        %1689 = vmatprep.subr.mxu0 0.0
        %1690 = vmatpush2.msra.mxu0 0.0
        %1691 = vmatprep.subr.mxu0 0.0
        %1692 = vmatpush2.msra.mxu0 0.0
        %1693 = vmatprep.subr.mxu0 0.0
        %1694 = vmatpush2.msra.mxu0 0.0
        %1695 = vmatprep.subr.mxu0 0.0
        %1696 = vmatpush2.msra.mxu0 0.0
        %1697 = vmatprep.subr.mxu0 0.0
        %1698 = vmatpush2.msra.mxu0 0.0
        %1699 = vmatprep.subr.mxu0 0.0
        %1700 = vmatpush2.msra.mxu0 0.0
        %1701 = vmatprep.subr.mxu0 0.0
        %1702 = vmatpush2.msra.mxu0 0.0
        %1703 = vmatprep.subr.mxu0 0.0
        %1704 = vmatpush2.msra.mxu0 0.0
        %1705 = vmatprep.mubr.f32.mxu0 0.0
        %1706 = vmatmul.mubr.f32.gmra.mxu0 %v1505
        %v1707 = vpop.f32.mrf.mxu0
        %v1708 = vadd.f32 0.0, %v1707
        %v1709 = vpop.f32.mrf.mxu0
        %v1710 = vadd.f32 0.0, %v1709
        %1711 = vmatprep.mubr.f32.mxu0 0.0
        %1712 = vmatmul.mubr.f32.gmra.mxu0 %v1508
        %v1713 = vpop.f32.mrf.mxu0
        %v1714 = vadd.f32 0.0, %v1713
        %v1715 = vpop.f32.mrf.mxu0
        %v1716 = vadd.f32 0.0, %v1715
        %1717 = vmatprep.mubr.f32.mxu0 0.0
        %1718 = vmatmul.mubr.f32.gmra.mxu0 %v1511
        %v1719 = vpop.f32.mrf.mxu0
        %v1720 = vadd.f32 0.0, %v1719
        %v1721 = vpop.f32.mrf.mxu0
        %v1722 = vadd.f32 0.0, %v1721
        %1723 = vmatprep.mubr.f32.mxu0 0.0
        %1724 = vmatmul.mubr.f32.gmra.mxu0 %v1514
        %v1725 = vpop.f32.mrf.mxu0
        %v1726 = vadd.f32 0.0, %v1725
        %v1727 = vpop.f32.mrf.mxu0
        %v1728 = vadd.f32 0.0, %v1727
        %1729 = vmatprep.mubr.f32.mxu0 0.0
        %1730 = vmatmul.mubr.f32.gmra.mxu0 %v1517
        %v1731 = vpop.f32.mrf.mxu0
        %v1732 = vadd.f32 0.0, %v1731
        %v1733 = vpop.f32.mrf.mxu0
        %v1734 = vadd.f32 0.0, %v1733
        %1735 = vmatprep.mubr.f32.mxu0 0.0
        %1736 = vmatmul.mubr.f32.gmra.mxu0 %v1520
        %v1737 = vpop.f32.mrf.mxu0
        %v1738 = vadd.f32 0.0, %v1737
        %v1739 = vpop.f32.mrf.mxu0
        %v1740 = vadd.f32 0.0, %v1739
        %1741 = vmatprep.mubr.f32.mxu0 0.0
        %1742 = vmatmul.mubr.f32.gmra.mxu0 %v1523
        %v1743 = vpop.f32.mrf.mxu0
        %v1744 = vadd.f32 0.0, %v1743
        %v1745 = vpop.f32.mrf.mxu0
        %v1746 = vadd.f32 0.0, %v1745
        %1747 = vmatprep.mubr.f32.mxu0 0.0
        %1748 = vmatmul.mubr.f32.gmra.mxu0 %v1526
        %v1749 = vpop.f32.mrf.mxu0
        %v1750 = vadd.f32 0.0, %v1749
        %v1751 = vpop.f32.mrf.mxu0
        %v1752 = vadd.f32 0.0, %v1751
        %1753 = vdwg.mxu0
        %v1754 = vadd.f32 %v753, %v1595
        %v1755 = vadd.f32 %v755, %v1597
        %v1756 = vadd.f32 %v866, %v1708
        %v1757 = vadd.f32 %v868, %v1710
        %v1758 = vadd.f32 %v759, %v1601
        %v1759 = vadd.f32 %v761, %v1603
        %v1760 = vadd.f32 %v872, %v1714
        %v1761 = vadd.f32 %v874, %v1716
        %v1762 = vadd.f32 %v765, %v1607
        %v1763 = vadd.f32 %v767, %v1609
        %v1764 = vadd.f32 %v878, %v1720
        %v1765 = vadd.f32 %v880, %v1722
        %v1766 = vadd.f32 %v771, %v1613
        %v1767 = vadd.f32 %v773, %v1615
        %v1768 = vadd.f32 %v884, %v1726
        %v1769 = vadd.f32 %v886, %v1728
        %v1770 = vadd.f32 %v777, %v1619
        %v1771 = vadd.f32 %v779, %v1621
        %v1772 = vadd.f32 %v890, %v1732
        %v1773 = vadd.f32 %v892, %v1734
        %v1774 = vadd.f32 %v783, %v1625
        %v1775 = vadd.f32 %v785, %v1627
        %v1776 = vadd.f32 %v896, %v1738
        %v1777 = vadd.f32 %v898, %v1740
        %v1778 = vadd.f32 %v789, %v1631
        %v1779 = vadd.f32 %v791, %v1633
        %v1780 = vadd.f32 %v902, %v1744
        %v1781 = vadd.f32 %v904, %v1746
        %v1782 = vadd.f32 %v795, %v1637
        %v1783 = vadd.f32 %v797, %v1639
        %v1784 = vadd.f32 %v908, %v1750
        %v1785 = vadd.f32 %v910, %v1752
        %v1786 = vld [vmem:[%s0] sm:$0xff]
        %v1787 = vld [vmem:[%s0 + $0x8] sm:$0xff]
        %v1788 = vld [vmem:[%s0 + $0x10] sm:$0xff]
        %v1789 = vld [vmem:[%s0 + $0x18] sm:$0xff]
        %v1790 = vld [vmem:[%s0 + $0x20] sm:$0xff]
        %v1791 = vld [vmem:[%s0 + $0x28] sm:$0xff]
        %v1792 = vld [vmem:[%s0 + $0x30] sm:$0xff]
        %v1793 = vld [vmem:[%s0 + $0x38] sm:$0xff]
        %1795 = vset.pattern.permute.xlu0 0
        %1796 = vperm.xlu0 %1795, %v1786
        %v1797 = vpop.permute.xlu0 %1796
        %1800 = vset.pattern.permute.xlu0 0
        %1801 = vperm.xlu0 %1800, %v1787
        %v1802 = vpop.permute.xlu0 %1801
        %1805 = vset.pattern.permute.xlu0 0
        %1806 = vperm.xlu0 %1805, %v1788
        %v1807 = vpop.permute.xlu0 %1806
        %1810 = vset.pattern.permute.xlu0 0
        %1811 = vperm.xlu0 %1810, %v1789
        %v1812 = vpop.permute.xlu0 %1811
        %1815 = vset.pattern.permute.xlu0 0
        %1816 = vperm.xlu0 %1815, %v1790
        %v1817 = vpop.permute.xlu0 %1816
        %1820 = vset.pattern.permute.xlu0 0
        %1821 = vperm.xlu0 %1820, %v1791
        %v1822 = vpop.permute.xlu0 %1821
        %1825 = vset.pattern.permute.xlu0 0
        %1826 = vperm.xlu0 %1825, %v1792
        %v1827 = vpop.permute.xlu0 %1826
        %1830 = vset.pattern.permute.xlu0 0
        %1831 = vperm.xlu0 %1830, %v1793
        %v1832 = vpop.permute.xlu0 %1831
        %v1834 = vadd.f32 %v1754, %v1797
        %v1835 = vadd.f32 %v1755, %v1797
        %v1836 = vadd.f32 %v1756, %v1797
        %v1837 = vadd.f32 %v1757, %v1797
        %v1838 = vadd.f32 %v1758, %v1802
        %v1839 = vadd.f32 %v1759, %v1802
        %v1840 = vadd.f32 %v1760, %v1802
        %v1841 = vadd.f32 %v1761, %v1802
        %v1842 = vadd.f32 %v1762, %v1807
        %v1843 = vadd.f32 %v1763, %v1807
        %v1844 = vadd.f32 %v1764, %v1807
        %v1845 = vadd.f32 %v1765, %v1807
        %v1846 = vadd.f32 %v1766, %v1812
        %v1847 = vadd.f32 %v1767, %v1812
        %v1848 = vadd.f32 %v1768, %v1812
        %v1849 = vadd.f32 %v1769, %v1812
        %v1850 = vadd.f32 %v1770, %v1817
        %v1851 = vadd.f32 %v1771, %v1817
        %v1852 = vadd.f32 %v1772, %v1817
        %v1853 = vadd.f32 %v1773, %v1817
        %v1854 = vadd.f32 %v1774, %v1822
        %v1855 = vadd.f32 %v1775, %v1822
        %v1856 = vadd.f32 %v1776, %v1822
        %v1857 = vadd.f32 %v1777, %v1822
        %v1858 = vadd.f32 %v1778, %v1827
        %v1859 = vadd.f32 %v1779, %v1827
        %v1860 = vadd.f32 %v1780, %v1827
        %v1861 = vadd.f32 %v1781, %v1827
        %v1862 = vadd.f32 %v1782, %v1832
        %v1863 = vadd.f32 %v1783, %v1832
        %v1864 = vadd.f32 %v1784, %v1832
        %v1865 = vadd.f32 %v1785, %v1832
        %v1866 = vmax.f32 %v1834, 0.0
        %v1867 = vmax.f32 %v1835, 0.0
        %v1868 = vmax.f32 %v1836, 0.0
        %v1869 = vmax.f32 %v1837, 0.0
        %v1870 = vmax.f32 %v1838, 0.0
        %v1871 = vmax.f32 %v1839, 0.0
        %v1872 = vmax.f32 %v1840, 0.0
        %v1873 = vmax.f32 %v1841, 0.0
        %v1874 = vmax.f32 %v1842, 0.0
        %v1875 = vmax.f32 %v1843, 0.0
        %v1876 = vmax.f32 %v1844, 0.0
        %v1877 = vmax.f32 %v1845, 0.0
        %v1878 = vmax.f32 %v1846, 0.0
        %v1879 = vmax.f32 %v1847, 0.0
        %v1880 = vmax.f32 %v1848, 0.0
        %v1881 = vmax.f32 %v1849, 0.0
        %v1882 = vmax.f32 %v1850, 0.0
        %v1883 = vmax.f32 %v1851, 0.0
        %v1884 = vmax.f32 %v1852, 0.0
        %v1885 = vmax.f32 %v1853, 0.0
        %v1886 = vmax.f32 %v1854, 0.0
        %v1887 = vmax.f32 %v1855, 0.0
        %v1888 = vmax.f32 %v1856, 0.0
        %v1889 = vmax.f32 %v1857, 0.0
        %v1890 = vmax.f32 %v1858, 0.0
        %v1891 = vmax.f32 %v1859, 0.0
        %v1892 = vmax.f32 %v1860, 0.0
        %v1893 = vmax.f32 %v1861, 0.0
        %v1894 = vmax.f32 %v1862, 0.0
        %v1895 = vmax.f32 %v1863, 0.0
        %v1896 = vmax.f32 %v1864, 0.0
        %v1897 = vmax.f32 %v1865, 0.0
        %1899 = vset.pattern.permute.xlu0 0
        %1900 = vperm.xlu0 %1899, %v928
        %v1901 = vpop.permute.xlu0 %1900
        %1904 = vset.pattern.permute.xlu0 0
        %1905 = vperm.xlu0 %1904, %v929
        %v1906 = vpop.permute.xlu0 %1905
        %1909 = vset.pattern.permute.xlu0 0
        %1910 = vperm.xlu0 %1909, %v930
        %v1911 = vpop.permute.xlu0 %1910
        %1914 = vset.pattern.permute.xlu0 0
        %1915 = vperm.xlu0 %1914, %v931
        %v1916 = vpop.permute.xlu0 %1915
        %1919 = vset.pattern.permute.xlu0 0
        %1920 = vperm.xlu0 %1919, %v932
        %v1921 = vpop.permute.xlu0 %1920
        %1924 = vset.pattern.permute.xlu0 0
        %1925 = vperm.xlu0 %1924, %v933
        %v1926 = vpop.permute.xlu0 %1925
        %1929 = vset.pattern.permute.xlu0 0
        %1930 = vperm.xlu0 %1929, %v934
        %v1931 = vpop.permute.xlu0 %1930
        %1934 = vset.pattern.permute.xlu0 0
        %1935 = vperm.xlu0 %1934, %v935
        %v1936 = vpop.permute.xlu0 %1935
        %vm1938 = vcmask 523264
        %v1940 = vsel %vm1938, %v920, 0
        %v1943 = vsel %vm1938, %v921, 0
        %v1946 = vsel %vm1938, %v922, 0
        %v1949 = vsel %vm1938, %v923, 0
        %v1952 = vsel %vm1938, %v924, 0
        %v1955 = vsel %vm1938, %v925, 0
        %v1958 = vsel %vm1938, %v926, 0
        %v1961 = vsel %vm1938, %v927, 0
        %1963 = vmatprep.subr.mxu0 0.0
        %1964 = vmatpush1.msra.mxu0 0.0
        %1965 = vmatprep.subr.mxu0 0.0
        %1966 = vmatpush1.msra.mxu0 0.0
        %1967 = vmatprep.subr.mxu0 0.0
        %1968 = vmatpush1.msra.mxu0 0.0
        %1969 = vmatprep.subr.mxu0 0.0
        %1970 = vmatpush1.msra.mxu0 0.0
        %1971 = vmatprep.subr.mxu0 0.0
        %1972 = vmatpush1.msra.mxu0 0.0
        %1973 = vmatprep.subr.mxu0 0.0
        %1974 = vmatpush1.msra.mxu0 0.0
        %1975 = vmatprep.subr.mxu0 0.0
        %1976 = vmatpush1.msra.mxu0 0.0
        %1977 = vmatprep.subr.mxu0 0.0
        %1978 = vmatpush1.msra.mxu0 0.0
        %1979 = vmatprep.subr.mxu0 %v1895
        %1980 = vmatpush1.msra.mxu0 %v1894
        %1981 = vmatprep.subr.mxu0 %v1891
        %1982 = vmatpush1.msra.mxu0 %v1890
        %1983 = vmatprep.subr.mxu0 %v1887
        %1984 = vmatpush1.msra.mxu0 %v1886
        %1985 = vmatprep.subr.mxu0 %v1883
        %1986 = vmatpush1.msra.mxu0 %v1882
        %1987 = vmatprep.subr.mxu0 %v1879
        %1988 = vmatpush1.msra.mxu0 %v1878
        %1989 = vmatprep.subr.mxu0 %v1875
        %1990 = vmatpush1.msra.mxu0 %v1874
        %1991 = vmatprep.subr.mxu0 %v1871
        %1992 = vmatpush1.msra.mxu0 %v1870
        %1993 = vmatprep.subr.mxu0 %v1867
        %1994 = vmatpush1.msra.mxu0 %v1866
        %1995 = vmatprep.subr.mxu0 0.0
        %1996 = vmatpush2.msra.mxu0 0.0
        %1997 = vmatprep.subr.mxu0 0.0
        %1998 = vmatpush2.msra.mxu0 0.0
        %1999 = vmatprep.subr.mxu0 0.0
        %2000 = vmatpush2.msra.mxu0 0.0
        %2001 = vmatprep.subr.mxu0 0.0
        %2002 = vmatpush2.msra.mxu0 0.0
        %2003 = vmatprep.subr.mxu0 0.0
        %2004 = vmatpush2.msra.mxu0 0.0
        %2005 = vmatprep.subr.mxu0 0.0
        %2006 = vmatpush2.msra.mxu0 0.0
        %2007 = vmatprep.subr.mxu0 0.0
        %2008 = vmatpush2.msra.mxu0 0.0
        %2009 = vmatprep.subr.mxu0 0.0
        %2010 = vmatpush2.msra.mxu0 0.0
        %2011 = vmatprep.subr.mxu0 0.0
        %2012 = vmatpush2.msra.mxu0 0.0
        %2013 = vmatprep.subr.mxu0 0.0
        %2014 = vmatpush2.msra.mxu0 0.0
        %2015 = vmatprep.subr.mxu0 0.0
        %2016 = vmatpush2.msra.mxu0 0.0
        %2017 = vmatprep.subr.mxu0 0.0
        %2018 = vmatpush2.msra.mxu0 0.0
        %2019 = vmatprep.subr.mxu0 0.0
        %2020 = vmatpush2.msra.mxu0 0.0
        %2021 = vmatprep.subr.mxu0 0.0
        %2022 = vmatpush2.msra.mxu0 0.0
        %2023 = vmatprep.subr.mxu0 0.0
        %2024 = vmatpush2.msra.mxu0 0.0
        %2025 = vmatprep.subr.mxu0 0.0
        %2026 = vmatpush2.msra.mxu0 0.0
        %2027 = vmatprep.mubr.f32.mxu0 0.0
        %2028 = vmatmul.mubr.f32.gmra.mxu0 %v1940
        %v2029 = vpop.f32.mrf.mxu0
        %v2030 = vadd.f32 %v1901, %v2029
        %v2031 = vpop.f32.mrf.mxu0
        %v2032 = vadd.f32 %v1901, %v2031
        %2033 = vmatprep.mubr.f32.mxu0 0.0
        %2034 = vmatmul.mubr.f32.gmra.mxu0 %v1943
        %v2035 = vpop.f32.mrf.mxu0
        %v2036 = vadd.f32 %v1906, %v2035
        %v2037 = vpop.f32.mrf.mxu0
        %v2038 = vadd.f32 %v1906, %v2037
        %2039 = vmatprep.mubr.f32.mxu0 0.0
        %2040 = vmatmul.mubr.f32.gmra.mxu0 %v1946
        %v2041 = vpop.f32.mrf.mxu0
        %v2042 = vadd.f32 %v1911, %v2041
        %v2043 = vpop.f32.mrf.mxu0
        %v2044 = vadd.f32 %v1911, %v2043
        %2045 = vmatprep.mubr.f32.mxu0 0.0
        %2046 = vmatmul.mubr.f32.gmra.mxu0 %v1949
        %v2047 = vpop.f32.mrf.mxu0
        %v2048 = vadd.f32 %v1916, %v2047
        %v2049 = vpop.f32.mrf.mxu0
        %v2050 = vadd.f32 %v1916, %v2049
        %2051 = vmatprep.mubr.f32.mxu0 0.0
        %2052 = vmatmul.mubr.f32.gmra.mxu0 %v1952
        %v2053 = vpop.f32.mrf.mxu0
        %v2054 = vadd.f32 %v1921, %v2053
        %v2055 = vpop.f32.mrf.mxu0
        %v2056 = vadd.f32 %v1921, %v2055
        %2057 = vmatprep.mubr.f32.mxu0 0.0
        %2058 = vmatmul.mubr.f32.gmra.mxu0 %v1955
        %v2059 = vpop.f32.mrf.mxu0
        %v2060 = vadd.f32 %v1926, %v2059
        %v2061 = vpop.f32.mrf.mxu0
        %v2062 = vadd.f32 %v1926, %v2061
        %2063 = vmatprep.mubr.f32.mxu0 0.0
        %2064 = vmatmul.mubr.f32.gmra.mxu0 %v1958
        %v2065 = vpop.f32.mrf.mxu0
        %v2066 = vadd.f32 %v1931, %v2065
        %v2067 = vpop.f32.mrf.mxu0
        %v2068 = vadd.f32 %v1931, %v2067
        %2069 = vmatprep.mubr.f32.mxu0 0.0
        %2070 = vmatmul.mubr.f32.gmra.mxu0 %v1961
        %v2071 = vpop.f32.mrf.mxu0
        %v2072 = vadd.f32 %v1936, %v2071
        %v2073 = vpop.f32.mrf.mxu0
        %v2074 = vadd.f32 %v1936, %v2073
        %2075 = vdwg.mxu0
        %2076 = vmatprep.subr.mxu0 0.0
        %2077 = vmatpush1.msra.mxu0 0.0
        %2078 = vmatprep.subr.mxu0 0.0
        %2079 = vmatpush1.msra.mxu0 0.0
        %2080 = vmatprep.subr.mxu0 0.0
        %2081 = vmatpush1.msra.mxu0 0.0
        %2082 = vmatprep.subr.mxu0 0.0
        %2083 = vmatpush1.msra.mxu0 0.0
        %2084 = vmatprep.subr.mxu0 0.0
        %2085 = vmatpush1.msra.mxu0 0.0
        %2086 = vmatprep.subr.mxu0 0.0
        %2087 = vmatpush1.msra.mxu0 0.0
        %2088 = vmatprep.subr.mxu0 0.0
        %2089 = vmatpush1.msra.mxu0 0.0
        %2090 = vmatprep.subr.mxu0 0.0
        %2091 = vmatpush1.msra.mxu0 0.0
        %2092 = vmatprep.subr.mxu0 %v1897
        %2093 = vmatpush1.msra.mxu0 %v1896
        %2094 = vmatprep.subr.mxu0 %v1893
        %2095 = vmatpush1.msra.mxu0 %v1892
        %2096 = vmatprep.subr.mxu0 %v1889
        %2097 = vmatpush1.msra.mxu0 %v1888
        %2098 = vmatprep.subr.mxu0 %v1885
        %2099 = vmatpush1.msra.mxu0 %v1884
        %2100 = vmatprep.subr.mxu0 %v1881
        %2101 = vmatpush1.msra.mxu0 %v1880
        %2102 = vmatprep.subr.mxu0 %v1877
        %2103 = vmatpush1.msra.mxu0 %v1876
        %2104 = vmatprep.subr.mxu0 %v1873
        %2105 = vmatpush1.msra.mxu0 %v1872
        %2106 = vmatprep.subr.mxu0 %v1869
        %2107 = vmatpush1.msra.mxu0 %v1868
        %2108 = vmatprep.subr.mxu0 0.0
        %2109 = vmatpush2.msra.mxu0 0.0
        %2110 = vmatprep.subr.mxu0 0.0
        %2111 = vmatpush2.msra.mxu0 0.0
        %2112 = vmatprep.subr.mxu0 0.0
        %2113 = vmatpush2.msra.mxu0 0.0
        %2114 = vmatprep.subr.mxu0 0.0
        %2115 = vmatpush2.msra.mxu0 0.0
        %2116 = vmatprep.subr.mxu0 0.0
        %2117 = vmatpush2.msra.mxu0 0.0
        %2118 = vmatprep.subr.mxu0 0.0
        %2119 = vmatpush2.msra.mxu0 0.0
        %2120 = vmatprep.subr.mxu0 0.0
        %2121 = vmatpush2.msra.mxu0 0.0
        %2122 = vmatprep.subr.mxu0 0.0
        %2123 = vmatpush2.msra.mxu0 0.0
        %2124 = vmatprep.subr.mxu0 0.0
        %2125 = vmatpush2.msra.mxu0 0.0
        %2126 = vmatprep.subr.mxu0 0.0
        %2127 = vmatpush2.msra.mxu0 0.0
        %2128 = vmatprep.subr.mxu0 0.0
        %2129 = vmatpush2.msra.mxu0 0.0
        %2130 = vmatprep.subr.mxu0 0.0
        %2131 = vmatpush2.msra.mxu0 0.0
        %2132 = vmatprep.subr.mxu0 0.0
        %2133 = vmatpush2.msra.mxu0 0.0
        %2134 = vmatprep.subr.mxu0 0.0
        %2135 = vmatpush2.msra.mxu0 0.0
        %2136 = vmatprep.subr.mxu0 0.0
        %2137 = vmatpush2.msra.mxu0 0.0
        %2138 = vmatprep.subr.mxu0 0.0
        %2139 = vmatpush2.msra.mxu0 0.0
        %2140 = vmatprep.mubr.f32.mxu0 0.0
        %2141 = vmatmul.mubr.f32.gmra.mxu0 %v1940
        %v2142 = vpop.f32.mrf.mxu0
        %v2143 = vadd.f32 %v1901, %v2142
        %v2144 = vpop.f32.mrf.mxu0
        %v2145 = vadd.f32 %v1901, %v2144
        %2146 = vmatprep.mubr.f32.mxu0 0.0
        %2147 = vmatmul.mubr.f32.gmra.mxu0 %v1943
        %v2148 = vpop.f32.mrf.mxu0
        %v2149 = vadd.f32 %v1906, %v2148
        %v2150 = vpop.f32.mrf.mxu0
        %v2151 = vadd.f32 %v1906, %v2150
        %2152 = vmatprep.mubr.f32.mxu0 0.0
        %2153 = vmatmul.mubr.f32.gmra.mxu0 %v1946
        %v2154 = vpop.f32.mrf.mxu0
        %v2155 = vadd.f32 %v1911, %v2154
        %v2156 = vpop.f32.mrf.mxu0
        %v2157 = vadd.f32 %v1911, %v2156
        %2158 = vmatprep.mubr.f32.mxu0 0.0
        %2159 = vmatmul.mubr.f32.gmra.mxu0 %v1949
        %v2160 = vpop.f32.mrf.mxu0
        %v2161 = vadd.f32 %v1916, %v2160
        %v2162 = vpop.f32.mrf.mxu0
        %v2163 = vadd.f32 %v1916, %v2162
        %2164 = vmatprep.mubr.f32.mxu0 0.0
        %2165 = vmatmul.mubr.f32.gmra.mxu0 %v1952
        %v2166 = vpop.f32.mrf.mxu0
        %v2167 = vadd.f32 %v1921, %v2166
        %v2168 = vpop.f32.mrf.mxu0
        %v2169 = vadd.f32 %v1921, %v2168
        %2170 = vmatprep.mubr.f32.mxu0 0.0
        %2171 = vmatmul.mubr.f32.gmra.mxu0 %v1955
        %v2172 = vpop.f32.mrf.mxu0
        %v2173 = vadd.f32 %v1926, %v2172
        %v2174 = vpop.f32.mrf.mxu0
        %v2175 = vadd.f32 %v1926, %v2174
        %2176 = vmatprep.mubr.f32.mxu0 0.0
        %2177 = vmatmul.mubr.f32.gmra.mxu0 %v1958
        %v2178 = vpop.f32.mrf.mxu0
        %v2179 = vadd.f32 %v1931, %v2178
        %v2180 = vpop.f32.mrf.mxu0
        %v2181 = vadd.f32 %v1931, %v2180
        %2182 = vmatprep.mubr.f32.mxu0 0.0
        %2183 = vmatmul.mubr.f32.gmra.mxu0 %v1961
        %v2184 = vpop.f32.mrf.mxu0
        %v2185 = vadd.f32 %v1936, %v2184
        %v2186 = vpop.f32.mrf.mxu0
        %v2187 = vadd.f32 %v1936, %v2186
        %2188 = vdwg.mxu0
        %v2189 = vmax.f32 %v2030, 0.0
        %v2190 = vmax.f32 %v2032, 0.0
        %v2191 = vmax.f32 %v2143, 0.0
        %v2192 = vmax.f32 %v2145, 0.0
        %v2193 = vmax.f32 %v2036, 0.0
        %v2194 = vmax.f32 %v2038, 0.0
        %v2195 = vmax.f32 %v2149, 0.0
        %v2196 = vmax.f32 %v2151, 0.0
        %v2197 = vmax.f32 %v2042, 0.0
        %v2198 = vmax.f32 %v2044, 0.0
        %v2199 = vmax.f32 %v2155, 0.0
        %v2200 = vmax.f32 %v2157, 0.0
        %v2201 = vmax.f32 %v2048, 0.0
        %v2202 = vmax.f32 %v2050, 0.0
        %v2203 = vmax.f32 %v2161, 0.0
        %v2204 = vmax.f32 %v2163, 0.0
        %v2205 = vmax.f32 %v2054, 0.0
        %v2206 = vmax.f32 %v2056, 0.0
        %v2207 = vmax.f32 %v2167, 0.0
        %v2208 = vmax.f32 %v2169, 0.0
        %v2209 = vmax.f32 %v2060, 0.0
        %v2210 = vmax.f32 %v2062, 0.0
        %v2211 = vmax.f32 %v2173, 0.0
        %v2212 = vmax.f32 %v2175, 0.0
        %v2213 = vmax.f32 %v2066, 0.0
        %v2214 = vmax.f32 %v2068, 0.0
        %v2215 = vmax.f32 %v2179, 0.0
        %v2216 = vmax.f32 %v2181, 0.0
        %v2217 = vmax.f32 %v2072, 0.0
        %v2218 = vmax.f32 %v2074, 0.0
        %v2219 = vmax.f32 %v2185, 0.0
        %v2220 = vmax.f32 %v2187, 0.0
        %2222 = vset.pattern.permute.xlu0 0
        %2223 = vperm.xlu0 %2222, %v937
        %v2224 = vpop.permute.xlu0 %2223
        %v2227 = vsel %vm1938, %v936, 0
        %2229 = vmatprep.subr.mxu0 0.0
        %2230 = vmatpush1.msra.mxu0 0.0
        %2231 = vmatprep.subr.mxu0 0.0
        %2232 = vmatpush1.msra.mxu0 0.0
        %2233 = vmatprep.subr.mxu0 0.0
        %2234 = vmatpush1.msra.mxu0 0.0
        %2235 = vmatprep.subr.mxu0 0.0
        %2236 = vmatpush1.msra.mxu0 0.0
        %2237 = vmatprep.subr.mxu0 0.0
        %2238 = vmatpush1.msra.mxu0 0.0
        %2239 = vmatprep.subr.mxu0 0.0
        %2240 = vmatpush1.msra.mxu0 0.0
        %2241 = vmatprep.subr.mxu0 0.0
        %2242 = vmatpush1.msra.mxu0 0.0
        %2243 = vmatprep.subr.mxu0 0.0
        %2244 = vmatpush1.msra.mxu0 0.0
        %2245 = vmatprep.subr.mxu0 %v2218
        %2246 = vmatpush1.msra.mxu0 %v2217
        %2247 = vmatprep.subr.mxu0 %v2214
        %2248 = vmatpush1.msra.mxu0 %v2213
        %2249 = vmatprep.subr.mxu0 %v2210
        %2250 = vmatpush1.msra.mxu0 %v2209
        %2251 = vmatprep.subr.mxu0 %v2206
        %2252 = vmatpush1.msra.mxu0 %v2205
        %2253 = vmatprep.subr.mxu0 %v2202
        %2254 = vmatpush1.msra.mxu0 %v2201
        %2255 = vmatprep.subr.mxu0 %v2198
        %2256 = vmatpush1.msra.mxu0 %v2197
        %2257 = vmatprep.subr.mxu0 %v2194
        %2258 = vmatpush1.msra.mxu0 %v2193
        %2259 = vmatprep.subr.mxu0 %v2190
        %2260 = vmatpush1.msra.mxu0 %v2189
        %2261 = vmatprep.subr.mxu0 0.0
        %2262 = vmatpush2.msra.mxu0 0.0
        %2263 = vmatprep.subr.mxu0 0.0
        %2264 = vmatpush2.msra.mxu0 0.0
        %2265 = vmatprep.subr.mxu0 0.0
        %2266 = vmatpush2.msra.mxu0 0.0
        %2267 = vmatprep.subr.mxu0 0.0
        %2268 = vmatpush2.msra.mxu0 0.0
        %2269 = vmatprep.subr.mxu0 0.0
        %2270 = vmatpush2.msra.mxu0 0.0
        %2271 = vmatprep.subr.mxu0 0.0
        %2272 = vmatpush2.msra.mxu0 0.0
        %2273 = vmatprep.subr.mxu0 0.0
        %2274 = vmatpush2.msra.mxu0 0.0
        %2275 = vmatprep.subr.mxu0 0.0
        %2276 = vmatpush2.msra.mxu0 0.0
        %2277 = vmatprep.subr.mxu0 0.0
        %2278 = vmatpush2.msra.mxu0 0.0
        %2279 = vmatprep.subr.mxu0 0.0
        %2280 = vmatpush2.msra.mxu0 0.0
        %2281 = vmatprep.subr.mxu0 0.0
        %2282 = vmatpush2.msra.mxu0 0.0
        %2283 = vmatprep.subr.mxu0 0.0
        %2284 = vmatpush2.msra.mxu0 0.0
        %2285 = vmatprep.subr.mxu0 0.0
        %2286 = vmatpush2.msra.mxu0 0.0
        %2287 = vmatprep.subr.mxu0 0.0
        %2288 = vmatpush2.msra.mxu0 0.0
        %2289 = vmatprep.subr.mxu0 0.0
        %2290 = vmatpush2.msra.mxu0 0.0
        %2291 = vmatprep.subr.mxu0 0.0
        %2292 = vmatpush2.msra.mxu0 0.0
        %2293 = vmatprep.mubr.f32.mxu0 0.0
        %2294 = vmatmul.mubr.f32.gmra.mxu0 %v2227
        %v2295 = vpop.f32.mrf.mxu0
        %v2296 = vadd.f32 %v2224, %v2295
        %v2297 = vpop.f32.mrf.mxu0
        %v2298 = vadd.f32 %v2224, %v2297
        %2299 = vdwg.mxu0
        %2300 = vmatprep.subr.mxu0 0.0
        %2301 = vmatpush1.msra.mxu0 0.0
        %2302 = vmatprep.subr.mxu0 0.0
        %2303 = vmatpush1.msra.mxu0 0.0
        %2304 = vmatprep.subr.mxu0 0.0
        %2305 = vmatpush1.msra.mxu0 0.0
        %2306 = vmatprep.subr.mxu0 0.0
        %2307 = vmatpush1.msra.mxu0 0.0
        %2308 = vmatprep.subr.mxu0 0.0
        %2309 = vmatpush1.msra.mxu0 0.0
        %2310 = vmatprep.subr.mxu0 0.0
        %2311 = vmatpush1.msra.mxu0 0.0
        %2312 = vmatprep.subr.mxu0 0.0
        %2313 = vmatpush1.msra.mxu0 0.0
        %2314 = vmatprep.subr.mxu0 0.0
        %2315 = vmatpush1.msra.mxu0 0.0
        %2316 = vmatprep.subr.mxu0 %v2220
        %2317 = vmatpush1.msra.mxu0 %v2219
        %2318 = vmatprep.subr.mxu0 %v2216
        %2319 = vmatpush1.msra.mxu0 %v2215
        %2320 = vmatprep.subr.mxu0 %v2212
        %2321 = vmatpush1.msra.mxu0 %v2211
        %2322 = vmatprep.subr.mxu0 %v2208
        %2323 = vmatpush1.msra.mxu0 %v2207
        %2324 = vmatprep.subr.mxu0 %v2204
        %2325 = vmatpush1.msra.mxu0 %v2203
        %2326 = vmatprep.subr.mxu0 %v2200
        %2327 = vmatpush1.msra.mxu0 %v2199
        %2328 = vmatprep.subr.mxu0 %v2196
        %2329 = vmatpush1.msra.mxu0 %v2195
        %2330 = vmatprep.subr.mxu0 %v2192
        %2331 = vmatpush1.msra.mxu0 %v2191
        %2332 = vmatprep.subr.mxu0 0.0
        %2333 = vmatpush2.msra.mxu0 0.0
        %2334 = vmatprep.subr.mxu0 0.0
        %2335 = vmatpush2.msra.mxu0 0.0
        %2336 = vmatprep.subr.mxu0 0.0
        %2337 = vmatpush2.msra.mxu0 0.0
        %2338 = vmatprep.subr.mxu0 0.0
        %2339 = vmatpush2.msra.mxu0 0.0
        %2340 = vmatprep.subr.mxu0 0.0
        %2341 = vmatpush2.msra.mxu0 0.0
        %2342 = vmatprep.subr.mxu0 0.0
        %2343 = vmatpush2.msra.mxu0 0.0
        %2344 = vmatprep.subr.mxu0 0.0
        %2345 = vmatpush2.msra.mxu0 0.0
        %2346 = vmatprep.subr.mxu0 0.0
        %2347 = vmatpush2.msra.mxu0 0.0
        %2348 = vmatprep.subr.mxu0 0.0
        %2349 = vmatpush2.msra.mxu0 0.0
        %2350 = vmatprep.subr.mxu0 0.0
        %2351 = vmatpush2.msra.mxu0 0.0
        %2352 = vmatprep.subr.mxu0 0.0
        %2353 = vmatpush2.msra.mxu0 0.0
        %2354 = vmatprep.subr.mxu0 0.0
        %2355 = vmatpush2.msra.mxu0 0.0
        %2356 = vmatprep.subr.mxu0 0.0
        %2357 = vmatpush2.msra.mxu0 0.0
        %2358 = vmatprep.subr.mxu0 0.0
        %2359 = vmatpush2.msra.mxu0 0.0
        %2360 = vmatprep.subr.mxu0 0.0
        %2361 = vmatpush2.msra.mxu0 0.0
        %2362 = vmatprep.subr.mxu0 0.0
        %2363 = vmatpush2.msra.mxu0 0.0
        %2364 = vmatprep.mubr.f32.mxu0 0.0
        %2365 = vmatmul.mubr.f32.gmra.mxu0 %v2227
        %v2366 = vpop.f32.mrf.mxu0
        %v2367 = vadd.f32 %v2224, %v2366
        %v2368 = vpop.f32.mrf.mxu0
        %v2369 = vadd.f32 %v2224, %v2368
        %2370 = vdwg.mxu0
        %v2375 = vcombine.low %v2296, %v2298
        %v2376 = vcombine.low %v2367, %v2369
        %2379 = vst [vmem:[%s380] sm:$0x77] %v2375
        %2380 = vst [vmem:[%s380 + $0x8] sm:$0x77] %v2376
        %s2381 = scalar_lea.vmem %s340, 16 [#allocation2]
        %v2382 = vld [vmem:[%s2381] sm:$0x77]
        %v2383 = vld [vmem:[%s2381 + $0x8] sm:$0x77]
        %v2384 = vmul.f32 %v2382, %v2382
        %v2385 = vmul.f32 %v2383, %v2383
        %v2388 = vrot.slane %v2384, 5
        %v2389 = vrot.slane %v2388, 4
        %v2390 = vrot.slane %v2385, 5
        %v2391 = vrot.slane %v2390, 4
        %v2394 = vadd.f32 %v2384, %v2389
        %v2395 = vadd.f32 %v2385, %v2391
        %v2396 = vrot.slane %v2384, 6
        %v2397 = vrot.slane %v2396, 4
        %v2398 = vrot.slane %v2385, 6
        %v2399 = vrot.slane %v2398, 4
        %v2402 = vadd.f32 %v2394, %v2397
        %v2403 = vadd.f32 %v2395, %v2399
        %v2404 = vmax.f32 %v2402, 1e-24
        %v2405 = vmax.f32 %v2403, 1e-24
        %v2406 = vrsqrt.pop %v2404
        %v2407 = vrsqrt.pop %v2405
        %v2408 = vmul.f32 %v2382, %v2406
        %v2409 = vmul.f32 %v2383, %v2407
        %v2412 = vrot.slane %v2406, 7
        %v2413 = vrot.slane %v2407, 7
        %v2416 = vmul.f32 %v2382, %v2412
        %v2417 = vmul.f32 %v2383, %v2413
        %v2418 = vrot.slane %v2406, 6
        %v2419 = vrot.slane %v2407, 6
        %v2422 = vmul.f32 %v2382, %v2418
        %v2423 = vmul.f32 %v2383, %v2419
        %v2424 = vmul.f32 %v2416, -0.48860252
        %v2425 = vmul.f32 %v2417, -0.48860252
        %v2426 = vmul.f32 %v2422, 0.48860252
        %v2427 = vmul.f32 %v2423, 0.48860252
        %v2428 = vmul.f32 %v2408, -0.48860252
        %v2429 = vmul.f32 %v2409, -0.48860252
        %v2430 = vmul.f32 %v2422, %v2422
        %v2431 = vmul.f32 %v2423, %v2423
        %v2432 = vmul.f32 %v2422, -1.0925485
        %v2433 = vmul.f32 %v2423, -1.0925485
        %v2434 = vmul.f32 %v2408, %v2408
        %v2435 = vmul.f32 %v2409, %v2409
        %v2436 = vmul.f32 %v2416, %v2416
        %v2437 = vmul.f32 %v2417, %v2417
        %v2440 = vrot.slane %v2436, 5
        %v2441 = vrot.slane %v2440, 4
        %v2442 = vrot.slane %v2437, 5
        %v2443 = vrot.slane %v2442, 4
        %v2446 = vsub.f32 %v2434, %v2441
        %v2447 = vsub.f32 %v2435, %v2443
        %v2448 = vmul.f32 %v2408, 2.0
        %v2449 = vmul.f32 %v2409, 2.0
        %v2452 = vrot.slane %v2416, 5
        %v2453 = vrot.slane %v2452, 4
        %v2454 = vrot.slane %v2417, 5
        %v2455 = vrot.slane %v2454, 4
        %v2458 = vmul.f32 %v2448, %v2453
        %v2459 = vmul.f32 %v2449, %v2455
        %v2460 = vmul.f32 %v2458, 0.54627424
        %v2461 = vmul.f32 %v2459, 0.54627424
        %v2462 = vrot.slane %v2416, 7
        %v2463 = vrot.slane %v2417, 7
        %v2466 = vmul.f32 %v2432, %v2462
        %v2467 = vmul.f32 %v2433, %v2463
        %v2468 = vmul.f32 %v2430, 0.9461747
        %v2469 = vmul.f32 %v2431, 0.9461747
        %v2470 = vsub.f32 %v2468, 0.31539157
        %v2471 = vsub.f32 %v2469, 0.31539157
        %v2474 = vrot.slane %v2408, 6
        %v2475 = vrot.slane %v2409, 6
        %v2478 = vmul.f32 %v2432, %v2474
        %v2479 = vmul.f32 %v2433, %v2475
        %v2480 = vmul.f32 %v2446, 0.54627424
        %v2481 = vmul.f32 %v2447, 0.54627424
        %v2482 = vmul.f32 %v2430, -2.285229
        %v2483 = vmul.f32 %v2431, -2.285229
        %v2484 = vadd.f32 %v2482, 0.4570458
        %v2485 = vadd.f32 %v2483, 0.4570458
        %v2486 = vmul.f32 %v2422, 1.4453057
        %v2487 = vmul.f32 %v2423, 1.4453057
        %v2488 = vmul.f32 %v2408, %v2446
        %v2489 = vmul.f32 %v2409, %v2447
        %v2492 = vrot.slane %v2458, 7
        %v2493 = vrot.slane %v2459, 7
        %v2496 = vmul.f32 %v2416, %v2492
        %v2497 = vmul.f32 %v2417, %v2493
        %v2500 = vrot.slane %v2496, 5
        %v2501 = vrot.slane %v2500, 4
        %v2502 = vrot.slane %v2497, 5
        %v2503 = vrot.slane %v2502, 4
        %v2506 = vsub.f32 %v2488, %v2501
        %v2507 = vsub.f32 %v2489, %v2503
        %v2508 = vmul.f32 %v2408, %v2458
        %v2509 = vmul.f32 %v2409, %v2459
        %v2512 = vrot.slane %v2446, 7
        %v2513 = vrot.slane %v2447, 7
        %v2516 = vmul.f32 %v2416, %v2512
        %v2517 = vmul.f32 %v2417, %v2513
        %v2520 = vrot.slane %v2516, 5
        %v2521 = vrot.slane %v2520, 4
        %v2522 = vrot.slane %v2517, 5
        %v2523 = vrot.slane %v2522, 4
        %v2526 = vadd.f32 %v2508, %v2521
        %v2527 = vadd.f32 %v2509, %v2523
        %v2528 = vmul.f32 %v2526, -0.5900436
        %v2529 = vmul.f32 %v2527, -0.5900436
        %v2530 = vrot.slane %v2458, 6
        %v2531 = vrot.slane %v2459, 6
        %v2534 = vmul.f32 %v2486, %v2530
        %v2535 = vmul.f32 %v2487, %v2531
        %v2536 = vmul.f32 %v2484, %v2462
        %v2537 = vmul.f32 %v2485, %v2463
        %v2538 = vmul.f32 %v2430, 1.8658817
        %v2539 = vmul.f32 %v2431, 1.8658817
        %v2540 = vsub.f32 %v2538, 1.119529
        %v2541 = vsub.f32 %v2539, 1.119529
        %v2542 = vmul.f32 %v2422, %v2540
        %v2543 = vmul.f32 %v2423, %v2541
        %v2544 = vmul.f32 %v2484, %v2474
        %v2545 = vmul.f32 %v2485, %v2475
        %v2546 = vrot.slane %v2446, 6
        %v2547 = vrot.slane %v2447, 6
        %v2550 = vmul.f32 %v2486, %v2546
        %v2551 = vmul.f32 %v2487, %v2547
        %v2552 = vmul.f32 %v2506, -0.5900436
        %v2553 = vmul.f32 %v2507, -0.5900436
        %v2556 = vlaneseq
        %v2557 = vshrl.u32 %v2556, 7
        %v2558 = vsub.s32 1, %v2557
        %v2559 = vrot.slane %v2424, %v2558
        %v2560 = vlaneseq
        %v2561 = vshrl.u32 %v2560, 7
        %v2562 = vsub.s32 5, %v2561
        %v2563 = vrot.slane %v2424, %v2562
        %v2564 = vlaneseq
        %v2565 = vshrl.u32 %v2564, 7
        %v2566 = vsub.s32 1, %v2565
        %v2567 = vrot.slane %v2425, %v2566
        %v2568 = vlaneseq
        %v2569 = vshrl.u32 %v2568, 7
        %v2570 = vsub.s32 5, %v2569
        %v2571 = vrot.slane %v2425, %v2570
        %v2578 = vlaneseq
        %v2579 = vshrl.u32 %v2578, 7
        %v2580 = vsub.s32 2, %v2579
        %v2581 = vrot.slane %v2426, %v2580
        %v2582 = vlaneseq
        %v2583 = vshrl.u32 %v2582, 7
        %v2584 = vsub.s32 6, %v2583
        %v2585 = vrot.slane %v2426, %v2584
        %v2586 = vlaneseq
        %v2587 = vshrl.u32 %v2586, 7
        %v2588 = vsub.s32 2, %v2587
        %v2589 = vrot.slane %v2427, %v2588
        %v2590 = vlaneseq
        %v2591 = vshrl.u32 %v2590, 7
        %v2592 = vsub.s32 6, %v2591
        %v2593 = vrot.slane %v2427, %v2592
        %v2600 = vlaneseq
        %v2601 = vshrl.u32 %v2600, 7
        %v2602 = vsub.s32 0, %v2601
        %v2603 = vrot.slane %v2428, %v2602
        %v2604 = vlaneseq
        %v2605 = vshrl.u32 %v2604, 7
        %v2606 = vsub.s32 4, %v2605
        %v2607 = vrot.slane %v2428, %v2606
        %v2608 = vlaneseq
        %v2609 = vshrl.u32 %v2608, 7
        %v2610 = vsub.s32 0, %v2609
        %v2611 = vrot.slane %v2429, %v2610
        %v2612 = vlaneseq
        %v2613 = vshrl.u32 %v2612, 7
        %v2614 = vsub.s32 4, %v2613
        %v2615 = vrot.slane %v2429, %v2614
        %v2622 = vlaneseq
        %v2623 = vshrl.u32 %v2622, 7
        %v2624 = vsub.s32 0, %v2623
        %v2625 = vrot.slane %v2460, %v2624
        %v2626 = vlaneseq
        %v2627 = vshrl.u32 %v2626, 7
        %v2628 = vsub.s32 4, %v2627
        %v2629 = vrot.slane %v2460, %v2628
        %v2630 = vlaneseq
        %v2631 = vshrl.u32 %v2630, 7
        %v2632 = vsub.s32 0, %v2631
        %v2633 = vrot.slane %v2461, %v2632
        %v2634 = vlaneseq
        %v2635 = vshrl.u32 %v2634, 7
        %v2636 = vsub.s32 4, %v2635
        %v2637 = vrot.slane %v2461, %v2636
        %v2644 = vlaneseq
        %v2645 = vshrl.u32 %v2644, 7
        %v2646 = vsub.s32 2, %v2645
        %v2647 = vrot.slane %v2466, %v2646
        %v2648 = vlaneseq
        %v2649 = vshrl.u32 %v2648, 7
        %v2650 = vsub.s32 6, %v2649
        %v2651 = vrot.slane %v2466, %v2650
        %v2652 = vlaneseq
        %v2653 = vshrl.u32 %v2652, 7
        %v2654 = vsub.s32 2, %v2653
        %v2655 = vrot.slane %v2467, %v2654
        %v2656 = vlaneseq
        %v2657 = vshrl.u32 %v2656, 7
        %v2658 = vsub.s32 6, %v2657
        %v2659 = vrot.slane %v2467, %v2658
        %v2666 = vlaneseq
        %v2667 = vshrl.u32 %v2666, 7
        %v2668 = vsub.s32 2, %v2667
        %v2669 = vrot.slane %v2470, %v2668
        %v2670 = vlaneseq
        %v2671 = vshrl.u32 %v2670, 7
        %v2672 = vsub.s32 6, %v2671
        %v2673 = vrot.slane %v2470, %v2672
        %v2674 = vlaneseq
        %v2675 = vshrl.u32 %v2674, 7
        %v2676 = vsub.s32 2, %v2675
        %v2677 = vrot.slane %v2471, %v2676
        %v2678 = vlaneseq
        %v2679 = vshrl.u32 %v2678, 7
        %v2680 = vsub.s32 6, %v2679
        %v2681 = vrot.slane %v2471, %v2680
        %v2688 = vlaneseq
        %v2689 = vshrl.u32 %v2688, 7
        %v2690 = vsub.s32 2, %v2689
        %v2691 = vrot.slane %v2478, %v2690
        %v2692 = vlaneseq
        %v2693 = vshrl.u32 %v2692, 7
        %v2694 = vsub.s32 6, %v2693
        %v2695 = vrot.slane %v2478, %v2694
        %v2696 = vlaneseq
        %v2697 = vshrl.u32 %v2696, 7
        %v2698 = vsub.s32 2, %v2697
        %v2699 = vrot.slane %v2479, %v2698
        %v2700 = vlaneseq
        %v2701 = vshrl.u32 %v2700, 7
        %v2702 = vsub.s32 6, %v2701
        %v2703 = vrot.slane %v2479, %v2702
        %v2710 = vlaneseq
        %v2711 = vshrl.u32 %v2710, 7
        %v2712 = vsub.s32 0, %v2711
        %v2713 = vrot.slane %v2480, %v2712
        %v2714 = vlaneseq
        %v2715 = vshrl.u32 %v2714, 7
        %v2716 = vsub.s32 4, %v2715
        %v2717 = vrot.slane %v2480, %v2716
        %v2718 = vlaneseq
        %v2719 = vshrl.u32 %v2718, 7
        %v2720 = vsub.s32 0, %v2719
        %v2721 = vrot.slane %v2481, %v2720
        %v2722 = vlaneseq
        %v2723 = vshrl.u32 %v2722, 7
        %v2724 = vsub.s32 4, %v2723
        %v2725 = vrot.slane %v2481, %v2724
        %v2732 = vlaneseq
        %v2733 = vshrl.u32 %v2732, 7
        %v2734 = vsub.s32 0, %v2733
        %v2735 = vrot.slane %v2528, %v2734
        %v2736 = vlaneseq
        %v2737 = vshrl.u32 %v2736, 7
        %v2738 = vsub.s32 4, %v2737
        %v2739 = vrot.slane %v2528, %v2738
        %v2740 = vlaneseq
        %v2741 = vshrl.u32 %v2740, 7
        %v2742 = vsub.s32 0, %v2741
        %v2743 = vrot.slane %v2529, %v2742
        %v2744 = vlaneseq
        %v2745 = vshrl.u32 %v2744, 7
        %v2746 = vsub.s32 4, %v2745
        %v2747 = vrot.slane %v2529, %v2746
        %v2754 = vlaneseq
        %v2755 = vshrl.u32 %v2754, 7
        %v2756 = vsub.s32 2, %v2755
        %v2757 = vrot.slane %v2534, %v2756
        %v2758 = vlaneseq
        %v2759 = vshrl.u32 %v2758, 7
        %v2760 = vsub.s32 6, %v2759
        %v2761 = vrot.slane %v2534, %v2760
        %v2762 = vlaneseq
        %v2763 = vshrl.u32 %v2762, 7
        %v2764 = vsub.s32 2, %v2763
        %v2765 = vrot.slane %v2535, %v2764
        %v2766 = vlaneseq
        %v2767 = vshrl.u32 %v2766, 7
        %v2768 = vsub.s32 6, %v2767
        %v2769 = vrot.slane %v2535, %v2768
        %v2776 = vlaneseq
        %v2777 = vshrl.u32 %v2776, 7
        %v2778 = vsub.s32 2, %v2777
        %v2779 = vrot.slane %v2536, %v2778
        %v2780 = vlaneseq
        %v2781 = vshrl.u32 %v2780, 7
        %v2782 = vsub.s32 6, %v2781
        %v2783 = vrot.slane %v2536, %v2782
        %v2784 = vlaneseq
        %v2785 = vshrl.u32 %v2784, 7
        %v2786 = vsub.s32 2, %v2785
        %v2787 = vrot.slane %v2537, %v2786
        %v2788 = vlaneseq
        %v2789 = vshrl.u32 %v2788, 7
        %v2790 = vsub.s32 6, %v2789
        %v2791 = vrot.slane %v2537, %v2790
        %v2798 = vlaneseq
        %v2799 = vshrl.u32 %v2798, 7
        %v2800 = vsub.s32 2, %v2799
        %v2801 = vrot.slane %v2542, %v2800
        %v2802 = vlaneseq
        %v2803 = vshrl.u32 %v2802, 7
        %v2804 = vsub.s32 6, %v2803
        %v2805 = vrot.slane %v2542, %v2804
        %v2806 = vlaneseq
        %v2807 = vshrl.u32 %v2806, 7
        %v2808 = vsub.s32 2, %v2807
        %v2809 = vrot.slane %v2543, %v2808
        %v2810 = vlaneseq
        %v2811 = vshrl.u32 %v2810, 7
        %v2812 = vsub.s32 6, %v2811
        %v2813 = vrot.slane %v2543, %v2812
        %v2820 = vlaneseq
        %v2821 = vshrl.u32 %v2820, 7
        %v2822 = vsub.s32 2, %v2821
        %v2823 = vrot.slane %v2544, %v2822
        %v2824 = vlaneseq
        %v2825 = vshrl.u32 %v2824, 7
        %v2826 = vsub.s32 6, %v2825
        %v2827 = vrot.slane %v2544, %v2826
        %v2828 = vlaneseq
        %v2829 = vshrl.u32 %v2828, 7
        %v2830 = vsub.s32 2, %v2829
        %v2831 = vrot.slane %v2545, %v2830
        %v2832 = vlaneseq
        %v2833 = vshrl.u32 %v2832, 7
        %v2834 = vsub.s32 6, %v2833
        %v2835 = vrot.slane %v2545, %v2834
        %v2842 = vlaneseq
        %v2843 = vshrl.u32 %v2842, 7
        %v2844 = vsub.s32 2, %v2843
        %v2845 = vrot.slane %v2550, %v2844
        %v2846 = vlaneseq
        %v2847 = vshrl.u32 %v2846, 7
        %v2848 = vsub.s32 6, %v2847
        %v2849 = vrot.slane %v2550, %v2848
        %v2850 = vlaneseq
        %v2851 = vshrl.u32 %v2850, 7
        %v2852 = vsub.s32 2, %v2851
        %v2853 = vrot.slane %v2551, %v2852
        %v2854 = vlaneseq
        %v2855 = vshrl.u32 %v2854, 7
        %v2856 = vsub.s32 6, %v2855
        %v2857 = vrot.slane %v2551, %v2856
        %v2864 = vlaneseq
        %v2865 = vshrl.u32 %v2864, 7
        %v2866 = vsub.s32 0, %v2865
        %v2867 = vrot.slane %v2552, %v2866
        %v2868 = vlaneseq
        %v2869 = vshrl.u32 %v2868, 7
        %v2870 = vsub.s32 4, %v2869
        %v2871 = vrot.slane %v2552, %v2870
        %v2872 = vlaneseq
        %v2873 = vshrl.u32 %v2872, 7
        %v2874 = vsub.s32 0, %v2873
        %v2875 = vrot.slane %v2553, %v2874
        %v2876 = vlaneseq
        %v2877 = vshrl.u32 %v2876, 7
        %v2878 = vsub.s32 4, %v2877
        %v2879 = vrot.slane %v2553, %v2878
        %v2884 = vsel %vm1440, 0.2820948, %v2559
        %v2885 = vsel %vm1440, 0.2820948, %v2563
        %v2886 = vsel %vm1440, 0.2820948, %v2567
        %v2887 = vsel %vm1440, 0.2820948, %v2571
        %v2888 = vsel %vm1445, %v2884, %v2581
        %v2889 = vsel %vm1445, %v2885, %v2585
        %v2890 = vsel %vm1445, %v2886, %v2589
        %v2891 = vsel %vm1445, %v2887, %v2593
        %v2892 = vsel %vm1450, %v2888, %v2603
        %v2893 = vsel %vm1450, %v2889, %v2607
        %v2894 = vsel %vm1450, %v2890, %v2611
        %v2895 = vsel %vm1450, %v2891, %v2615
        %v2896 = vsel %vm1455, %v2892, %v2625
        %v2897 = vsel %vm1455, %v2893, %v2629
        %v2898 = vsel %vm1455, %v2894, %v2633
        %v2899 = vsel %vm1455, %v2895, %v2637
        %v2900 = vsel %vm1460, %v2896, %v2647
        %v2901 = vsel %vm1460, %v2897, %v2651
        %v2902 = vsel %vm1460, %v2898, %v2655
        %v2903 = vsel %vm1460, %v2899, %v2659
        %v2904 = vsel %vm1465, %v2900, %v2669
        %v2905 = vsel %vm1465, %v2901, %v2673
        %v2906 = vsel %vm1465, %v2902, %v2677
        %v2907 = vsel %vm1465, %v2903, %v2681
        %v2908 = vsel %vm1470, %v2904, %v2691
        %v2909 = vsel %vm1470, %v2905, %v2695
        %v2910 = vsel %vm1470, %v2906, %v2699
        %v2911 = vsel %vm1470, %v2907, %v2703
        %v2912 = vsel %vm1440, %v2713, %v2735
        %v2913 = vsel %vm1440, %v2717, %v2739
        %v2914 = vsel %vm1440, %v2721, %v2743
        %v2915 = vsel %vm1440, %v2725, %v2747
        %v2916 = vsel %vm1445, %v2912, %v2757
        %v2917 = vsel %vm1445, %v2913, %v2761
        %v2918 = vsel %vm1445, %v2914, %v2765
        %v2919 = vsel %vm1445, %v2915, %v2769
        %v2920 = vsel %vm1450, %v2916, %v2779
        %v2921 = vsel %vm1450, %v2917, %v2783
        %v2922 = vsel %vm1450, %v2918, %v2787
        %v2923 = vsel %vm1450, %v2919, %v2791
        %v2924 = vsel %vm1455, %v2920, %v2801
        %v2925 = vsel %vm1455, %v2921, %v2805
        %v2926 = vsel %vm1455, %v2922, %v2809
        %v2927 = vsel %vm1455, %v2923, %v2813
        %v2928 = vsel %vm1460, %v2924, %v2823
        %v2929 = vsel %vm1460, %v2925, %v2827
        %v2930 = vsel %vm1460, %v2926, %v2831
        %v2931 = vsel %vm1460, %v2927, %v2835
        %v2932 = vsel %vm1465, %v2928, %v2845
        %v2933 = vsel %vm1465, %v2929, %v2849
        %v2934 = vsel %vm1465, %v2930, %v2853
        %v2935 = vsel %vm1465, %v2931, %v2857
        %v2936 = vsel %vm1470, %v2932, %v2867
        %v2937 = vsel %vm1470, %v2933, %v2871
        %v2938 = vsel %vm1470, %v2934, %v2875
        %v2939 = vsel %vm1470, %v2935, %v2879
        %2940 = vmatprep.subr.mxu0 0.0
        %2941 = vmatpush1.msra.mxu0 0.0
        %2942 = vmatprep.subr.mxu0 0.0
        %2943 = vmatpush1.msra.mxu0 0.0
        %2944 = vmatprep.subr.mxu0 0.0
        %2945 = vmatpush1.msra.mxu0 0.0
        %2946 = vmatprep.subr.mxu0 0.0
        %2947 = vmatpush1.msra.mxu0 0.0
        %2948 = vmatprep.subr.mxu0 0.0
        %2949 = vmatpush1.msra.mxu0 0.0
        %2950 = vmatprep.subr.mxu0 0.0
        %2951 = vmatpush1.msra.mxu0 0.0
        %2952 = vmatprep.subr.mxu0 0.0
        %2953 = vmatpush1.msra.mxu0 0.0
        %2954 = vmatprep.subr.mxu0 0.0
        %2955 = vmatpush1.msra.mxu0 0.0
        %2956 = vmatprep.subr.mxu0 0.0
        %2957 = vmatpush1.msra.mxu0 0.0
        %2958 = vmatprep.subr.mxu0 0.0
        %2959 = vmatpush1.msra.mxu0 0.0
        %2960 = vmatprep.subr.mxu0 0.0
        %2961 = vmatpush1.msra.mxu0 0.0
        %2962 = vmatprep.subr.mxu0 0.0
        %2963 = vmatpush1.msra.mxu0 0.0
        %2964 = vmatprep.subr.mxu0 0.0
        %2965 = vmatpush1.msra.mxu0 0.0
        %2966 = vmatprep.subr.mxu0 0.0
        %2967 = vmatpush1.msra.mxu0 0.0
        %2968 = vmatprep.subr.mxu0 %v2937
        %2969 = vmatpush1.msra.mxu0 %v2936
        %2970 = vmatprep.subr.mxu0 %v2909
        %2971 = vmatpush1.msra.mxu0 %v2908
        %2972 = vmatprep.subr.mxu0 0.0
        %2973 = vmatpush2.msra.mxu0 0.0
        %2974 = vmatprep.subr.mxu0 0.0
        %2975 = vmatpush2.msra.mxu0 0.0
        %2976 = vmatprep.subr.mxu0 0.0
        %2977 = vmatpush2.msra.mxu0 0.0
        %2978 = vmatprep.subr.mxu0 0.0
        %2979 = vmatpush2.msra.mxu0 0.0
        %2980 = vmatprep.subr.mxu0 0.0
        %2981 = vmatpush2.msra.mxu0 0.0
        %2982 = vmatprep.subr.mxu0 0.0
        %2983 = vmatpush2.msra.mxu0 0.0
        %2984 = vmatprep.subr.mxu0 0.0
        %2985 = vmatpush2.msra.mxu0 0.0
        %2986 = vmatprep.subr.mxu0 0.0
        %2987 = vmatpush2.msra.mxu0 0.0
        %2988 = vmatprep.subr.mxu0 0.0
        %2989 = vmatpush2.msra.mxu0 0.0
        %2990 = vmatprep.subr.mxu0 0.0
        %2991 = vmatpush2.msra.mxu0 0.0
        %2992 = vmatprep.subr.mxu0 0.0
        %2993 = vmatpush2.msra.mxu0 0.0
        %2994 = vmatprep.subr.mxu0 0.0
        %2995 = vmatpush2.msra.mxu0 0.0
        %2996 = vmatprep.subr.mxu0 0.0
        %2997 = vmatpush2.msra.mxu0 0.0
        %2998 = vmatprep.subr.mxu0 0.0
        %2999 = vmatpush2.msra.mxu0 0.0
        %3000 = vmatprep.subr.mxu0 0.0
        %3001 = vmatpush2.msra.mxu0 0.0
        %3002 = vmatprep.subr.mxu0 0.0
        %3003 = vmatpush2.msra.mxu0 0.0
        %3004 = vmatprep.mubr.f32.mxu0 0.0
        %3005 = vmatmul.mubr.f32.gmra.mxu0 %v1505
        %v3006 = vpop.f32.mrf.mxu0
        %v3007 = vadd.f32 0.0, %v3006
        %v3008 = vpop.f32.mrf.mxu0
        %v3009 = vadd.f32 0.0, %v3008
        %3010 = vmatprep.mubr.f32.mxu0 0.0
        %3011 = vmatmul.mubr.f32.gmra.mxu0 %v1508
        %v3012 = vpop.f32.mrf.mxu0
        %v3013 = vadd.f32 0.0, %v3012
        %v3014 = vpop.f32.mrf.mxu0
        %v3015 = vadd.f32 0.0, %v3014
        %3016 = vmatprep.mubr.f32.mxu0 0.0
        %3017 = vmatmul.mubr.f32.gmra.mxu0 %v1511
        %v3018 = vpop.f32.mrf.mxu0
        %v3019 = vadd.f32 0.0, %v3018
        %v3020 = vpop.f32.mrf.mxu0
        %v3021 = vadd.f32 0.0, %v3020
        %3022 = vmatprep.mubr.f32.mxu0 0.0
        %3023 = vmatmul.mubr.f32.gmra.mxu0 %v1514
        %v3024 = vpop.f32.mrf.mxu0
        %v3025 = vadd.f32 0.0, %v3024
        %v3026 = vpop.f32.mrf.mxu0
        %v3027 = vadd.f32 0.0, %v3026
        %3028 = vmatprep.mubr.f32.mxu0 0.0
        %3029 = vmatmul.mubr.f32.gmra.mxu0 %v1517
        %v3030 = vpop.f32.mrf.mxu0
        %v3031 = vadd.f32 0.0, %v3030
        %v3032 = vpop.f32.mrf.mxu0
        %v3033 = vadd.f32 0.0, %v3032
        %3034 = vmatprep.mubr.f32.mxu0 0.0
        %3035 = vmatmul.mubr.f32.gmra.mxu0 %v1520
        %v3036 = vpop.f32.mrf.mxu0
        %v3037 = vadd.f32 0.0, %v3036
        %v3038 = vpop.f32.mrf.mxu0
        %v3039 = vadd.f32 0.0, %v3038
        %3040 = vmatprep.mubr.f32.mxu0 0.0
        %3041 = vmatmul.mubr.f32.gmra.mxu0 %v1523
        %v3042 = vpop.f32.mrf.mxu0
        %v3043 = vadd.f32 0.0, %v3042
        %v3044 = vpop.f32.mrf.mxu0
        %v3045 = vadd.f32 0.0, %v3044
        %3046 = vmatprep.mubr.f32.mxu0 0.0
        %3047 = vmatmul.mubr.f32.gmra.mxu0 %v1526
        %v3048 = vpop.f32.mrf.mxu0
        %v3049 = vadd.f32 0.0, %v3048
        %v3050 = vpop.f32.mrf.mxu0
        %v3051 = vadd.f32 0.0, %v3050
        %3052 = vdwg.mxu0
        %3053 = vmatprep.subr.mxu0 0.0
        %3054 = vmatpush1.msra.mxu0 0.0
        %3055 = vmatprep.subr.mxu0 0.0
        %3056 = vmatpush1.msra.mxu0 0.0
        %3057 = vmatprep.subr.mxu0 0.0
        %3058 = vmatpush1.msra.mxu0 0.0
        %3059 = vmatprep.subr.mxu0 0.0
        %3060 = vmatpush1.msra.mxu0 0.0
        %3061 = vmatprep.subr.mxu0 0.0
        %3062 = vmatpush1.msra.mxu0 0.0
        %3063 = vmatprep.subr.mxu0 0.0
        %3064 = vmatpush1.msra.mxu0 0.0
        %3065 = vmatprep.subr.mxu0 0.0
        %3066 = vmatpush1.msra.mxu0 0.0
        %3067 = vmatprep.subr.mxu0 0.0
        %3068 = vmatpush1.msra.mxu0 0.0
        %3069 = vmatprep.subr.mxu0 0.0
        %3070 = vmatpush1.msra.mxu0 0.0
        %3071 = vmatprep.subr.mxu0 0.0
        %3072 = vmatpush1.msra.mxu0 0.0
        %3073 = vmatprep.subr.mxu0 0.0
        %3074 = vmatpush1.msra.mxu0 0.0
        %3075 = vmatprep.subr.mxu0 0.0
        %3076 = vmatpush1.msra.mxu0 0.0
        %3077 = vmatprep.subr.mxu0 0.0
        %3078 = vmatpush1.msra.mxu0 0.0
        %3079 = vmatprep.subr.mxu0 0.0
        %3080 = vmatpush1.msra.mxu0 0.0
        %3081 = vmatprep.subr.mxu0 %v2939
        %3082 = vmatpush1.msra.mxu0 %v2938
        %3083 = vmatprep.subr.mxu0 %v2911
        %3084 = vmatpush1.msra.mxu0 %v2910
        %3085 = vmatprep.subr.mxu0 0.0
        %3086 = vmatpush2.msra.mxu0 0.0
        %3087 = vmatprep.subr.mxu0 0.0
        %3088 = vmatpush2.msra.mxu0 0.0
        %3089 = vmatprep.subr.mxu0 0.0
        %3090 = vmatpush2.msra.mxu0 0.0
        %3091 = vmatprep.subr.mxu0 0.0
        %3092 = vmatpush2.msra.mxu0 0.0
        %3093 = vmatprep.subr.mxu0 0.0
        %3094 = vmatpush2.msra.mxu0 0.0
        %3095 = vmatprep.subr.mxu0 0.0
        %3096 = vmatpush2.msra.mxu0 0.0
        %3097 = vmatprep.subr.mxu0 0.0
        %3098 = vmatpush2.msra.mxu0 0.0
        %3099 = vmatprep.subr.mxu0 0.0
        %3100 = vmatpush2.msra.mxu0 0.0
        %3101 = vmatprep.subr.mxu0 0.0
        %3102 = vmatpush2.msra.mxu0 0.0
        %3103 = vmatprep.subr.mxu0 0.0
        %3104 = vmatpush2.msra.mxu0 0.0
        %3105 = vmatprep.subr.mxu0 0.0
        %3106 = vmatpush2.msra.mxu0 0.0
        %3107 = vmatprep.subr.mxu0 0.0
        %3108 = vmatpush2.msra.mxu0 0.0
        %3109 = vmatprep.subr.mxu0 0.0
        %3110 = vmatpush2.msra.mxu0 0.0
        %3111 = vmatprep.subr.mxu0 0.0
        %3112 = vmatpush2.msra.mxu0 0.0
        %3113 = vmatprep.subr.mxu0 0.0
        %3114 = vmatpush2.msra.mxu0 0.0
        %3115 = vmatprep.subr.mxu0 0.0
        %3116 = vmatpush2.msra.mxu0 0.0
        %3117 = vmatprep.mubr.f32.mxu0 0.0
        %3118 = vmatmul.mubr.f32.gmra.mxu0 %v1505
        %v3119 = vpop.f32.mrf.mxu0
        %v3120 = vadd.f32 0.0, %v3119
        %v3121 = vpop.f32.mrf.mxu0
        %v3122 = vadd.f32 0.0, %v3121
        %3123 = vmatprep.mubr.f32.mxu0 0.0
        %3124 = vmatmul.mubr.f32.gmra.mxu0 %v1508
        %v3125 = vpop.f32.mrf.mxu0
        %v3126 = vadd.f32 0.0, %v3125
        %v3127 = vpop.f32.mrf.mxu0
        %v3128 = vadd.f32 0.0, %v3127
        %3129 = vmatprep.mubr.f32.mxu0 0.0
        %3130 = vmatmul.mubr.f32.gmra.mxu0 %v1511
        %v3131 = vpop.f32.mrf.mxu0
        %v3132 = vadd.f32 0.0, %v3131
        %v3133 = vpop.f32.mrf.mxu0
        %v3134 = vadd.f32 0.0, %v3133
        %3135 = vmatprep.mubr.f32.mxu0 0.0
        %3136 = vmatmul.mubr.f32.gmra.mxu0 %v1514
        %v3137 = vpop.f32.mrf.mxu0
        %v3138 = vadd.f32 0.0, %v3137
        %v3139 = vpop.f32.mrf.mxu0
        %v3140 = vadd.f32 0.0, %v3139
        %3141 = vmatprep.mubr.f32.mxu0 0.0
        %3142 = vmatmul.mubr.f32.gmra.mxu0 %v1517
        %v3143 = vpop.f32.mrf.mxu0
        %v3144 = vadd.f32 0.0, %v3143
        %v3145 = vpop.f32.mrf.mxu0
        %v3146 = vadd.f32 0.0, %v3145
        %3147 = vmatprep.mubr.f32.mxu0 0.0
        %3148 = vmatmul.mubr.f32.gmra.mxu0 %v1520
        %v3149 = vpop.f32.mrf.mxu0
        %v3150 = vadd.f32 0.0, %v3149
        %v3151 = vpop.f32.mrf.mxu0
        %v3152 = vadd.f32 0.0, %v3151
        %3153 = vmatprep.mubr.f32.mxu0 0.0
        %3154 = vmatmul.mubr.f32.gmra.mxu0 %v1523
        %v3155 = vpop.f32.mrf.mxu0
        %v3156 = vadd.f32 0.0, %v3155
        %v3157 = vpop.f32.mrf.mxu0
        %v3158 = vadd.f32 0.0, %v3157
        %3159 = vmatprep.mubr.f32.mxu0 0.0
        %3160 = vmatmul.mubr.f32.gmra.mxu0 %v1526
        %v3161 = vpop.f32.mrf.mxu0
        %v3162 = vadd.f32 0.0, %v3161
        %v3163 = vpop.f32.mrf.mxu0
        %v3164 = vadd.f32 0.0, %v3163
        %3165 = vdwg.mxu0
        %v3166 = vadd.f32 %v753, %v3007
        %v3167 = vadd.f32 %v755, %v3009
        %v3168 = vadd.f32 %v866, %v3120
        %v3169 = vadd.f32 %v868, %v3122
        %v3170 = vadd.f32 %v759, %v3013
        %v3171 = vadd.f32 %v761, %v3015
        %v3172 = vadd.f32 %v872, %v3126
        %v3173 = vadd.f32 %v874, %v3128
        %v3174 = vadd.f32 %v765, %v3019
        %v3175 = vadd.f32 %v767, %v3021
        %v3176 = vadd.f32 %v878, %v3132
        %v3177 = vadd.f32 %v880, %v3134
        %v3178 = vadd.f32 %v771, %v3025
        %v3179 = vadd.f32 %v773, %v3027
        %v3180 = vadd.f32 %v884, %v3138
        %v3181 = vadd.f32 %v886, %v3140
        %v3182 = vadd.f32 %v777, %v3031
        %v3183 = vadd.f32 %v779, %v3033
        %v3184 = vadd.f32 %v890, %v3144
        %v3185 = vadd.f32 %v892, %v3146
        %v3186 = vadd.f32 %v783, %v3037
        %v3187 = vadd.f32 %v785, %v3039
        %v3188 = vadd.f32 %v896, %v3150
        %v3189 = vadd.f32 %v898, %v3152
        %v3190 = vadd.f32 %v789, %v3043
        %v3191 = vadd.f32 %v791, %v3045
        %v3192 = vadd.f32 %v902, %v3156
        %v3193 = vadd.f32 %v904, %v3158
        %v3194 = vadd.f32 %v795, %v3049
        %v3195 = vadd.f32 %v797, %v3051
        %v3196 = vadd.f32 %v908, %v3162
        %v3197 = vadd.f32 %v910, %v3164
        %s3198 = scalar_lea.vmem %s0, 64
        %v3199 = vld [vmem:[%s3198] sm:$0xff]
        %v3200 = vld [vmem:[%s3198 + $0x8] sm:$0xff]
        %v3201 = vld [vmem:[%s3198 + $0x10] sm:$0xff]
        %v3202 = vld [vmem:[%s3198 + $0x18] sm:$0xff]
        %v3203 = vld [vmem:[%s3198 + $0x20] sm:$0xff]
        %v3204 = vld [vmem:[%s3198 + $0x28] sm:$0xff]
        %v3205 = vld [vmem:[%s3198 + $0x30] sm:$0xff]
        %v3206 = vld [vmem:[%s3198 + $0x38] sm:$0xff]
        %3208 = vset.pattern.permute.xlu0 0
        %3209 = vperm.xlu0 %3208, %v3199
        %v3210 = vpop.permute.xlu0 %3209
        %3213 = vset.pattern.permute.xlu0 0
        %3214 = vperm.xlu0 %3213, %v3200
        %v3215 = vpop.permute.xlu0 %3214
        %3218 = vset.pattern.permute.xlu0 0
        %3219 = vperm.xlu0 %3218, %v3201
        %v3220 = vpop.permute.xlu0 %3219
        %3223 = vset.pattern.permute.xlu0 0
        %3224 = vperm.xlu0 %3223, %v3202
        %v3225 = vpop.permute.xlu0 %3224
        %3228 = vset.pattern.permute.xlu0 0
        %3229 = vperm.xlu0 %3228, %v3203
        %v3230 = vpop.permute.xlu0 %3229
        %3233 = vset.pattern.permute.xlu0 0
        %3234 = vperm.xlu0 %3233, %v3204
        %v3235 = vpop.permute.xlu0 %3234
        %3238 = vset.pattern.permute.xlu0 0
        %3239 = vperm.xlu0 %3238, %v3205
        %v3240 = vpop.permute.xlu0 %3239
        %3243 = vset.pattern.permute.xlu0 0
        %3244 = vperm.xlu0 %3243, %v3206
        %v3245 = vpop.permute.xlu0 %3244
        %v3247 = vadd.f32 %v3166, %v3210
        %v3248 = vadd.f32 %v3167, %v3210
        %v3249 = vadd.f32 %v3168, %v3210
        %v3250 = vadd.f32 %v3169, %v3210
        %v3251 = vadd.f32 %v3170, %v3215
        %v3252 = vadd.f32 %v3171, %v3215
        %v3253 = vadd.f32 %v3172, %v3215
        %v3254 = vadd.f32 %v3173, %v3215
        %v3255 = vadd.f32 %v3174, %v3220
        %v3256 = vadd.f32 %v3175, %v3220
        %v3257 = vadd.f32 %v3176, %v3220
        %v3258 = vadd.f32 %v3177, %v3220
        %v3259 = vadd.f32 %v3178, %v3225
        %v3260 = vadd.f32 %v3179, %v3225
        %v3261 = vadd.f32 %v3180, %v3225
        %v3262 = vadd.f32 %v3181, %v3225
        %v3263 = vadd.f32 %v3182, %v3230
        %v3264 = vadd.f32 %v3183, %v3230
        %v3265 = vadd.f32 %v3184, %v3230
        %v3266 = vadd.f32 %v3185, %v3230
        %v3267 = vadd.f32 %v3186, %v3235
        %v3268 = vadd.f32 %v3187, %v3235
        %v3269 = vadd.f32 %v3188, %v3235
        %v3270 = vadd.f32 %v3189, %v3235
        %v3271 = vadd.f32 %v3190, %v3240
        %v3272 = vadd.f32 %v3191, %v3240
        %v3273 = vadd.f32 %v3192, %v3240
        %v3274 = vadd.f32 %v3193, %v3240
        %v3275 = vadd.f32 %v3194, %v3245
        %v3276 = vadd.f32 %v3195, %v3245
        %v3277 = vadd.f32 %v3196, %v3245
        %v3278 = vadd.f32 %v3197, %v3245
        %v3279 = vmax.f32 %v3247, 0.0
        %v3280 = vmax.f32 %v3248, 0.0
        %v3281 = vmax.f32 %v3249, 0.0
        %v3282 = vmax.f32 %v3250, 0.0
        %v3283 = vmax.f32 %v3251, 0.0
        %v3284 = vmax.f32 %v3252, 0.0
        %v3285 = vmax.f32 %v3253, 0.0
        %v3286 = vmax.f32 %v3254, 0.0
        %v3287 = vmax.f32 %v3255, 0.0
        %v3288 = vmax.f32 %v3256, 0.0
        %v3289 = vmax.f32 %v3257, 0.0
        %v3290 = vmax.f32 %v3258, 0.0
        %v3291 = vmax.f32 %v3259, 0.0
        %v3292 = vmax.f32 %v3260, 0.0
        %v3293 = vmax.f32 %v3261, 0.0
        %v3294 = vmax.f32 %v3262, 0.0
        %v3295 = vmax.f32 %v3263, 0.0
        %v3296 = vmax.f32 %v3264, 0.0
        %v3297 = vmax.f32 %v3265, 0.0
        %v3298 = vmax.f32 %v3266, 0.0
        %v3299 = vmax.f32 %v3267, 0.0
        %v3300 = vmax.f32 %v3268, 0.0
        %v3301 = vmax.f32 %v3269, 0.0
        %v3302 = vmax.f32 %v3270, 0.0
        %v3303 = vmax.f32 %v3271, 0.0
        %v3304 = vmax.f32 %v3272, 0.0
        %v3305 = vmax.f32 %v3273, 0.0
        %v3306 = vmax.f32 %v3274, 0.0
        %v3307 = vmax.f32 %v3275, 0.0
        %v3308 = vmax.f32 %v3276, 0.0
        %v3309 = vmax.f32 %v3277, 0.0
        %v3310 = vmax.f32 %v3278, 0.0
        %3311 = vmatprep.subr.mxu0 0.0
        %3312 = vmatpush1.msra.mxu0 0.0
        %3313 = vmatprep.subr.mxu0 0.0
        %3314 = vmatpush1.msra.mxu0 0.0
        %3315 = vmatprep.subr.mxu0 0.0
        %3316 = vmatpush1.msra.mxu0 0.0
        %3317 = vmatprep.subr.mxu0 0.0
        %3318 = vmatpush1.msra.mxu0 0.0
        %3319 = vmatprep.subr.mxu0 0.0
        %3320 = vmatpush1.msra.mxu0 0.0
        %3321 = vmatprep.subr.mxu0 0.0
        %3322 = vmatpush1.msra.mxu0 0.0
        %3323 = vmatprep.subr.mxu0 0.0
        %3324 = vmatpush1.msra.mxu0 0.0
        %3325 = vmatprep.subr.mxu0 0.0
        %3326 = vmatpush1.msra.mxu0 0.0
        %3327 = vmatprep.subr.mxu0 %v3308
        %3328 = vmatpush1.msra.mxu0 %v3307
        %3329 = vmatprep.subr.mxu0 %v3304
        %3330 = vmatpush1.msra.mxu0 %v3303
        %3331 = vmatprep.subr.mxu0 %v3300
        %3332 = vmatpush1.msra.mxu0 %v3299
        %3333 = vmatprep.subr.mxu0 %v3296
        %3334 = vmatpush1.msra.mxu0 %v3295
        %3335 = vmatprep.subr.mxu0 %v3292
        %3336 = vmatpush1.msra.mxu0 %v3291
        %3337 = vmatprep.subr.mxu0 %v3288
        %3338 = vmatpush1.msra.mxu0 %v3287
        %3339 = vmatprep.subr.mxu0 %v3284
        %3340 = vmatpush1.msra.mxu0 %v3283
        %3341 = vmatprep.subr.mxu0 %v3280
        %3342 = vmatpush1.msra.mxu0 %v3279
        %3343 = vmatprep.subr.mxu0 0.0
        %3344 = vmatpush2.msra.mxu0 0.0
        %3345 = vmatprep.subr.mxu0 0.0
        %3346 = vmatpush2.msra.mxu0 0.0
        %3347 = vmatprep.subr.mxu0 0.0
        %3348 = vmatpush2.msra.mxu0 0.0
        %3349 = vmatprep.subr.mxu0 0.0
        %3350 = vmatpush2.msra.mxu0 0.0
        %3351 = vmatprep.subr.mxu0 0.0
        %3352 = vmatpush2.msra.mxu0 0.0
        %3353 = vmatprep.subr.mxu0 0.0
        %3354 = vmatpush2.msra.mxu0 0.0
        %3355 = vmatprep.subr.mxu0 0.0
        %3356 = vmatpush2.msra.mxu0 0.0
        %3357 = vmatprep.subr.mxu0 0.0
        %3358 = vmatpush2.msra.mxu0 0.0
        %3359 = vmatprep.subr.mxu0 0.0
        %3360 = vmatpush2.msra.mxu0 0.0
        %3361 = vmatprep.subr.mxu0 0.0
        %3362 = vmatpush2.msra.mxu0 0.0
        %3363 = vmatprep.subr.mxu0 0.0
        %3364 = vmatpush2.msra.mxu0 0.0
        %3365 = vmatprep.subr.mxu0 0.0
        %3366 = vmatpush2.msra.mxu0 0.0
        %3367 = vmatprep.subr.mxu0 0.0
        %3368 = vmatpush2.msra.mxu0 0.0
        %3369 = vmatprep.subr.mxu0 0.0
        %3370 = vmatpush2.msra.mxu0 0.0
        %3371 = vmatprep.subr.mxu0 0.0
        %3372 = vmatpush2.msra.mxu0 0.0
        %3373 = vmatprep.subr.mxu0 0.0
        %3374 = vmatpush2.msra.mxu0 0.0
        %3375 = vmatprep.mubr.f32.mxu0 0.0
        %3376 = vmatmul.mubr.f32.gmra.mxu0 %v1940
        %v3377 = vpop.f32.mrf.mxu0
        %v3378 = vadd.f32 %v1901, %v3377
        %v3379 = vpop.f32.mrf.mxu0
        %v3380 = vadd.f32 %v1901, %v3379
        %3381 = vmatprep.mubr.f32.mxu0 0.0
        %3382 = vmatmul.mubr.f32.gmra.mxu0 %v1943
        %v3383 = vpop.f32.mrf.mxu0
        %v3384 = vadd.f32 %v1906, %v3383
        %v3385 = vpop.f32.mrf.mxu0
        %v3386 = vadd.f32 %v1906, %v3385
        %3387 = vmatprep.mubr.f32.mxu0 0.0
        %3388 = vmatmul.mubr.f32.gmra.mxu0 %v1946
        %v3389 = vpop.f32.mrf.mxu0
        %v3390 = vadd.f32 %v1911, %v3389
        %v3391 = vpop.f32.mrf.mxu0
        %v3392 = vadd.f32 %v1911, %v3391
        %3393 = vmatprep.mubr.f32.mxu0 0.0
        %3394 = vmatmul.mubr.f32.gmra.mxu0 %v1949
        %v3395 = vpop.f32.mrf.mxu0
        %v3396 = vadd.f32 %v1916, %v3395
        %v3397 = vpop.f32.mrf.mxu0
        %v3398 = vadd.f32 %v1916, %v3397
        %3399 = vmatprep.mubr.f32.mxu0 0.0
        %3400 = vmatmul.mubr.f32.gmra.mxu0 %v1952
        %v3401 = vpop.f32.mrf.mxu0
        %v3402 = vadd.f32 %v1921, %v3401
        %v3403 = vpop.f32.mrf.mxu0
        %v3404 = vadd.f32 %v1921, %v3403
        %3405 = vmatprep.mubr.f32.mxu0 0.0
        %3406 = vmatmul.mubr.f32.gmra.mxu0 %v1955
        %v3407 = vpop.f32.mrf.mxu0
        %v3408 = vadd.f32 %v1926, %v3407
        %v3409 = vpop.f32.mrf.mxu0
        %v3410 = vadd.f32 %v1926, %v3409
        %3411 = vmatprep.mubr.f32.mxu0 0.0
        %3412 = vmatmul.mubr.f32.gmra.mxu0 %v1958
        %v3413 = vpop.f32.mrf.mxu0
        %v3414 = vadd.f32 %v1931, %v3413
        %v3415 = vpop.f32.mrf.mxu0
        %v3416 = vadd.f32 %v1931, %v3415
        %3417 = vmatprep.mubr.f32.mxu0 0.0
        %3418 = vmatmul.mubr.f32.gmra.mxu0 %v1961
        %v3419 = vpop.f32.mrf.mxu0
        %v3420 = vadd.f32 %v1936, %v3419
        %v3421 = vpop.f32.mrf.mxu0
        %v3422 = vadd.f32 %v1936, %v3421
        %3423 = vdwg.mxu0
        %3424 = vmatprep.subr.mxu0 0.0
        %3425 = vmatpush1.msra.mxu0 0.0
        %3426 = vmatprep.subr.mxu0 0.0
        %3427 = vmatpush1.msra.mxu0 0.0
        %3428 = vmatprep.subr.mxu0 0.0
        %3429 = vmatpush1.msra.mxu0 0.0
        %3430 = vmatprep.subr.mxu0 0.0
        %3431 = vmatpush1.msra.mxu0 0.0
        %3432 = vmatprep.subr.mxu0 0.0
        %3433 = vmatpush1.msra.mxu0 0.0
        %3434 = vmatprep.subr.mxu0 0.0
        %3435 = vmatpush1.msra.mxu0 0.0
        %3436 = vmatprep.subr.mxu0 0.0
        %3437 = vmatpush1.msra.mxu0 0.0
        %3438 = vmatprep.subr.mxu0 0.0
        %3439 = vmatpush1.msra.mxu0 0.0
        %3440 = vmatprep.subr.mxu0 %v3310
        %3441 = vmatpush1.msra.mxu0 %v3309
        %3442 = vmatprep.subr.mxu0 %v3306
        %3443 = vmatpush1.msra.mxu0 %v3305
        %3444 = vmatprep.subr.mxu0 %v3302
        %3445 = vmatpush1.msra.mxu0 %v3301
        %3446 = vmatprep.subr.mxu0 %v3298
        %3447 = vmatpush1.msra.mxu0 %v3297
        %3448 = vmatprep.subr.mxu0 %v3294
        %3449 = vmatpush1.msra.mxu0 %v3293
        %3450 = vmatprep.subr.mxu0 %v3290
        %3451 = vmatpush1.msra.mxu0 %v3289
        %3452 = vmatprep.subr.mxu0 %v3286
        %3453 = vmatpush1.msra.mxu0 %v3285
        %3454 = vmatprep.subr.mxu0 %v3282
        %3455 = vmatpush1.msra.mxu0 %v3281
        %3456 = vmatprep.subr.mxu0 0.0
        %3457 = vmatpush2.msra.mxu0 0.0
        %3458 = vmatprep.subr.mxu0 0.0
        %3459 = vmatpush2.msra.mxu0 0.0
        %3460 = vmatprep.subr.mxu0 0.0
        %3461 = vmatpush2.msra.mxu0 0.0
        %3462 = vmatprep.subr.mxu0 0.0
        %3463 = vmatpush2.msra.mxu0 0.0
        %3464 = vmatprep.subr.mxu0 0.0
        %3465 = vmatpush2.msra.mxu0 0.0
        %3466 = vmatprep.subr.mxu0 0.0
        %3467 = vmatpush2.msra.mxu0 0.0
        %3468 = vmatprep.subr.mxu0 0.0
        %3469 = vmatpush2.msra.mxu0 0.0
        %3470 = vmatprep.subr.mxu0 0.0
        %3471 = vmatpush2.msra.mxu0 0.0
        %3472 = vmatprep.subr.mxu0 0.0
        %3473 = vmatpush2.msra.mxu0 0.0
        %3474 = vmatprep.subr.mxu0 0.0
        %3475 = vmatpush2.msra.mxu0 0.0
        %3476 = vmatprep.subr.mxu0 0.0
        %3477 = vmatpush2.msra.mxu0 0.0
        %3478 = vmatprep.subr.mxu0 0.0
        %3479 = vmatpush2.msra.mxu0 0.0
        %3480 = vmatprep.subr.mxu0 0.0
        %3481 = vmatpush2.msra.mxu0 0.0
        %3482 = vmatprep.subr.mxu0 0.0
        %3483 = vmatpush2.msra.mxu0 0.0
        %3484 = vmatprep.subr.mxu0 0.0
        %3485 = vmatpush2.msra.mxu0 0.0
        %3486 = vmatprep.subr.mxu0 0.0
        %3487 = vmatpush2.msra.mxu0 0.0
        %3488 = vmatprep.mubr.f32.mxu0 0.0
        %3489 = vmatmul.mubr.f32.gmra.mxu0 %v1940
        %v3490 = vpop.f32.mrf.mxu0
        %v3491 = vadd.f32 %v1901, %v3490
        %v3492 = vpop.f32.mrf.mxu0
        %v3493 = vadd.f32 %v1901, %v3492
        %3494 = vmatprep.mubr.f32.mxu0 0.0
        %3495 = vmatmul.mubr.f32.gmra.mxu0 %v1943
        %v3496 = vpop.f32.mrf.mxu0
        %v3497 = vadd.f32 %v1906, %v3496
        %v3498 = vpop.f32.mrf.mxu0
        %v3499 = vadd.f32 %v1906, %v3498
        %3500 = vmatprep.mubr.f32.mxu0 0.0
        %3501 = vmatmul.mubr.f32.gmra.mxu0 %v1946
        %v3502 = vpop.f32.mrf.mxu0
        %v3503 = vadd.f32 %v1911, %v3502
        %v3504 = vpop.f32.mrf.mxu0
        %v3505 = vadd.f32 %v1911, %v3504
        %3506 = vmatprep.mubr.f32.mxu0 0.0
        %3507 = vmatmul.mubr.f32.gmra.mxu0 %v1949
        %v3508 = vpop.f32.mrf.mxu0
        %v3509 = vadd.f32 %v1916, %v3508
        %v3510 = vpop.f32.mrf.mxu0
        %v3511 = vadd.f32 %v1916, %v3510
        %3512 = vmatprep.mubr.f32.mxu0 0.0
        %3513 = vmatmul.mubr.f32.gmra.mxu0 %v1952
        %v3514 = vpop.f32.mrf.mxu0
        %v3515 = vadd.f32 %v1921, %v3514
        %v3516 = vpop.f32.mrf.mxu0
        %v3517 = vadd.f32 %v1921, %v3516
        %3518 = vmatprep.mubr.f32.mxu0 0.0
        %3519 = vmatmul.mubr.f32.gmra.mxu0 %v1955
        %v3520 = vpop.f32.mrf.mxu0
        %v3521 = vadd.f32 %v1926, %v3520
        %v3522 = vpop.f32.mrf.mxu0
        %v3523 = vadd.f32 %v1926, %v3522
        %3524 = vmatprep.mubr.f32.mxu0 0.0
        %3525 = vmatmul.mubr.f32.gmra.mxu0 %v1958
        %v3526 = vpop.f32.mrf.mxu0
        %v3527 = vadd.f32 %v1931, %v3526
        %v3528 = vpop.f32.mrf.mxu0
        %v3529 = vadd.f32 %v1931, %v3528
        %3530 = vmatprep.mubr.f32.mxu0 0.0
        %3531 = vmatmul.mubr.f32.gmra.mxu0 %v1961
        %v3532 = vpop.f32.mrf.mxu0
        %v3533 = vadd.f32 %v1936, %v3532
        %v3534 = vpop.f32.mrf.mxu0
        %v3535 = vadd.f32 %v1936, %v3534
        %3536 = vdwg.mxu0
        %v3537 = vmax.f32 %v3378, 0.0
        %v3538 = vmax.f32 %v3380, 0.0
        %v3539 = vmax.f32 %v3491, 0.0
        %v3540 = vmax.f32 %v3493, 0.0
        %v3541 = vmax.f32 %v3384, 0.0
        %v3542 = vmax.f32 %v3386, 0.0
        %v3543 = vmax.f32 %v3497, 0.0
        %v3544 = vmax.f32 %v3499, 0.0
        %v3545 = vmax.f32 %v3390, 0.0
        %v3546 = vmax.f32 %v3392, 0.0
        %v3547 = vmax.f32 %v3503, 0.0
        %v3548 = vmax.f32 %v3505, 0.0
        %v3549 = vmax.f32 %v3396, 0.0
        %v3550 = vmax.f32 %v3398, 0.0
        %v3551 = vmax.f32 %v3509, 0.0
        %v3552 = vmax.f32 %v3511, 0.0
        %v3553 = vmax.f32 %v3402, 0.0
        %v3554 = vmax.f32 %v3404, 0.0
        %v3555 = vmax.f32 %v3515, 0.0
        %v3556 = vmax.f32 %v3517, 0.0
        %v3557 = vmax.f32 %v3408, 0.0
        %v3558 = vmax.f32 %v3410, 0.0
        %v3559 = vmax.f32 %v3521, 0.0
        %v3560 = vmax.f32 %v3523, 0.0
        %v3561 = vmax.f32 %v3414, 0.0
        %v3562 = vmax.f32 %v3416, 0.0
        %v3563 = vmax.f32 %v3527, 0.0
        %v3564 = vmax.f32 %v3529, 0.0
        %v3565 = vmax.f32 %v3420, 0.0
        %v3566 = vmax.f32 %v3422, 0.0
        %v3567 = vmax.f32 %v3533, 0.0
        %v3568 = vmax.f32 %v3535, 0.0
        %3569 = vmatprep.subr.mxu0 0.0
        %3570 = vmatpush1.msra.mxu0 0.0
        %3571 = vmatprep.subr.mxu0 0.0
        %3572 = vmatpush1.msra.mxu0 0.0
        %3573 = vmatprep.subr.mxu0 0.0
        %3574 = vmatpush1.msra.mxu0 0.0
        %3575 = vmatprep.subr.mxu0 0.0
        %3576 = vmatpush1.msra.mxu0 0.0
        %3577 = vmatprep.subr.mxu0 0.0
        %3578 = vmatpush1.msra.mxu0 0.0
        %3579 = vmatprep.subr.mxu0 0.0
        %3580 = vmatpush1.msra.mxu0 0.0
        %3581 = vmatprep.subr.mxu0 0.0
        %3582 = vmatpush1.msra.mxu0 0.0
        %3583 = vmatprep.subr.mxu0 0.0
        %3584 = vmatpush1.msra.mxu0 0.0
        %3585 = vmatprep.subr.mxu0 %v3566
        %3586 = vmatpush1.msra.mxu0 %v3565
        %3587 = vmatprep.subr.mxu0 %v3562
        %3588 = vmatpush1.msra.mxu0 %v3561
        %3589 = vmatprep.subr.mxu0 %v3558
        %3590 = vmatpush1.msra.mxu0 %v3557
        %3591 = vmatprep.subr.mxu0 %v3554
        %3592 = vmatpush1.msra.mxu0 %v3553
        %3593 = vmatprep.subr.mxu0 %v3550
        %3594 = vmatpush1.msra.mxu0 %v3549
        %3595 = vmatprep.subr.mxu0 %v3546
        %3596 = vmatpush1.msra.mxu0 %v3545
        %3597 = vmatprep.subr.mxu0 %v3542
        %3598 = vmatpush1.msra.mxu0 %v3541
        %3599 = vmatprep.subr.mxu0 %v3538
        %3600 = vmatpush1.msra.mxu0 %v3537
        %3601 = vmatprep.subr.mxu0 0.0
        %3602 = vmatpush2.msra.mxu0 0.0
        %3603 = vmatprep.subr.mxu0 0.0
        %3604 = vmatpush2.msra.mxu0 0.0
        %3605 = vmatprep.subr.mxu0 0.0
        %3606 = vmatpush2.msra.mxu0 0.0
        %3607 = vmatprep.subr.mxu0 0.0
        %3608 = vmatpush2.msra.mxu0 0.0
        %3609 = vmatprep.subr.mxu0 0.0
        %3610 = vmatpush2.msra.mxu0 0.0
        %3611 = vmatprep.subr.mxu0 0.0
        %3612 = vmatpush2.msra.mxu0 0.0
        %3613 = vmatprep.subr.mxu0 0.0
        %3614 = vmatpush2.msra.mxu0 0.0
        %3615 = vmatprep.subr.mxu0 0.0
        %3616 = vmatpush2.msra.mxu0 0.0
        %3617 = vmatprep.subr.mxu0 0.0
        %3618 = vmatpush2.msra.mxu0 0.0
        %3619 = vmatprep.subr.mxu0 0.0
        %3620 = vmatpush2.msra.mxu0 0.0
        %3621 = vmatprep.subr.mxu0 0.0
        %3622 = vmatpush2.msra.mxu0 0.0
        %3623 = vmatprep.subr.mxu0 0.0
        %3624 = vmatpush2.msra.mxu0 0.0
        %3625 = vmatprep.subr.mxu0 0.0
        %3626 = vmatpush2.msra.mxu0 0.0
        %3627 = vmatprep.subr.mxu0 0.0
        %3628 = vmatpush2.msra.mxu0 0.0
        %3629 = vmatprep.subr.mxu0 0.0
        %3630 = vmatpush2.msra.mxu0 0.0
        %3631 = vmatprep.subr.mxu0 0.0
        %3632 = vmatpush2.msra.mxu0 0.0
        %3633 = vmatprep.mubr.f32.mxu0 0.0
        %3634 = vmatmul.mubr.f32.gmra.mxu0 %v2227
        %v3635 = vpop.f32.mrf.mxu0
        %v3636 = vadd.f32 %v2224, %v3635
        %v3637 = vpop.f32.mrf.mxu0
        %v3638 = vadd.f32 %v2224, %v3637
        %3639 = vdwg.mxu0
        %3640 = vmatprep.subr.mxu0 0.0
        %3641 = vmatpush1.msra.mxu0 0.0
        %3642 = vmatprep.subr.mxu0 0.0
        %3643 = vmatpush1.msra.mxu0 0.0
        %3644 = vmatprep.subr.mxu0 0.0
        %3645 = vmatpush1.msra.mxu0 0.0
        %3646 = vmatprep.subr.mxu0 0.0
        %3647 = vmatpush1.msra.mxu0 0.0
        %3648 = vmatprep.subr.mxu0 0.0
        %3649 = vmatpush1.msra.mxu0 0.0
        %3650 = vmatprep.subr.mxu0 0.0
        %3651 = vmatpush1.msra.mxu0 0.0
        %3652 = vmatprep.subr.mxu0 0.0
        %3653 = vmatpush1.msra.mxu0 0.0
        %3654 = vmatprep.subr.mxu0 0.0
        %3655 = vmatpush1.msra.mxu0 0.0
        %3656 = vmatprep.subr.mxu0 %v3568
        %3657 = vmatpush1.msra.mxu0 %v3567
        %3658 = vmatprep.subr.mxu0 %v3564
        %3659 = vmatpush1.msra.mxu0 %v3563
        %3660 = vmatprep.subr.mxu0 %v3560
        %3661 = vmatpush1.msra.mxu0 %v3559
        %3662 = vmatprep.subr.mxu0 %v3556
        %3663 = vmatpush1.msra.mxu0 %v3555
        %3664 = vmatprep.subr.mxu0 %v3552
        %3665 = vmatpush1.msra.mxu0 %v3551
        %3666 = vmatprep.subr.mxu0 %v3548
        %3667 = vmatpush1.msra.mxu0 %v3547
        %3668 = vmatprep.subr.mxu0 %v3544
        %3669 = vmatpush1.msra.mxu0 %v3543
        %3670 = vmatprep.subr.mxu0 %v3540
        %3671 = vmatpush1.msra.mxu0 %v3539
        %3672 = vmatprep.subr.mxu0 0.0
        %3673 = vmatpush2.msra.mxu0 0.0
        %3674 = vmatprep.subr.mxu0 0.0
        %3675 = vmatpush2.msra.mxu0 0.0
        %3676 = vmatprep.subr.mxu0 0.0
        %3677 = vmatpush2.msra.mxu0 0.0
        %3678 = vmatprep.subr.mxu0 0.0
        %3679 = vmatpush2.msra.mxu0 0.0
        %3680 = vmatprep.subr.mxu0 0.0
        %3681 = vmatpush2.msra.mxu0 0.0
        %3682 = vmatprep.subr.mxu0 0.0
        %3683 = vmatpush2.msra.mxu0 0.0
        %3684 = vmatprep.subr.mxu0 0.0
        %3685 = vmatpush2.msra.mxu0 0.0
        %3686 = vmatprep.subr.mxu0 0.0
        %3687 = vmatpush2.msra.mxu0 0.0
        %3688 = vmatprep.subr.mxu0 0.0
        %3689 = vmatpush2.msra.mxu0 0.0
        %3690 = vmatprep.subr.mxu0 0.0
        %3691 = vmatpush2.msra.mxu0 0.0
        %3692 = vmatprep.subr.mxu0 0.0
        %3693 = vmatpush2.msra.mxu0 0.0
        %3694 = vmatprep.subr.mxu0 0.0
        %3695 = vmatpush2.msra.mxu0 0.0
        %3696 = vmatprep.subr.mxu0 0.0
        %3697 = vmatpush2.msra.mxu0 0.0
        %3698 = vmatprep.subr.mxu0 0.0
        %3699 = vmatpush2.msra.mxu0 0.0
        %3700 = vmatprep.subr.mxu0 0.0
        %3701 = vmatpush2.msra.mxu0 0.0
        %3702 = vmatprep.subr.mxu0 0.0
        %3703 = vmatpush2.msra.mxu0 0.0
        %3704 = vmatprep.mubr.f32.mxu0 0.0
        %3705 = vmatmul.mubr.f32.gmra.mxu0 %v2227
        %v3706 = vpop.f32.mrf.mxu0
        %v3707 = vadd.f32 %v2224, %v3706
        %v3708 = vpop.f32.mrf.mxu0
        %v3709 = vadd.f32 %v2224, %v3708
        %3710 = vdwg.mxu0
        %v3715 = vcombine.low %v3636, %v3638
        %v3716 = vcombine.low %v3707, %v3709
        %s3719 = scalar_lea.vmem %s380, 16 [#allocation3]
        %3720 = vst [vmem:[%s3719] sm:$0x77] %v3715
        %3721 = vst [vmem:[%s3719 + $0x8] sm:$0x77] %v3716
        %s3722 = sand.u32 %s227, 1
        %s3723 = sand.u32 %s227, 1
        %s3724 = smul.addr %s3723, 32
        %s3725 = scalar_lea.vmem [#allocation3], %s3724
        // Predicated region
        $region80: #{tpu_custom_call.1} parent=74 // pred_check
          %p3726 = pneg %p237
        $region81: #{tpu_custom_call.1} parent=74 // pred_check_branch
          %3728 = sbr.rel (%p3726) target = $region83
        $region82: #{tpu_custom_call.1} parent=74 // pred_region
          %s3729 = smul.u32 4, %s20
          %s3730 = smul.addr %s3729, 4
          %s3731 = scalar_lea.vmem %s9, %s3730
          // Predicated region
          $region84: #{tpu_custom_call.1} parent=82 // pred_check
            _
          $region85: #{tpu_custom_call.1} parent=82 // pred_check_branch
            %3733 = sbr.rel (0) target = $region87
          $region86: #{tpu_custom_call.1} parent=82 // pred_region
            // Predicated region
            $region88: #{tpu_custom_call.1} parent=86 // pred_check
              _
            $region89: #{tpu_custom_call.1} parent=86 // pred_check_branch
              %3735 = sbr.rel (0) target = $region91
            $region90: #{tpu_custom_call.1} parent=86 // pred_region
              loop: start=0, step=1, limit=1
              $region92: #{tpu_custom_call.1} parent=90 // loop_pre_header
                _
              $region93: #{tpu_custom_call.1} parent=90 // loop_header
                %s3737 = sphi 0, %s3741
                %p3738 = scmp.ge.s32.totalorder %s3737, 1
                %s3742 = sphi %s3725, %s3725
                %s3743 = sphi %s3731, %s3731
              $region94: #{tpu_custom_call.1} parent=90 // loop_header_branch
                %3740 = sbr.rel (%p3738) target = $region98
              $region95: #{tpu_custom_call.1} parent=90 // loop_body
                %v3744 = vld [vmem:[%s3742] sm:$0xff]
                %3745 = vst [vmem:[%s3743] sm:$0xff] %v3744
                %v3746 = vld [vmem:[%s3742 + $0x8] sm:$0xff]
                %3747 = vst [vmem:[%s3743 + $0x8] sm:$0xff] %v3746
                %v3748 = vld [vmem:[%s3742 + $0x10] sm:$0xff]
                %3749 = vst [vmem:[%s3743 + $0x20] sm:$0xff] %v3748
                %v3750 = vld [vmem:[%s3742 + $0x18] sm:$0xff]
                %3751 = vst [vmem:[%s3743 + $0x28] sm:$0xff] %v3750
              $region96: #{tpu_custom_call.1} parent=90 // loop_footer
                %s3741 = sadd.s32 1, %s3737
              $region97: #{tpu_custom_call.1} parent=90 // loop_footer_branch
                %3736 = sbr.rel target = $region93
              $region98: #{tpu_custom_call.1} parent=90 // loop_exit
                _
            $region91: #{tpu_custom_call.1} parent=86 // pred_fallthru
              _
            // Predicated region
            $region99: #{tpu_custom_call.1} parent=86 // pred_check
              _
            $region100: #{tpu_custom_call.1} parent=86 // pred_check_branch
              %3753 = sbr.rel target = $region102
            $region101: #{tpu_custom_call.1} parent=86 // pred_region
              _
            $region102: #{tpu_custom_call.1} parent=86 // pred_fallthru
              _
          $region87: #{tpu_custom_call.1} parent=82 // pred_fallthru
            _
          %3754 = vnop
        $region83: #{tpu_custom_call.1} parent=74 // pred_fallthru
          _
      $region75: #{tpu_custom_call.1} parent=5 // pred_fallthru
        _
      %p3755 = scmp.le.s32.totalorder 2, %s15
      // Predicated region
      $region103: #{tpu_custom_call.1} parent=5 // pred_check
        %p3756 = pneg %p3755
      $region104: #{tpu_custom_call.1} parent=5 // pred_check_branch
        %3758 = sbr.rel (%p3756) target = $region106
      $region105: #{tpu_custom_call.1} parent=5 // pred_region
        %s3759 = ssub.s32 %s15, 2
        // Predicated region
        $region107: #{tpu_custom_call.1} parent=105 // pred_check
          %p3760 = pneg %p243
        $region108: #{tpu_custom_call.1} parent=105 // pred_check_branch
          %3762 = sbr.rel (%p3760) target = $region110
        $region109: #{tpu_custom_call.1} parent=105 // pred_region
          %s3763 = sand.u32 %s228, 1
          %s3764 = sand.u32 %s228, 1
          %s3765 = smul.addr %s3764, 32
          %s3766 = scalar_lea.vmem [#allocation3], %s3765
        $region110: #{tpu_custom_call.1} parent=105 // pred_fallthru
          _
      $region106: #{tpu_custom_call.1} parent=5 // pred_fallthru
        _
    $region6: #{tpu_custom_call.1} parent=1 // loop_footer
      %s19 = sadd.s32 1, %s15
    $region7: #{tpu_custom_call.1} parent=1 // loop_footer_branch
      %14 = sbr.rel target = $region3
    $region8: #{tpu_custom_call.1} parent=1 // loop_exit
      _

</llo_original>
